<compile_context>
chip_gen: v6e
topology: v6e:2x2x1
jax: 0.10.0
libtpu: 0.0.40
codegen_flags: <defaults>
</compile_context>

<pallas_src>
import math

import jax
import jax.numpy as jnp
from jax import lax
from jax.experimental import pallas as pl
from jax.experimental.pallas import tpu as pltpu


def _round8(n):
    return max(8, ((n + 7) // 8) * 8)


def _batch_block(B):
    """Batch elements stacked per grid step.

    Single-TC chips (v5e/v6e): whole batch in one step (fewer grid steps,
    higher MXU row occupancy).  2-TC chips (v7x / megacore): split the batch
    into two parallel grid steps so both TensorCores are used.
    """
    kind = ""
    try:
        kind = jax.devices()[0].device_kind.lower()
    except Exception:
        pass
    single_tc = any(s in kind for s in ("v5 lite", "v5e", "v5lite", "v6 lite", "v6e"))
    if single_tc or B <= 1 or B % 2 != 0:
        return B
    return B // 2


# ----------------------------------------------------------------------------
# Single fused forward kernel
# ----------------------------------------------------------------------------
def make_fused_forward(B, Bt, N_pad, D, C_pad, num_layers, n_head):
    assert B % Bt == 0
    G = B // Bt                 # grid steps
    T = Bt * N_pad              # stacked rows per step
    P = _round8(Bt)             # padded row count of the graph-head output
    dh = D // n_head
    scale = 1.0 / math.sqrt(dh)
    eps = 1e-5
    bf16 = jnp.bfloat16

    def mha(x, mask, wqkv, bqkv, wp, bp, y_scr):
        # Single fused q/k/v projection: one (T,D)@(D,3D) MXU op.
        qkv = jnp.dot(x.astype(bf16), wqkv[...],
                      preferred_element_type=jnp.float32) + bqkv[...]
        q = qkv[:, :D].astype(bf16)
        k = qkv[:, D:2 * D].astype(bf16)
        v = qkv[:, 2 * D:].astype(bf16)
        for h in range(n_head):
            sl = slice(h * dh, (h + 1) * dh)
            # q_h @ k_h^T via dot_general (contract last dims; no transpose).
            att = lax.dot_general(q[:, sl], k[:, sl],
                                  (((1,), (1,)), ((), ())),
                                  preferred_element_type=jnp.float32)
            # additive mask: -1e9 on padded keys and cross-batch blocks
            att = att * scale + mask
            att = jax.nn.softmax(att, axis=-1)                    # f32
            # store this head's context at its static column slice
            y_scr[:, sl] = jnp.dot(att.astype(bf16), v[:, sl],
                                   preferred_element_type=jnp.float32)
        # ONE fused output projection against the full Wp (K = D).
        return jnp.dot(y_scr[...].astype(bf16), wp[...],
                       preferred_element_type=jnp.float32) + bp[...]

    def ln_fc(x, gamma, beta, w, b):
        mu = jnp.mean(x, axis=-1, keepdims=True)
        var = jnp.mean((x - mu) ** 2, axis=-1, keepdims=True)
        xn = (x - mu) * lax.rsqrt(var + eps)
        xn = xn * gamma[...] + beta[...]
        return jnp.dot(xn.astype(bf16), w[...],
                       preferred_element_type=jnp.float32) + b[...]

    def kernel(*refs):
        it = iter(refs)
        feat_ref = next(it)                                   # (T, D) f32
        adj_ref = next(it)                                    # (T, T) bf16
        mask_ref = next(it)                                   # (T, T) f32
        pool_ref = next(it)                                   # (P, T) f32
        gcn_w = [next(it) for _ in range(num_layers)]
        node_attn = [[next(it) for _ in range(4)] for _ in range(num_layers)]
        graph_attn = [next(it) for _ in range(4)]
        fc_node = [next(it) for _ in range(4)]
        fc_graph = [next(it) for _ in range(4)]
        node_out_ref = next(it)
        graph_out_ref = next(it)
        y_scr = next(it)                                      # (T, D) f32 scratch

        feat = feat_ref[...]                                  # batch-stacked
        adj_bf = adj_ref[...]                                 # block-diag bf16
        mask = mask_ref[...]

        x = feat
        for i in range(num_layers):
            # GraphConvolution (bias=False): adj @ (x @ W); dropout p=0.
            support = jnp.dot(x.astype(bf16), gcn_w[i][...],
                              preferred_element_type=jnp.float32)
            x = jnp.dot(adj_bf, support.astype(bf16),
                        preferred_element_type=jnp.float32)
            x = mha(x, mask, *node_attn[i], y_scr)
            if i != num_layers - 1:
                x = jnp.where(x > 0, x, 0.2 * x)              # LeakyReLU(0.2)

        anatomy = x + feat                                    # residual

        # Node head: LayerNorm -> Linear (classes padded to 128 lanes).
        node_out_ref[...] = ln_fc(anatomy, *fc_node).astype(node_out_ref.dtype)

        # Graph head: graph attention -> mean over real nodes (pooling matmul)
        # -> LayerNorm -> Linear.
        g = mha(anatomy, mask, *graph_attn, y_scr)
        graph_emb = jnp.dot(pool_ref[...], g,
                            preferred_element_type=jnp.float32)   # (P, D)
        graph_out_ref[...] = ln_fc(graph_emb, *fc_graph).astype(
            graph_out_ref.dtype)

    def const(shape):
        nd = len(shape)
        return pl.BlockSpec(shape, lambda b, nd=nd: (0,) * nd)

    in_specs = [pl.BlockSpec((T, D), lambda b: (b, 0)),       # stacked feature
                const((T, T)),                                # block-diag adj
                const((T, T)),                                # attention mask
                const((P, T))]                                # node-mean pool
    in_specs += [const((D, D)) for _ in range(num_layers)]    # GCN weights
    mha_specs = [const((D, 3 * D)), const((1, 3 * D)),        # fused Wqkv, bqkv
                 const((D, D)), const((1, D))]                # Wp, bp
    for _ in range(num_layers):                               # node attn
        in_specs += list(mha_specs)
    in_specs += list(mha_specs)                               # graph attn
    head_specs = [const((1, D)), const((1, D)),
                  const((D, C_pad)), const((1, C_pad))]
    in_specs += list(head_specs)                              # fc_node
    in_specs += list(head_specs)                              # fc_graph

    out_specs = (pl.BlockSpec((T, C_pad), lambda b: (b, 0)),
                 pl.BlockSpec((P, C_pad), lambda b: (b, 0)))
    out_shape = (jax.ShapeDtypeStruct((B * N_pad, C_pad), jnp.float32),
                 jax.ShapeDtypeStruct((G * P, C_pad), jnp.float32))

    return pl.pallas_call(
        kernel,
        out_shape=out_shape,
        grid=(G,),
        in_specs=in_specs,
        out_specs=out_specs,
        scratch_shapes=[pltpu.VMEM((T, D), jnp.float32)],
        compiler_params=pltpu.CompilerParams(
            dimension_semantics=("parallel",),   # v7x: split batch over 2 TCs
            vmem_limit_bytes=32 * 1024 * 1024,   # ample; working set < 2 MiB
        ),
    )


# ----------------------------------------------------------------------------
# Parameter construction (deterministic, mirrors the PyTorch __init__ shapes).
# Weights that feed the MXU are stored bf16; biases / LN params stay f32.
# ----------------------------------------------------------------------------
def init_params(key, *, anatomy_size, in_channel, anatomy_out, num_classes,
                num_layers, n_head, c_pad):
    assert in_channel == anatomy_out, "module has in_channel == anatomy_out"
    D = in_channel
    ks = iter(jax.random.split(key, 128))

    def uniform(shape, bound):
        return jax.random.uniform(next(ks), shape, jnp.float32, -bound, bound)

    def linear(d_in, d_out):
        bound = 1.0 / math.sqrt(d_in)            # torch Linear default init
        return uniform((d_in, d_out), bound), uniform((1, d_out), bound)

    def mha_params(d):
        wq, bq = linear(d, d)
        wkv, bkv = linear(d, 2 * d)
        wp, bp = linear(d, d)
        # fused q/kv projection weight: one (D, 3D) matmul per MHA
        wqkv = jnp.concatenate([wq, wkv], axis=1).astype(jnp.bfloat16)
        bqkv = jnp.concatenate([bq, bkv], axis=1)
        return [wqkv, bqkv, wp.astype(jnp.bfloat16), bp]

    # GraphConvolution: stdv = 1/sqrt(out_features), bias=False
    gcn = [uniform((D, D), 1.0 / math.sqrt(D)).astype(jnp.bfloat16)
           for _ in range(num_layers)]

    node_attn = [mha_params(D) for _ in range(num_layers)]
    graph_attn = mha_params(D)

    def head():
        w, b = linear(D, num_classes)
        w_pad = jnp.zeros((D, c_pad), jnp.float32).at[:, :num_classes].set(w)
        b_pad = jnp.zeros((1, c_pad), jnp.float32).at[:, :num_classes].set(b)
        return [jnp.ones((1, D), jnp.float32),      # LayerNorm gamma
                jnp.zeros((1, D), jnp.float32),     # LayerNorm beta
                w_pad.astype(jnp.bfloat16), b_pad]

    fc_node = head()
    fc_graph = head()

    # TODO(synk): adjacency normally loaded from anatomy_matrix.csv on disk;
    # replaced with a deterministic random matrix of the same shape.
    adj = jax.random.uniform(next(ks), (anatomy_size, anatomy_size), jnp.float32)

    return {"gcn": gcn, "node_attn": node_attn, "graph_attn": graph_attn,
            "fc_node": fc_node, "fc_graph": fc_graph, "adj": adj,
            "n_head": n_head}


# ----------------------------------------------------------------------------
# Forward pass (global_feat=None path): one fused pallas_call.
# ----------------------------------------------------------------------------
def anaxnet_forward(params, feature, num_classes, c_pad, n_pad=24):
    B, N, D = feature.shape
    num_layers = len(params["gcn"])
    n_head = params["n_head"]

    Bt = _batch_block(B)
    G = B // Bt
    T = Bt * n_pad
    P = _round8(Bt)

    # Pad nodes 18 -> n_pad (sublane multiple) and stack the batch into
    # sublanes: (B, n_pad, D) -> (B*n_pad, D) (a free, tile-aligned reshape).
    feat_pad = jnp.zeros((B, n_pad, D), jnp.float32).at[:, :N, :].set(feature)
    feat_stacked = feat_pad.reshape(B * n_pad, D)

    # Host-built per-step helpers (shared across grid steps):
    #   adj_bd : block-diagonal adjacency (bf16)
    #   mask   : additive attention mask (kills padded keys + cross-batch)
    #   pool   : per-element mean over the N real nodes
    adj = params["adj"]
    adj_bd = jnp.zeros((T, T), jnp.float32)
    mask = jnp.full((T, T), -1e9, jnp.float32)
    pool = jnp.zeros((P, T), jnp.float32)
    for bb in range(Bt):
        r0 = bb * n_pad
        adj_bd = adj_bd.at[r0:r0 + N, r0:r0 + N].set(adj)
        mask = mask.at[r0:r0 + n_pad, r0:r0 + N].set(0.0)
        pool = pool.at[bb, r0:r0 + N].set(1.0 / N)
    adj_bd = adj_bd.astype(jnp.bfloat16)

    fused = make_fused_forward(B, Bt, n_pad, D, c_pad, num_layers, n_head)

    args = [feat_stacked, adj_bd, mask, pool]
    args += params["gcn"]
    for layer in params["node_attn"]:
        args += layer
    args += params["graph_attn"]
    args += params["fc_node"]
    args += params["fc_graph"]

    node_pad, graph_pad = fused(*args)

    node_logits = node_pad.reshape(B, n_pad, c_pad)[:, :N, :num_classes]
    graph_logits = graph_pad.reshape(G, P, c_pad)[:, :Bt, :num_classes]
    graph_logits = graph_logits.reshape(B, num_classes)
    return node_logits, graph_logits


# ----------------------------------------------------------------------------
if __name__ == "__main__":
    # Small shapes consistent with the module (scaled-down hidden dim / heads).
    B = 2              # batch
    ANATOMY = 18       # anatomy_size (number of graph nodes)
    D = 128            # in_channel == anatomy_out (scaled from 1024)
    N_HEAD = 4         # scaled from 16 (head dim = 32)
    NUM_CLASSES = 8
    NUM_LAYERS = 2
    C_PAD = 128        # lane-dense padded class dim (sliced back to 8 outside)

    key = jax.random.PRNGKey(0)
    pkey, xkey = jax.random.split(key)

    params = init_params(pkey, anatomy_size=ANATOMY, in_channel=D,
                         anatomy_out=D, num_classes=NUM_CLASSES,
                         num_layers=NUM_LAYERS, n_head=N_HEAD, c_pad=C_PAD)

    feature = jax.random.normal(xkey, (B, ANATOMY, D), jnp.float32)

    node_logits, graph_logits = anaxnet_forward(params, feature,
                                                NUM_CLASSES, C_PAD)
    jax.block_until_ready((node_logits, graph_logits))

    assert node_logits.shape == (B, ANATOMY, NUM_CLASSES)
    assert graph_logits.shape == (B, NUM_CLASSES)
    print("KERNEL_OK")
</pallas_src>

<mosaic_0001>
module attributes {stable_mosaic.version = 11 : i64} {
  func.func @kernel(%arg0: i32, %arg1: memref<24x128xf32, #tpu.memory_space<vmem>>, %arg2: memref<24x24xbf16, #tpu.memory_space<vmem>>, %arg3: memref<24x24xf32, #tpu.memory_space<vmem>>, %arg4: memref<8x24xf32, #tpu.memory_space<vmem>>, %arg5: memref<128x128xbf16, #tpu.memory_space<vmem>>, %arg6: memref<128x128xbf16, #tpu.memory_space<vmem>>, %arg7: memref<128x384xbf16, #tpu.memory_space<vmem>>, %arg8: memref<1x384xf32, #tpu.memory_space<vmem>>, %arg9: memref<128x128xbf16, #tpu.memory_space<vmem>>, %arg10: memref<1x128xf32, #tpu.memory_space<vmem>>, %arg11: memref<128x384xbf16, #tpu.memory_space<vmem>>, %arg12: memref<1x384xf32, #tpu.memory_space<vmem>>, %arg13: memref<128x128xbf16, #tpu.memory_space<vmem>>, %arg14: memref<1x128xf32, #tpu.memory_space<vmem>>, %arg15: memref<128x384xbf16, #tpu.memory_space<vmem>>, %arg16: memref<1x384xf32, #tpu.memory_space<vmem>>, %arg17: memref<128x128xbf16, #tpu.memory_space<vmem>>, %arg18: memref<1x128xf32, #tpu.memory_space<vmem>>, %arg19: memref<1x128xf32, #tpu.memory_space<vmem>>, %arg20: memref<1x128xf32, #tpu.memory_space<vmem>>, %arg21: memref<128x128xbf16, #tpu.memory_space<vmem>>, %arg22: memref<1x128xf32, #tpu.memory_space<vmem>>, %arg23: memref<1x128xf32, #tpu.memory_space<vmem>>, %arg24: memref<1x128xf32, #tpu.memory_space<vmem>>, %arg25: memref<128x128xbf16, #tpu.memory_space<vmem>>, %arg26: memref<1x128xf32, #tpu.memory_space<vmem>>, %arg27: memref<24x128xf32, #tpu.memory_space<vmem>>, %arg28: memref<8x128xf32, #tpu.memory_space<vmem>>, %arg29: memref<24x128xf32, #tpu.memory_space<vmem>>) attributes {dimension_semantics = [#tpu.dimension_semantics<parallel>], iteration_bounds = array<i64: 2>, scalar_prefetch = 0 : i64, scratch_operands = 1 : i64, tpu.core_type = #tpu.core_type<tc>, window_params = [{transform_indices = @transform_0, window_bounds = array<i64: 24, 128>}, {pipeline_mode = #tpu.pipeline_mode<synchronous>, transform_indices = @transform_1, window_bounds = array<i64: 24, 24>}, {pipeline_mode = #tpu.pipeline_mode<synchronous>, transform_indices = @transform_2, window_bounds = array<i64: 24, 24>}, {pipeline_mode = #tpu.pipeline_mode<synchronous>, transform_indices = @transform_3, window_bounds = array<i64: 8, 24>}, {pipeline_mode = #tpu.pipeline_mode<synchronous>, transform_indices = @transform_4, window_bounds = array<i64: 128, 128>}, {pipeline_mode = #tpu.pipeline_mode<synchronous>, transform_indices = @transform_5, window_bounds = array<i64: 128, 128>}, {pipeline_mode = #tpu.pipeline_mode<synchronous>, transform_indices = @transform_6, window_bounds = array<i64: 128, 384>}, {pipeline_mode = #tpu.pipeline_mode<synchronous>, transform_indices = @transform_7, window_bounds = array<i64: 1, 384>}, {pipeline_mode = #tpu.pipeline_mode<synchronous>, transform_indices = @transform_8, window_bounds = array<i64: 128, 128>}, {pipeline_mode = #tpu.pipeline_mode<synchronous>, transform_indices = @transform_9, window_bounds = array<i64: 1, 128>}, {pipeline_mode = #tpu.pipeline_mode<synchronous>, transform_indices = @transform_10, window_bounds = array<i64: 128, 384>}, {pipeline_mode = #tpu.pipeline_mode<synchronous>, transform_indices = @transform_11, window_bounds = array<i64: 1, 384>}, {pipeline_mode = #tpu.pipeline_mode<synchronous>, transform_indices = @transform_12, window_bounds = array<i64: 128, 128>}, {pipeline_mode = #tpu.pipeline_mode<synchronous>, transform_indices = @transform_13, window_bounds = array<i64: 1, 128>}, {pipeline_mode = #tpu.pipeline_mode<synchronous>, transform_indices = @transform_14, window_bounds = array<i64: 128, 384>}, {pipeline_mode = #tpu.pipeline_mode<synchronous>, transform_indices = @transform_15, window_bounds = array<i64: 1, 384>}, {pipeline_mode = #tpu.pipeline_mode<synchronous>, transform_indices = @transform_16, window_bounds = array<i64: 128, 128>}, {pipeline_mode = #tpu.pipeline_mode<synchronous>, transform_indices = @transform_17, window_bounds = array<i64: 1, 128>}, {pipeline_mode = #tpu.pipeline_mode<synchronous>, transform_indices = @transform_18, window_bounds = array<i64: 1, 128>}, {pipeline_mode = #tpu.pipeline_mode<synchronous>, transform_indices = @transform_19, window_bounds = array<i64: 1, 128>}, {pipeline_mode = #tpu.pipeline_mode<synchronous>, transform_indices = @transform_20, window_bounds = array<i64: 128, 128>}, {pipeline_mode = #tpu.pipeline_mode<synchronous>, transform_indices = @transform_21, window_bounds = array<i64: 1, 128>}, {pipeline_mode = #tpu.pipeline_mode<synchronous>, transform_indices = @transform_22, window_bounds = array<i64: 1, 128>}, {pipeline_mode = #tpu.pipeline_mode<synchronous>, transform_indices = @transform_23, window_bounds = array<i64: 1, 128>}, {pipeline_mode = #tpu.pipeline_mode<synchronous>, transform_indices = @transform_24, window_bounds = array<i64: 128, 128>}, {pipeline_mode = #tpu.pipeline_mode<synchronous>, transform_indices = @transform_25, window_bounds = array<i64: 1, 128>}, {transform_indices = @transform_26, window_bounds = array<i64: 24, 128>}, {transform_indices = @transform_27, window_bounds = array<i64: 8, 128>}]} {
    %c0 = arith.constant 0 : index
    %c0_0 = arith.constant 0 : index
    %0 = vector.load %arg1[%c0, %c0_0] : memref<24x128xf32, #tpu.memory_space<vmem>>, vector<24x128xf32>
    %c0_1 = arith.constant 0 : index
    %c0_2 = arith.constant 0 : index
    %1 = vector.load %arg2[%c0_1, %c0_2] : memref<24x24xbf16, #tpu.memory_space<vmem>>, vector<24x24xbf16>
    %c0_3 = arith.constant 0 : index
    %c0_4 = arith.constant 0 : index
    %2 = vector.load %arg3[%c0_3, %c0_4] : memref<24x24xf32, #tpu.memory_space<vmem>>, vector<24x24xf32>
    %3 = arith.truncf %0 : vector<24x128xf32> to vector<24x128xbf16>
    %c0_5 = arith.constant 0 : index
    %c0_6 = arith.constant 0 : index
    %4 = vector.load %arg5[%c0_5, %c0_6] : memref<128x128xbf16, #tpu.memory_space<vmem>>, vector<128x128xbf16>
    %cst = arith.constant dense<0.000000e+00> : vector<24x128xf32>
    %5 = tpu.matmul %3, %4, %cst {dimension_numbers = #tpu.dot_dimension_numbers<[1], [0], [0], [1], [0, 0, 1, 1], [], []>} : vector<24x128xbf16>, vector<128x128xbf16>, vector<24x128xf32> -> vector<24x128xf32>
    %6 = arith.truncf %5 : vector<24x128xf32> to vector<24x128xbf16>
    %cst_7 = arith.constant dense<0.000000e+00> : vector<24x128xf32>
    %7 = tpu.matmul %1, %6, %cst_7 {dimension_numbers = #tpu.dot_dimension_numbers<[1], [0], [0], [1], [0, 0, 1, 1], [], []>} : vector<24x24xbf16>, vector<24x128xbf16>, vector<24x128xf32> -> vector<24x128xf32>
    %8 = arith.truncf %7 : vector<24x128xf32> to vector<24x128xbf16>
    %c0_8 = arith.constant 0 : index
    %c0_9 = arith.constant 0 : index
    %9 = vector.load %arg7[%c0_8, %c0_9] : memref<128x384xbf16, #tpu.memory_space<vmem>>, vector<128x384xbf16>
    %cst_10 = arith.constant dense<0.000000e+00> : vector<24x384xf32>
    %10 = tpu.matmul %8, %9, %cst_10 {dimension_numbers = #tpu.dot_dimension_numbers<[1], [0], [0], [1], [0, 0, 1, 1], [], []>} : vector<24x128xbf16>, vector<128x384xbf16>, vector<24x384xf32> -> vector<24x384xf32>
    %c0_11 = arith.constant 0 : index
    %c0_12 = arith.constant 0 : index
    %11 = vector.load %arg8[%c0_11, %c0_12] : memref<1x384xf32, #tpu.memory_space<vmem>>, vector<1x384xf32>
    %12 = vector.broadcast %11 : vector<1x384xf32> to vector<24x384xf32>
    %13 = arith.addf %10, %12 : vector<24x384xf32>
    %14 = vector.extract_strided_slice %13 {offsets = [0, 0], sizes = [24, 128], strides = [1, 1]} : vector<24x384xf32> to vector<24x128xf32>
    %15 = arith.truncf %14 : vector<24x128xf32> to vector<24x128xbf16>
    %16 = vector.extract_strided_slice %13 {offsets = [0, 128], sizes = [24, 128], strides = [1, 1]} : vector<24x384xf32> to vector<24x128xf32>
    %17 = arith.truncf %16 : vector<24x128xf32> to vector<24x128xbf16>
    %18 = vector.extract_strided_slice %13 {offsets = [0, 256], sizes = [24, 128], strides = [1, 1]} : vector<24x384xf32> to vector<24x128xf32>
    %19 = arith.truncf %18 : vector<24x128xf32> to vector<24x128xbf16>
    %20 = vector.extract_strided_slice %15 {offsets = [0, 0], sizes = [24, 32], strides = [1, 1]} : vector<24x128xbf16> to vector<24x32xbf16>
    %21 = vector.extract_strided_slice %17 {offsets = [0, 0], sizes = [24, 32], strides = [1, 1]} : vector<24x128xbf16> to vector<24x32xbf16>
    %cst_13 = arith.constant dense<0.000000e+00> : vector<24x24xf32>
    %22 = tpu.matmul %20, %21, %cst_13 {dimension_numbers = #tpu.dot_dimension_numbers<[1], [1], [0], [0], [0, 0, 1, 0], [], []>} : vector<24x32xbf16>, vector<24x32xbf16>, vector<24x24xf32> -> vector<24x24xf32>
    %cst_14 = arith.constant 0.176776692 : f32
    %23 = vector.broadcast %cst_14 : f32 to vector<24x24xf32>
    %24 = arith.mulf %22, %23 : vector<24x24xf32>
    %25 = arith.addf %24, %2 : vector<24x24xf32>
    %cst_15 = arith.constant dense<0xFF800000> : vector<24xf32>
    %26 = vector.multi_reduction <maximumf>, %25, %cst_15 [1] : vector<24x24xf32> to vector<24xf32>
    %cst_16 = arith.constant 0xFF800000 : f32
    %27 = vector.broadcast %cst_16 : f32 to vector<24xf32>
    %28 = arith.maximumf %27, %26 : vector<24xf32>
    %29 = vector.shape_cast %28 : vector<24xf32> to vector<24x1xf32>
    %30 = vector.broadcast %29 : vector<24x1xf32> to vector<24x24xf32>
    %31 = arith.subf %25, %30 : vector<24x24xf32>
    %32 = math.exp %31 : vector<24x24xf32>
    %cst_17 = arith.constant dense<0.000000e+00> : vector<24xf32>
    %33 = vector.multi_reduction <add>, %32, %cst_17 [1] : vector<24x24xf32> to vector<24xf32>
    %34 = vector.shape_cast %33 : vector<24xf32> to vector<24x1xf32>
    %35 = vector.broadcast %34 : vector<24x1xf32> to vector<24x24xf32>
    %36 = arith.divf %32, %35 : vector<24x24xf32>
    %37 = arith.truncf %36 : vector<24x24xf32> to vector<24x24xbf16>
    %38 = vector.extract_strided_slice %19 {offsets = [0, 0], sizes = [24, 32], strides = [1, 1]} : vector<24x128xbf16> to vector<24x32xbf16>
    %cst_18 = arith.constant dense<0.000000e+00> : vector<24x32xf32>
    %39 = tpu.matmul %37, %38, %cst_18 {dimension_numbers = #tpu.dot_dimension_numbers<[1], [0], [0], [1], [0, 0, 1, 1], [], []>} : vector<24x24xbf16>, vector<24x32xbf16>, vector<24x32xf32> -> vector<24x32xf32>
    %c0_19 = arith.constant 0 : index
    %c0_20 = arith.constant 0 : index
    %40 = vector.load %arg29[%c0_19, %c0_20] : memref<24x128xf32, #tpu.memory_space<vmem>>, vector<24x32xf32>
    tpu.vector_store %arg29[%c0_19, %c0_20], %39 {strides = array<i32>} : memref<24x128xf32, #tpu.memory_space<vmem>>, vector<24x32xf32>,
    %41 = vector.extract_strided_slice %15 {offsets = [0, 32], sizes = [24, 32], strides = [1, 1]} : vector<24x128xbf16> to vector<24x32xbf16>
    %42 = vector.extract_strided_slice %17 {offsets = [0, 32], sizes = [24, 32], strides = [1, 1]} : vector<24x128xbf16> to vector<24x32xbf16>
    %cst_21 = arith.constant dense<0.000000e+00> : vector<24x24xf32>
    %43 = tpu.matmul %41, %42, %cst_21 {dimension_numbers = #tpu.dot_dimension_numbers<[1], [1], [0], [0], [0, 0, 1, 0], [], []>} : vector<24x32xbf16>, vector<24x32xbf16>, vector<24x24xf32> -> vector<24x24xf32>
    %cst_22 = arith.constant 0.176776692 : f32
    %44 = vector.broadcast %cst_22 : f32 to vector<24x24xf32>
    %45 = arith.mulf %43, %44 : vector<24x24xf32>
    %46 = arith.addf %45, %2 : vector<24x24xf32>
    %cst_23 = arith.constant dense<0xFF800000> : vector<24xf32>
    %47 = vector.multi_reduction <maximumf>, %46, %cst_23 [1] : vector<24x24xf32> to vector<24xf32>
    %cst_24 = arith.constant 0xFF800000 : f32
    %48 = vector.broadcast %cst_24 : f32 to vector<24xf32>
    %49 = arith.maximumf %48, %47 : vector<24xf32>
    %50 = vector.shape_cast %49 : vector<24xf32> to vector<24x1xf32>
    %51 = vector.broadcast %50 : vector<24x1xf32> to vector<24x24xf32>
    %52 = arith.subf %46, %51 : vector<24x24xf32>
    %53 = math.exp %52 : vector<24x24xf32>
    %cst_25 = arith.constant dense<0.000000e+00> : vector<24xf32>
    %54 = vector.multi_reduction <add>, %53, %cst_25 [1] : vector<24x24xf32> to vector<24xf32>
    %55 = vector.shape_cast %54 : vector<24xf32> to vector<24x1xf32>
    %56 = vector.broadcast %55 : vector<24x1xf32> to vector<24x24xf32>
    %57 = arith.divf %53, %56 : vector<24x24xf32>
    %58 = arith.truncf %57 : vector<24x24xf32> to vector<24x24xbf16>
    %59 = vector.extract_strided_slice %19 {offsets = [0, 32], sizes = [24, 32], strides = [1, 1]} : vector<24x128xbf16> to vector<24x32xbf16>
    %cst_26 = arith.constant dense<0.000000e+00> : vector<24x32xf32>
    %60 = tpu.matmul %58, %59, %cst_26 {dimension_numbers = #tpu.dot_dimension_numbers<[1], [0], [0], [1], [0, 0, 1, 1], [], []>} : vector<24x24xbf16>, vector<24x32xbf16>, vector<24x32xf32> -> vector<24x32xf32>
    %c0_27 = arith.constant 0 : index
    %c32 = arith.constant 32 : index
    %61 = vector.load %arg29[%c0_27, %c32] : memref<24x128xf32, #tpu.memory_space<vmem>>, vector<24x32xf32>
    tpu.vector_store %arg29[%c0_27, %c32], %60 {strides = array<i32>} : memref<24x128xf32, #tpu.memory_space<vmem>>, vector<24x32xf32>,
    %62 = vector.extract_strided_slice %15 {offsets = [0, 64], sizes = [24, 32], strides = [1, 1]} : vector<24x128xbf16> to vector<24x32xbf16>
    %63 = vector.extract_strided_slice %17 {offsets = [0, 64], sizes = [24, 32], strides = [1, 1]} : vector<24x128xbf16> to vector<24x32xbf16>
    %cst_28 = arith.constant dense<0.000000e+00> : vector<24x24xf32>
    %64 = tpu.matmul %62, %63, %cst_28 {dimension_numbers = #tpu.dot_dimension_numbers<[1], [1], [0], [0], [0, 0, 1, 0], [], []>} : vector<24x32xbf16>, vector<24x32xbf16>, vector<24x24xf32> -> vector<24x24xf32>
    %cst_29 = arith.constant 0.176776692 : f32
    %65 = vector.broadcast %cst_29 : f32 to vector<24x24xf32>
    %66 = arith.mulf %64, %65 : vector<24x24xf32>
    %67 = arith.addf %66, %2 : vector<24x24xf32>
    %cst_30 = arith.constant dense<0xFF800000> : vector<24xf32>
    %68 = vector.multi_reduction <maximumf>, %67, %cst_30 [1] : vector<24x24xf32> to vector<24xf32>
    %cst_31 = arith.constant 0xFF800000 : f32
    %69 = vector.broadcast %cst_31 : f32 to vector<24xf32>
    %70 = arith.maximumf %69, %68 : vector<24xf32>
    %71 = vector.shape_cast %70 : vector<24xf32> to vector<24x1xf32>
    %72 = vector.broadcast %71 : vector<24x1xf32> to vector<24x24xf32>
    %73 = arith.subf %67, %72 : vector<24x24xf32>
    %74 = math.exp %73 : vector<24x24xf32>
    %cst_32 = arith.constant dense<0.000000e+00> : vector<24xf32>
    %75 = vector.multi_reduction <add>, %74, %cst_32 [1] : vector<24x24xf32> to vector<24xf32>
    %76 = vector.shape_cast %75 : vector<24xf32> to vector<24x1xf32>
    %77 = vector.broadcast %76 : vector<24x1xf32> to vector<24x24xf32>
    %78 = arith.divf %74, %77 : vector<24x24xf32>
    %79 = arith.truncf %78 : vector<24x24xf32> to vector<24x24xbf16>
    %80 = vector.extract_strided_slice %19 {offsets = [0, 64], sizes = [24, 32], strides = [1, 1]} : vector<24x128xbf16> to vector<24x32xbf16>
    %cst_33 = arith.constant dense<0.000000e+00> : vector<24x32xf32>
    %81 = tpu.matmul %79, %80, %cst_33 {dimension_numbers = #tpu.dot_dimension_numbers<[1], [0], [0], [1], [0, 0, 1, 1], [], []>} : vector<24x24xbf16>, vector<24x32xbf16>, vector<24x32xf32> -> vector<24x32xf32>
    %c0_34 = arith.constant 0 : index
    %c64 = arith.constant 64 : index
    %82 = vector.load %arg29[%c0_34, %c64] : memref<24x128xf32, #tpu.memory_space<vmem>>, vector<24x32xf32>
    tpu.vector_store %arg29[%c0_34, %c64], %81 {strides = array<i32>} : memref<24x128xf32, #tpu.memory_space<vmem>>, vector<24x32xf32>,
    %83 = vector.extract_strided_slice %15 {offsets = [0, 96], sizes = [24, 32], strides = [1, 1]} : vector<24x128xbf16> to vector<24x32xbf16>
    %84 = vector.extract_strided_slice %17 {offsets = [0, 96], sizes = [24, 32], strides = [1, 1]} : vector<24x128xbf16> to vector<24x32xbf16>
    %cst_35 = arith.constant dense<0.000000e+00> : vector<24x24xf32>
    %85 = tpu.matmul %83, %84, %cst_35 {dimension_numbers = #tpu.dot_dimension_numbers<[1], [1], [0], [0], [0, 0, 1, 0], [], []>} : vector<24x32xbf16>, vector<24x32xbf16>, vector<24x24xf32> -> vector<24x24xf32>
    %cst_36 = arith.constant 0.176776692 : f32
    %86 = vector.broadcast %cst_36 : f32 to vector<24x24xf32>
    %87 = arith.mulf %85, %86 : vector<24x24xf32>
    %88 = arith.addf %87, %2 : vector<24x24xf32>
    %cst_37 = arith.constant dense<0xFF800000> : vector<24xf32>
    %89 = vector.multi_reduction <maximumf>, %88, %cst_37 [1] : vector<24x24xf32> to vector<24xf32>
    %cst_38 = arith.constant 0xFF800000 : f32
    %90 = vector.broadcast %cst_38 : f32 to vector<24xf32>
    %91 = arith.maximumf %90, %89 : vector<24xf32>
    %92 = vector.shape_cast %91 : vector<24xf32> to vector<24x1xf32>
    %93 = vector.broadcast %92 : vector<24x1xf32> to vector<24x24xf32>
    %94 = arith.subf %88, %93 : vector<24x24xf32>
    %95 = math.exp %94 : vector<24x24xf32>
    %cst_39 = arith.constant dense<0.000000e+00> : vector<24xf32>
    %96 = vector.multi_reduction <add>, %95, %cst_39 [1] : vector<24x24xf32> to vector<24xf32>
    %97 = vector.shape_cast %96 : vector<24xf32> to vector<24x1xf32>
    %98 = vector.broadcast %97 : vector<24x1xf32> to vector<24x24xf32>
    %99 = arith.divf %95, %98 : vector<24x24xf32>
    %100 = arith.truncf %99 : vector<24x24xf32> to vector<24x24xbf16>
    %101 = vector.extract_strided_slice %19 {offsets = [0, 96], sizes = [24, 32], strides = [1, 1]} : vector<24x128xbf16> to vector<24x32xbf16>
    %cst_40 = arith.constant dense<0.000000e+00> : vector<24x32xf32>
    %102 = tpu.matmul %100, %101, %cst_40 {dimension_numbers = #tpu.dot_dimension_numbers<[1], [0], [0], [1], [0, 0, 1, 1], [], []>} : vector<24x24xbf16>, vector<24x32xbf16>, vector<24x32xf32> -> vector<24x32xf32>
    %c0_41 = arith.constant 0 : index
    %c96 = arith.constant 96 : index
    %103 = vector.load %arg29[%c0_41, %c96] : memref<24x128xf32, #tpu.memory_space<vmem>>, vector<24x32xf32>
    tpu.vector_store %arg29[%c0_41, %c96], %102 {strides = array<i32>} : memref<24x128xf32, #tpu.memory_space<vmem>>, vector<24x32xf32>,
    %c0_42 = arith.constant 0 : index
    %c0_43 = arith.constant 0 : index
    %104 = vector.load %arg29[%c0_42, %c0_43] : memref<24x128xf32, #tpu.memory_space<vmem>>, vector<24x128xf32>
    %105 = arith.truncf %104 : vector<24x128xf32> to vector<24x128xbf16>
    %c0_44 = arith.constant 0 : index
    %c0_45 = arith.constant 0 : index
    %106 = vector.load %arg9[%c0_44, %c0_45] : memref<128x128xbf16, #tpu.memory_space<vmem>>, vector<128x128xbf16>
    %cst_46 = arith.constant dense<0.000000e+00> : vector<24x128xf32>
    %107 = tpu.matmul %105, %106, %cst_46 {dimension_numbers = #tpu.dot_dimension_numbers<[1], [0], [0], [1], [0, 0, 1, 1], [], []>} : vector<24x128xbf16>, vector<128x128xbf16>, vector<24x128xf32> -> vector<24x128xf32>
    %c0_47 = arith.constant 0 : index
    %c0_48 = arith.constant 0 : index
    %108 = vector.load %arg10[%c0_47, %c0_48] : memref<1x128xf32, #tpu.memory_space<vmem>>, vector<1x128xf32>
    %109 = vector.broadcast %108 : vector<1x128xf32> to vector<24x128xf32>
    %110 = arith.addf %107, %109 : vector<24x128xf32>
    %cst_49 = arith.constant 0.000000e+00 : f32
    %111 = vector.broadcast %cst_49 : f32 to vector<24x128xf32>
    %112 = arith.cmpf ogt, %110, %111 : vector<24x128xf32>
    %cst_50 = arith.constant 2.000000e-01 : f32
    %113 = vector.broadcast %cst_50 : f32 to vector<24x128xf32>
    %114 = arith.mulf %113, %110 : vector<24x128xf32>
    %115 = arith.select %112, %110, %114 : vector<24x128xi1>, vector<24x128xf32>
    %116 = arith.truncf %115 : vector<24x128xf32> to vector<24x128xbf16>
    %c0_51 = arith.constant 0 : index
    %c0_52 = arith.constant 0 : index
    %117 = vector.load %arg6[%c0_51, %c0_52] : memref<128x128xbf16, #tpu.memory_space<vmem>>, vector<128x128xbf16>
    %cst_53 = arith.constant dense<0.000000e+00> : vector<24x128xf32>
    %118 = tpu.matmul %116, %117, %cst_53 {dimension_numbers = #tpu.dot_dimension_numbers<[1], [0], [0], [1], [0, 0, 1, 1], [], []>} : vector<24x128xbf16>, vector<128x128xbf16>, vector<24x128xf32> -> vector<24x128xf32>
    %119 = arith.truncf %118 : vector<24x128xf32> to vector<24x128xbf16>
    %cst_54 = arith.constant dense<0.000000e+00> : vector<24x128xf32>
    %120 = tpu.matmul %1, %119, %cst_54 {dimension_numbers = #tpu.dot_dimension_numbers<[1], [0], [0], [1], [0, 0, 1, 1], [], []>} : vector<24x24xbf16>, vector<24x128xbf16>, vector<24x128xf32> -> vector<24x128xf32>
    %121 = arith.truncf %120 : vector<24x128xf32> to vector<24x128xbf16>
    %c0_55 = arith.constant 0 : index
    %c0_56 = arith.constant 0 : index
    %122 = vector.load %arg11[%c0_55, %c0_56] : memref<128x384xbf16, #tpu.memory_space<vmem>>, vector<128x384xbf16>
    %cst_57 = arith.constant dense<0.000000e+00> : vector<24x384xf32>
    %123 = tpu.matmul %121, %122, %cst_57 {dimension_numbers = #tpu.dot_dimension_numbers<[1], [0], [0], [1], [0, 0, 1, 1], [], []>} : vector<24x128xbf16>, vector<128x384xbf16>, vector<24x384xf32> -> vector<24x384xf32>
    %c0_58 = arith.constant 0 : index
    %c0_59 = arith.constant 0 : index
    %124 = vector.load %arg12[%c0_58, %c0_59] : memref<1x384xf32, #tpu.memory_space<vmem>>, vector<1x384xf32>
    %125 = vector.broadcast %124 : vector<1x384xf32> to vector<24x384xf32>
    %126 = arith.addf %123, %125 : vector<24x384xf32>
    %127 = vector.extract_strided_slice %126 {offsets = [0, 0], sizes = [24, 128], strides = [1, 1]} : vector<24x384xf32> to vector<24x128xf32>
    %128 = arith.truncf %127 : vector<24x128xf32> to vector<24x128xbf16>
    %129 = vector.extract_strided_slice %126 {offsets = [0, 128], sizes = [24, 128], strides = [1, 1]} : vector<24x384xf32> to vector<24x128xf32>
    %130 = arith.truncf %129 : vector<24x128xf32> to vector<24x128xbf16>
    %131 = vector.extract_strided_slice %126 {offsets = [0, 256], sizes = [24, 128], strides = [1, 1]} : vector<24x384xf32> to vector<24x128xf32>
    %132 = arith.truncf %131 : vector<24x128xf32> to vector<24x128xbf16>
    %133 = vector.extract_strided_slice %128 {offsets = [0, 0], sizes = [24, 32], strides = [1, 1]} : vector<24x128xbf16> to vector<24x32xbf16>
    %134 = vector.extract_strided_slice %130 {offsets = [0, 0], sizes = [24, 32], strides = [1, 1]} : vector<24x128xbf16> to vector<24x32xbf16>
    %cst_60 = arith.constant dense<0.000000e+00> : vector<24x24xf32>
    %135 = tpu.matmul %133, %134, %cst_60 {dimension_numbers = #tpu.dot_dimension_numbers<[1], [1], [0], [0], [0, 0, 1, 0], [], []>} : vector<24x32xbf16>, vector<24x32xbf16>, vector<24x24xf32> -> vector<24x24xf32>
    %cst_61 = arith.constant 0.176776692 : f32
    %136 = vector.broadcast %cst_61 : f32 to vector<24x24xf32>
    %137 = arith.mulf %135, %136 : vector<24x24xf32>
    %138 = arith.addf %137, %2 : vector<24x24xf32>
    %cst_62 = arith.constant dense<0xFF800000> : vector<24xf32>
    %139 = vector.multi_reduction <maximumf>, %138, %cst_62 [1] : vector<24x24xf32> to vector<24xf32>
    %cst_63 = arith.constant 0xFF800000 : f32
    %140 = vector.broadcast %cst_63 : f32 to vector<24xf32>
    %141 = arith.maximumf %140, %139 : vector<24xf32>
    %142 = vector.shape_cast %141 : vector<24xf32> to vector<24x1xf32>
    %143 = vector.broadcast %142 : vector<24x1xf32> to vector<24x24xf32>
    %144 = arith.subf %138, %143 : vector<24x24xf32>
    %145 = math.exp %144 : vector<24x24xf32>
    %cst_64 = arith.constant dense<0.000000e+00> : vector<24xf32>
    %146 = vector.multi_reduction <add>, %145, %cst_64 [1] : vector<24x24xf32> to vector<24xf32>
    %147 = vector.shape_cast %146 : vector<24xf32> to vector<24x1xf32>
    %148 = vector.broadcast %147 : vector<24x1xf32> to vector<24x24xf32>
    %149 = arith.divf %145, %148 : vector<24x24xf32>
    %150 = arith.truncf %149 : vector<24x24xf32> to vector<24x24xbf16>
    %151 = vector.extract_strided_slice %132 {offsets = [0, 0], sizes = [24, 32], strides = [1, 1]} : vector<24x128xbf16> to vector<24x32xbf16>
    %cst_65 = arith.constant dense<0.000000e+00> : vector<24x32xf32>
    %152 = tpu.matmul %150, %151, %cst_65 {dimension_numbers = #tpu.dot_dimension_numbers<[1], [0], [0], [1], [0, 0, 1, 1], [], []>} : vector<24x24xbf16>, vector<24x32xbf16>, vector<24x32xf32> -> vector<24x32xf32>
    %c0_66 = arith.constant 0 : index
    %c0_67 = arith.constant 0 : index
    %153 = vector.load %arg29[%c0_66, %c0_67] : memref<24x128xf32, #tpu.memory_space<vmem>>, vector<24x32xf32>
    tpu.vector_store %arg29[%c0_66, %c0_67], %152 {strides = array<i32>} : memref<24x128xf32, #tpu.memory_space<vmem>>, vector<24x32xf32>,
    %154 = vector.extract_strided_slice %128 {offsets = [0, 32], sizes = [24, 32], strides = [1, 1]} : vector<24x128xbf16> to vector<24x32xbf16>
    %155 = vector.extract_strided_slice %130 {offsets = [0, 32], sizes = [24, 32], strides = [1, 1]} : vector<24x128xbf16> to vector<24x32xbf16>
    %cst_68 = arith.constant dense<0.000000e+00> : vector<24x24xf32>
    %156 = tpu.matmul %154, %155, %cst_68 {dimension_numbers = #tpu.dot_dimension_numbers<[1], [1], [0], [0], [0, 0, 1, 0], [], []>} : vector<24x32xbf16>, vector<24x32xbf16>, vector<24x24xf32> -> vector<24x24xf32>
    %cst_69 = arith.constant 0.176776692 : f32
    %157 = vector.broadcast %cst_69 : f32 to vector<24x24xf32>
    %158 = arith.mulf %156, %157 : vector<24x24xf32>
    %159 = arith.addf %158, %2 : vector<24x24xf32>
    %cst_70 = arith.constant dense<0xFF800000> : vector<24xf32>
    %160 = vector.multi_reduction <maximumf>, %159, %cst_70 [1] : vector<24x24xf32> to vector<24xf32>
    %cst_71 = arith.constant 0xFF800000 : f32
    %161 = vector.broadcast %cst_71 : f32 to vector<24xf32>
    %162 = arith.maximumf %161, %160 : vector<24xf32>
    %163 = vector.shape_cast %162 : vector<24xf32> to vector<24x1xf32>
    %164 = vector.broadcast %163 : vector<24x1xf32> to vector<24x24xf32>
    %165 = arith.subf %159, %164 : vector<24x24xf32>
    %166 = math.exp %165 : vector<24x24xf32>
    %cst_72 = arith.constant dense<0.000000e+00> : vector<24xf32>
    %167 = vector.multi_reduction <add>, %166, %cst_72 [1] : vector<24x24xf32> to vector<24xf32>
    %168 = vector.shape_cast %167 : vector<24xf32> to vector<24x1xf32>
    %169 = vector.broadcast %168 : vector<24x1xf32> to vector<24x24xf32>
    %170 = arith.divf %166, %169 : vector<24x24xf32>
    %171 = arith.truncf %170 : vector<24x24xf32> to vector<24x24xbf16>
    %172 = vector.extract_strided_slice %132 {offsets = [0, 32], sizes = [24, 32], strides = [1, 1]} : vector<24x128xbf16> to vector<24x32xbf16>
    %cst_73 = arith.constant dense<0.000000e+00> : vector<24x32xf32>
    %173 = tpu.matmul %171, %172, %cst_73 {dimension_numbers = #tpu.dot_dimension_numbers<[1], [0], [0], [1], [0, 0, 1, 1], [], []>} : vector<24x24xbf16>, vector<24x32xbf16>, vector<24x32xf32> -> vector<24x32xf32>
    %c0_74 = arith.constant 0 : index
    %c32_75 = arith.constant 32 : index
    %174 = vector.load %arg29[%c0_74, %c32_75] : memref<24x128xf32, #tpu.memory_space<vmem>>, vector<24x32xf32>
    tpu.vector_store %arg29[%c0_74, %c32_75], %173 {strides = array<i32>} : memref<24x128xf32, #tpu.memory_space<vmem>>, vector<24x32xf32>,
    %175 = vector.extract_strided_slice %128 {offsets = [0, 64], sizes = [24, 32], strides = [1, 1]} : vector<24x128xbf16> to vector<24x32xbf16>
    %176 = vector.extract_strided_slice %130 {offsets = [0, 64], sizes = [24, 32], strides = [1, 1]} : vector<24x128xbf16> to vector<24x32xbf16>
    %cst_76 = arith.constant dense<0.000000e+00> : vector<24x24xf32>
    %177 = tpu.matmul %175, %176, %cst_76 {dimension_numbers = #tpu.dot_dimension_numbers<[1], [1], [0], [0], [0, 0, 1, 0], [], []>} : vector<24x32xbf16>, vector<24x32xbf16>, vector<24x24xf32> -> vector<24x24xf32>
    %cst_77 = arith.constant 0.176776692 : f32
    %178 = vector.broadcast %cst_77 : f32 to vector<24x24xf32>
    %179 = arith.mulf %177, %178 : vector<24x24xf32>
    %180 = arith.addf %179, %2 : vector<24x24xf32>
    %cst_78 = arith.constant dense<0xFF800000> : vector<24xf32>
    %181 = vector.multi_reduction <maximumf>, %180, %cst_78 [1] : vector<24x24xf32> to vector<24xf32>
    %cst_79 = arith.constant 0xFF800000 : f32
    %182 = vector.broadcast %cst_79 : f32 to vector<24xf32>
    %183 = arith.maximumf %182, %181 : vector<24xf32>
    %184 = vector.shape_cast %183 : vector<24xf32> to vector<24x1xf32>
    %185 = vector.broadcast %184 : vector<24x1xf32> to vector<24x24xf32>
    %186 = arith.subf %180, %185 : vector<24x24xf32>
    %187 = math.exp %186 : vector<24x24xf32>
    %cst_80 = arith.constant dense<0.000000e+00> : vector<24xf32>
    %188 = vector.multi_reduction <add>, %187, %cst_80 [1] : vector<24x24xf32> to vector<24xf32>
    %189 = vector.shape_cast %188 : vector<24xf32> to vector<24x1xf32>
    %190 = vector.broadcast %189 : vector<24x1xf32> to vector<24x24xf32>
    %191 = arith.divf %187, %190 : vector<24x24xf32>
    %192 = arith.truncf %191 : vector<24x24xf32> to vector<24x24xbf16>
    %193 = vector.extract_strided_slice %132 {offsets = [0, 64], sizes = [24, 32], strides = [1, 1]} : vector<24x128xbf16> to vector<24x32xbf16>
    %cst_81 = arith.constant dense<0.000000e+00> : vector<24x32xf32>
    %194 = tpu.matmul %192, %193, %cst_81 {dimension_numbers = #tpu.dot_dimension_numbers<[1], [0], [0], [1], [0, 0, 1, 1], [], []>} : vector<24x24xbf16>, vector<24x32xbf16>, vector<24x32xf32> -> vector<24x32xf32>
    %c0_82 = arith.constant 0 : index
    %c64_83 = arith.constant 64 : index
    %195 = vector.load %arg29[%c0_82, %c64_83] : memref<24x128xf32, #tpu.memory_space<vmem>>, vector<24x32xf32>
    tpu.vector_store %arg29[%c0_82, %c64_83], %194 {strides = array<i32>} : memref<24x128xf32, #tpu.memory_space<vmem>>, vector<24x32xf32>,
    %196 = vector.extract_strided_slice %128 {offsets = [0, 96], sizes = [24, 32], strides = [1, 1]} : vector<24x128xbf16> to vector<24x32xbf16>
    %197 = vector.extract_strided_slice %130 {offsets = [0, 96], sizes = [24, 32], strides = [1, 1]} : vector<24x128xbf16> to vector<24x32xbf16>
    %cst_84 = arith.constant dense<0.000000e+00> : vector<24x24xf32>
    %198 = tpu.matmul %196, %197, %cst_84 {dimension_numbers = #tpu.dot_dimension_numbers<[1], [1], [0], [0], [0, 0, 1, 0], [], []>} : vector<24x32xbf16>, vector<24x32xbf16>, vector<24x24xf32> -> vector<24x24xf32>
    %cst_85 = arith.constant 0.176776692 : f32
    %199 = vector.broadcast %cst_85 : f32 to vector<24x24xf32>
    %200 = arith.mulf %198, %199 : vector<24x24xf32>
    %201 = arith.addf %200, %2 : vector<24x24xf32>
    %cst_86 = arith.constant dense<0xFF800000> : vector<24xf32>
    %202 = vector.multi_reduction <maximumf>, %201, %cst_86 [1] : vector<24x24xf32> to vector<24xf32>
    %cst_87 = arith.constant 0xFF800000 : f32
    %203 = vector.broadcast %cst_87 : f32 to vector<24xf32>
    %204 = arith.maximumf %203, %202 : vector<24xf32>
    %205 = vector.shape_cast %204 : vector<24xf32> to vector<24x1xf32>
    %206 = vector.broadcast %205 : vector<24x1xf32> to vector<24x24xf32>
    %207 = arith.subf %201, %206 : vector<24x24xf32>
    %208 = math.exp %207 : vector<24x24xf32>
    %cst_88 = arith.constant dense<0.000000e+00> : vector<24xf32>
    %209 = vector.multi_reduction <add>, %208, %cst_88 [1] : vector<24x24xf32> to vector<24xf32>
    %210 = vector.shape_cast %209 : vector<24xf32> to vector<24x1xf32>
    %211 = vector.broadcast %210 : vector<24x1xf32> to vector<24x24xf32>
    %212 = arith.divf %208, %211 : vector<24x24xf32>
    %213 = arith.truncf %212 : vector<24x24xf32> to vector<24x24xbf16>
    %214 = vector.extract_strided_slice %132 {offsets = [0, 96], sizes = [24, 32], strides = [1, 1]} : vector<24x128xbf16> to vector<24x32xbf16>
    %cst_89 = arith.constant dense<0.000000e+00> : vector<24x32xf32>
    %215 = tpu.matmul %213, %214, %cst_89 {dimension_numbers = #tpu.dot_dimension_numbers<[1], [0], [0], [1], [0, 0, 1, 1], [], []>} : vector<24x24xbf16>, vector<24x32xbf16>, vector<24x32xf32> -> vector<24x32xf32>
    %c0_90 = arith.constant 0 : index
    %c96_91 = arith.constant 96 : index
    %216 = vector.load %arg29[%c0_90, %c96_91] : memref<24x128xf32, #tpu.memory_space<vmem>>, vector<24x32xf32>
    tpu.vector_store %arg29[%c0_90, %c96_91], %215 {strides = array<i32>} : memref<24x128xf32, #tpu.memory_space<vmem>>, vector<24x32xf32>,
    %c0_92 = arith.constant 0 : index
    %c0_93 = arith.constant 0 : index
    %217 = vector.load %arg29[%c0_92, %c0_93] : memref<24x128xf32, #tpu.memory_space<vmem>>, vector<24x128xf32>
    %218 = arith.truncf %217 : vector<24x128xf32> to vector<24x128xbf16>
    %c0_94 = arith.constant 0 : index
    %c0_95 = arith.constant 0 : index
    %219 = vector.load %arg13[%c0_94, %c0_95] : memref<128x128xbf16, #tpu.memory_space<vmem>>, vector<128x128xbf16>
    %cst_96 = arith.constant dense<0.000000e+00> : vector<24x128xf32>
    %220 = tpu.matmul %218, %219, %cst_96 {dimension_numbers = #tpu.dot_dimension_numbers<[1], [0], [0], [1], [0, 0, 1, 1], [], []>} : vector<24x128xbf16>, vector<128x128xbf16>, vector<24x128xf32> -> vector<24x128xf32>
    %c0_97 = arith.constant 0 : index
    %c0_98 = arith.constant 0 : index
    %221 = vector.load %arg14[%c0_97, %c0_98] : memref<1x128xf32, #tpu.memory_space<vmem>>, vector<1x128xf32>
    %222 = vector.broadcast %221 : vector<1x128xf32> to vector<24x128xf32>
    %223 = arith.addf %220, %222 : vector<24x128xf32>
    %224 = arith.addf %223, %0 : vector<24x128xf32>
    %cst_99 = arith.constant dense<0.000000e+00> : vector<24xf32>
    %225 = vector.multi_reduction <add>, %224, %cst_99 [1] : vector<24x128xf32> to vector<24xf32>
    %226 = vector.shape_cast %225 : vector<24xf32> to vector<24x1xf32>
    %cst_100 = arith.constant 1.280000e+02 : f32
    %227 = vector.broadcast %cst_100 : f32 to vector<24x1xf32>
    %228 = arith.divf %226, %227 : vector<24x1xf32>
    %229 = vector.broadcast %228 : vector<24x1xf32> to vector<24x128xf32>
    %230 = arith.subf %224, %229 : vector<24x128xf32>
    %231 = arith.mulf %230, %230 : vector<24x128xf32>
    %cst_101 = arith.constant dense<0.000000e+00> : vector<24xf32>
    %232 = vector.multi_reduction <add>, %231, %cst_101 [1] : vector<24x128xf32> to vector<24xf32>
    %233 = vector.shape_cast %232 : vector<24xf32> to vector<24x1xf32>
    %cst_102 = arith.constant 1.280000e+02 : f32
    %234 = vector.broadcast %cst_102 : f32 to vector<24x1xf32>
    %235 = arith.divf %233, %234 : vector<24x1xf32>
    %236 = vector.broadcast %228 : vector<24x1xf32> to vector<24x128xf32>
    %237 = arith.subf %224, %236 : vector<24x128xf32>
    %cst_103 = arith.constant 9.99999974E-6 : f32
    %238 = vector.broadcast %cst_103 : f32 to vector<24x1xf32>
    %239 = arith.addf %235, %238 : vector<24x1xf32>
    %240 = math.rsqrt %239 : vector<24x1xf32>
    %241 = vector.broadcast %240 : vector<24x1xf32> to vector<24x128xf32>
    %242 = arith.mulf %237, %241 : vector<24x128xf32>
    %c0_104 = arith.constant 0 : index
    %c0_105 = arith.constant 0 : index
    %243 = vector.load %arg19[%c0_104, %c0_105] : memref<1x128xf32, #tpu.memory_space<vmem>>, vector<1x128xf32>
    %244 = vector.broadcast %243 : vector<1x128xf32> to vector<24x128xf32>
    %245 = arith.mulf %242, %244 : vector<24x128xf32>
    %c0_106 = arith.constant 0 : index
    %c0_107 = arith.constant 0 : index
    %246 = vector.load %arg20[%c0_106, %c0_107] : memref<1x128xf32, #tpu.memory_space<vmem>>, vector<1x128xf32>
    %247 = vector.broadcast %246 : vector<1x128xf32> to vector<24x128xf32>
    %248 = arith.addf %245, %247 : vector<24x128xf32>
    %249 = arith.truncf %248 : vector<24x128xf32> to vector<24x128xbf16>
    %c0_108 = arith.constant 0 : index
    %c0_109 = arith.constant 0 : index
    %250 = vector.load %arg21[%c0_108, %c0_109] : memref<128x128xbf16, #tpu.memory_space<vmem>>, vector<128x128xbf16>
    %cst_110 = arith.constant dense<0.000000e+00> : vector<24x128xf32>
    %251 = tpu.matmul %249, %250, %cst_110 {dimension_numbers = #tpu.dot_dimension_numbers<[1], [0], [0], [1], [0, 0, 1, 1], [], []>} : vector<24x128xbf16>, vector<128x128xbf16>, vector<24x128xf32> -> vector<24x128xf32>
    %c0_111 = arith.constant 0 : index
    %c0_112 = arith.constant 0 : index
    %252 = vector.load %arg22[%c0_111, %c0_112] : memref<1x128xf32, #tpu.memory_space<vmem>>, vector<1x128xf32>
    %253 = vector.broadcast %252 : vector<1x128xf32> to vector<24x128xf32>
    %254 = arith.addf %251, %253 : vector<24x128xf32>
    %c0_113 = arith.constant 0 : index
    %c0_114 = arith.constant 0 : index
    %255 = vector.load %arg27[%c0_113, %c0_114] : memref<24x128xf32, #tpu.memory_space<vmem>>, vector<24x128xf32>
    tpu.vector_store %arg27[%c0_113, %c0_114], %254 {strides = array<i32>} : memref<24x128xf32, #tpu.memory_space<vmem>>, vector<24x128xf32>,
    %256 = arith.truncf %224 : vector<24x128xf32> to vector<24x128xbf16>
    %c0_115 = arith.constant 0 : index
    %c0_116 = arith.constant 0 : index
    %257 = vector.load %arg15[%c0_115, %c0_116] : memref<128x384xbf16, #tpu.memory_space<vmem>>, vector<128x384xbf16>
    %cst_117 = arith.constant dense<0.000000e+00> : vector<24x384xf32>
    %258 = tpu.matmul %256, %257, %cst_117 {dimension_numbers = #tpu.dot_dimension_numbers<[1], [0], [0], [1], [0, 0, 1, 1], [], []>} : vector<24x128xbf16>, vector<128x384xbf16>, vector<24x384xf32> -> vector<24x384xf32>
    %c0_118 = arith.constant 0 : index
    %c0_119 = arith.constant 0 : index
    %259 = vector.load %arg16[%c0_118, %c0_119] : memref<1x384xf32, #tpu.memory_space<vmem>>, vector<1x384xf32>
    %260 = vector.broadcast %259 : vector<1x384xf32> to vector<24x384xf32>
    %261 = arith.addf %258, %260 : vector<24x384xf32>
    %262 = vector.extract_strided_slice %261 {offsets = [0, 0], sizes = [24, 128], strides = [1, 1]} : vector<24x384xf32> to vector<24x128xf32>
    %263 = arith.truncf %262 : vector<24x128xf32> to vector<24x128xbf16>
    %264 = vector.extract_strided_slice %261 {offsets = [0, 128], sizes = [24, 128], strides = [1, 1]} : vector<24x384xf32> to vector<24x128xf32>
    %265 = arith.truncf %264 : vector<24x128xf32> to vector<24x128xbf16>
    %266 = vector.extract_strided_slice %261 {offsets = [0, 256], sizes = [24, 128], strides = [1, 1]} : vector<24x384xf32> to vector<24x128xf32>
    %267 = arith.truncf %266 : vector<24x128xf32> to vector<24x128xbf16>
    %268 = vector.extract_strided_slice %263 {offsets = [0, 0], sizes = [24, 32], strides = [1, 1]} : vector<24x128xbf16> to vector<24x32xbf16>
    %269 = vector.extract_strided_slice %265 {offsets = [0, 0], sizes = [24, 32], strides = [1, 1]} : vector<24x128xbf16> to vector<24x32xbf16>
    %cst_120 = arith.constant dense<0.000000e+00> : vector<24x24xf32>
    %270 = tpu.matmul %268, %269, %cst_120 {dimension_numbers = #tpu.dot_dimension_numbers<[1], [1], [0], [0], [0, 0, 1, 0], [], []>} : vector<24x32xbf16>, vector<24x32xbf16>, vector<24x24xf32> -> vector<24x24xf32>
    %cst_121 = arith.constant 0.176776692 : f32
    %271 = vector.broadcast %cst_121 : f32 to vector<24x24xf32>
    %272 = arith.mulf %270, %271 : vector<24x24xf32>
    %273 = arith.addf %272, %2 : vector<24x24xf32>
    %cst_122 = arith.constant dense<0xFF800000> : vector<24xf32>
    %274 = vector.multi_reduction <maximumf>, %273, %cst_122 [1] : vector<24x24xf32> to vector<24xf32>
    %cst_123 = arith.constant 0xFF800000 : f32
    %275 = vector.broadcast %cst_123 : f32 to vector<24xf32>
    %276 = arith.maximumf %275, %274 : vector<24xf32>
    %277 = vector.shape_cast %276 : vector<24xf32> to vector<24x1xf32>
    %278 = vector.broadcast %277 : vector<24x1xf32> to vector<24x24xf32>
    %279 = arith.subf %273, %278 : vector<24x24xf32>
    %280 = math.exp %279 : vector<24x24xf32>
    %cst_124 = arith.constant dense<0.000000e+00> : vector<24xf32>
    %281 = vector.multi_reduction <add>, %280, %cst_124 [1] : vector<24x24xf32> to vector<24xf32>
    %282 = vector.shape_cast %281 : vector<24xf32> to vector<24x1xf32>
    %283 = vector.broadcast %282 : vector<24x1xf32> to vector<24x24xf32>
    %284 = arith.divf %280, %283 : vector<24x24xf32>
    %285 = arith.truncf %284 : vector<24x24xf32> to vector<24x24xbf16>
    %286 = vector.extract_strided_slice %267 {offsets = [0, 0], sizes = [24, 32], strides = [1, 1]} : vector<24x128xbf16> to vector<24x32xbf16>
    %cst_125 = arith.constant dense<0.000000e+00> : vector<24x32xf32>
    %287 = tpu.matmul %285, %286, %cst_125 {dimension_numbers = #tpu.dot_dimension_numbers<[1], [0], [0], [1], [0, 0, 1, 1], [], []>} : vector<24x24xbf16>, vector<24x32xbf16>, vector<24x32xf32> -> vector<24x32xf32>
    %c0_126 = arith.constant 0 : index
    %c0_127 = arith.constant 0 : index
    %288 = vector.load %arg29[%c0_126, %c0_127] : memref<24x128xf32, #tpu.memory_space<vmem>>, vector<24x32xf32>
    tpu.vector_store %arg29[%c0_126, %c0_127], %287 {strides = array<i32>} : memref<24x128xf32, #tpu.memory_space<vmem>>, vector<24x32xf32>,
    %289 = vector.extract_strided_slice %263 {offsets = [0, 32], sizes = [24, 32], strides = [1, 1]} : vector<24x128xbf16> to vector<24x32xbf16>
    %290 = vector.extract_strided_slice %265 {offsets = [0, 32], sizes = [24, 32], strides = [1, 1]} : vector<24x128xbf16> to vector<24x32xbf16>
    %cst_128 = arith.constant dense<0.000000e+00> : vector<24x24xf32>
    %291 = tpu.matmul %289, %290, %cst_128 {dimension_numbers = #tpu.dot_dimension_numbers<[1], [1], [0], [0], [0, 0, 1, 0], [], []>} : vector<24x32xbf16>, vector<24x32xbf16>, vector<24x24xf32> -> vector<24x24xf32>
    %cst_129 = arith.constant 0.176776692 : f32
    %292 = vector.broadcast %cst_129 : f32 to vector<24x24xf32>
    %293 = arith.mulf %291, %292 : vector<24x24xf32>
    %294 = arith.addf %293, %2 : vector<24x24xf32>
    %cst_130 = arith.constant dense<0xFF800000> : vector<24xf32>
    %295 = vector.multi_reduction <maximumf>, %294, %cst_130 [1] : vector<24x24xf32> to vector<24xf32>
    %cst_131 = arith.constant 0xFF800000 : f32
    %296 = vector.broadcast %cst_131 : f32 to vector<24xf32>
    %297 = arith.maximumf %296, %295 : vector<24xf32>
    %298 = vector.shape_cast %297 : vector<24xf32> to vector<24x1xf32>
    %299 = vector.broadcast %298 : vector<24x1xf32> to vector<24x24xf32>
    %300 = arith.subf %294, %299 : vector<24x24xf32>
    %301 = math.exp %300 : vector<24x24xf32>
    %cst_132 = arith.constant dense<0.000000e+00> : vector<24xf32>
    %302 = vector.multi_reduction <add>, %301, %cst_132 [1] : vector<24x24xf32> to vector<24xf32>
    %303 = vector.shape_cast %302 : vector<24xf32> to vector<24x1xf32>
    %304 = vector.broadcast %303 : vector<24x1xf32> to vector<24x24xf32>
    %305 = arith.divf %301, %304 : vector<24x24xf32>
    %306 = arith.truncf %305 : vector<24x24xf32> to vector<24x24xbf16>
    %307 = vector.extract_strided_slice %267 {offsets = [0, 32], sizes = [24, 32], strides = [1, 1]} : vector<24x128xbf16> to vector<24x32xbf16>
    %cst_133 = arith.constant dense<0.000000e+00> : vector<24x32xf32>
    %308 = tpu.matmul %306, %307, %cst_133 {dimension_numbers = #tpu.dot_dimension_numbers<[1], [0], [0], [1], [0, 0, 1, 1], [], []>} : vector<24x24xbf16>, vector<24x32xbf16>, vector<24x32xf32> -> vector<24x32xf32>
    %c0_134 = arith.constant 0 : index
    %c32_135 = arith.constant 32 : index
    %309 = vector.load %arg29[%c0_134, %c32_135] : memref<24x128xf32, #tpu.memory_space<vmem>>, vector<24x32xf32>
    tpu.vector_store %arg29[%c0_134, %c32_135], %308 {strides = array<i32>} : memref<24x128xf32, #tpu.memory_space<vmem>>, vector<24x32xf32>,
    %310 = vector.extract_strided_slice %263 {offsets = [0, 64], sizes = [24, 32], strides = [1, 1]} : vector<24x128xbf16> to vector<24x32xbf16>
    %311 = vector.extract_strided_slice %265 {offsets = [0, 64], sizes = [24, 32], strides = [1, 1]} : vector<24x128xbf16> to vector<24x32xbf16>
    %cst_136 = arith.constant dense<0.000000e+00> : vector<24x24xf32>
    %312 = tpu.matmul %310, %311, %cst_136 {dimension_numbers = #tpu.dot_dimension_numbers<[1], [1], [0], [0], [0, 0, 1, 0], [], []>} : vector<24x32xbf16>, vector<24x32xbf16>, vector<24x24xf32> -> vector<24x24xf32>
    %cst_137 = arith.constant 0.176776692 : f32
    %313 = vector.broadcast %cst_137 : f32 to vector<24x24xf32>
    %314 = arith.mulf %312, %313 : vector<24x24xf32>
    %315 = arith.addf %314, %2 : vector<24x24xf32>
    %cst_138 = arith.constant dense<0xFF800000> : vector<24xf32>
    %316 = vector.multi_reduction <maximumf>, %315, %cst_138 [1] : vector<24x24xf32> to vector<24xf32>
    %cst_139 = arith.constant 0xFF800000 : f32
    %317 = vector.broadcast %cst_139 : f32 to vector<24xf32>
    %318 = arith.maximumf %317, %316 : vector<24xf32>
    %319 = vector.shape_cast %318 : vector<24xf32> to vector<24x1xf32>
    %320 = vector.broadcast %319 : vector<24x1xf32> to vector<24x24xf32>
    %321 = arith.subf %315, %320 : vector<24x24xf32>
    %322 = math.exp %321 : vector<24x24xf32>
    %cst_140 = arith.constant dense<0.000000e+00> : vector<24xf32>
    %323 = vector.multi_reduction <add>, %322, %cst_140 [1] : vector<24x24xf32> to vector<24xf32>
    %324 = vector.shape_cast %323 : vector<24xf32> to vector<24x1xf32>
    %325 = vector.broadcast %324 : vector<24x1xf32> to vector<24x24xf32>
    %326 = arith.divf %322, %325 : vector<24x24xf32>
    %327 = arith.truncf %326 : vector<24x24xf32> to vector<24x24xbf16>
    %328 = vector.extract_strided_slice %267 {offsets = [0, 64], sizes = [24, 32], strides = [1, 1]} : vector<24x128xbf16> to vector<24x32xbf16>
    %cst_141 = arith.constant dense<0.000000e+00> : vector<24x32xf32>
    %329 = tpu.matmul %327, %328, %cst_141 {dimension_numbers = #tpu.dot_dimension_numbers<[1], [0], [0], [1], [0, 0, 1, 1], [], []>} : vector<24x24xbf16>, vector<24x32xbf16>, vector<24x32xf32> -> vector<24x32xf32>
    %c0_142 = arith.constant 0 : index
    %c64_143 = arith.constant 64 : index
    %330 = vector.load %arg29[%c0_142, %c64_143] : memref<24x128xf32, #tpu.memory_space<vmem>>, vector<24x32xf32>
    tpu.vector_store %arg29[%c0_142, %c64_143], %329 {strides = array<i32>} : memref<24x128xf32, #tpu.memory_space<vmem>>, vector<24x32xf32>,
    %331 = vector.extract_strided_slice %263 {offsets = [0, 96], sizes = [24, 32], strides = [1, 1]} : vector<24x128xbf16> to vector<24x32xbf16>
    %332 = vector.extract_strided_slice %265 {offsets = [0, 96], sizes = [24, 32], strides = [1, 1]} : vector<24x128xbf16> to vector<24x32xbf16>
    %cst_144 = arith.constant dense<0.000000e+00> : vector<24x24xf32>
    %333 = tpu.matmul %331, %332, %cst_144 {dimension_numbers = #tpu.dot_dimension_numbers<[1], [1], [0], [0], [0, 0, 1, 0], [], []>} : vector<24x32xbf16>, vector<24x32xbf16>, vector<24x24xf32> -> vector<24x24xf32>
    %cst_145 = arith.constant 0.176776692 : f32
    %334 = vector.broadcast %cst_145 : f32 to vector<24x24xf32>
    %335 = arith.mulf %333, %334 : vector<24x24xf32>
    %336 = arith.addf %335, %2 : vector<24x24xf32>
    %cst_146 = arith.constant dense<0xFF800000> : vector<24xf32>
    %337 = vector.multi_reduction <maximumf>, %336, %cst_146 [1] : vector<24x24xf32> to vector<24xf32>
    %cst_147 = arith.constant 0xFF800000 : f32
    %338 = vector.broadcast %cst_147 : f32 to vector<24xf32>
    %339 = arith.maximumf %338, %337 : vector<24xf32>
    %340 = vector.shape_cast %339 : vector<24xf32> to vector<24x1xf32>
    %341 = vector.broadcast %340 : vector<24x1xf32> to vector<24x24xf32>
    %342 = arith.subf %336, %341 : vector<24x24xf32>
    %343 = math.exp %342 : vector<24x24xf32>
    %cst_148 = arith.constant dense<0.000000e+00> : vector<24xf32>
    %344 = vector.multi_reduction <add>, %343, %cst_148 [1] : vector<24x24xf32> to vector<24xf32>
    %345 = vector.shape_cast %344 : vector<24xf32> to vector<24x1xf32>
    %346 = vector.broadcast %345 : vector<24x1xf32> to vector<24x24xf32>
    %347 = arith.divf %343, %346 : vector<24x24xf32>
    %348 = arith.truncf %347 : vector<24x24xf32> to vector<24x24xbf16>
    %349 = vector.extract_strided_slice %267 {offsets = [0, 96], sizes = [24, 32], strides = [1, 1]} : vector<24x128xbf16> to vector<24x32xbf16>
    %cst_149 = arith.constant dense<0.000000e+00> : vector<24x32xf32>
    %350 = tpu.matmul %348, %349, %cst_149 {dimension_numbers = #tpu.dot_dimension_numbers<[1], [0], [0], [1], [0, 0, 1, 1], [], []>} : vector<24x24xbf16>, vector<24x32xbf16>, vector<24x32xf32> -> vector<24x32xf32>
    %c0_150 = arith.constant 0 : index
    %c96_151 = arith.constant 96 : index
    %351 = vector.load %arg29[%c0_150, %c96_151] : memref<24x128xf32, #tpu.memory_space<vmem>>, vector<24x32xf32>
    tpu.vector_store %arg29[%c0_150, %c96_151], %350 {strides = array<i32>} : memref<24x128xf32, #tpu.memory_space<vmem>>, vector<24x32xf32>,
    %c0_152 = arith.constant 0 : index
    %c0_153 = arith.constant 0 : index
    %352 = vector.load %arg29[%c0_152, %c0_153] : memref<24x128xf32, #tpu.memory_space<vmem>>, vector<24x128xf32>
    %353 = arith.truncf %352 : vector<24x128xf32> to vector<24x128xbf16>
    %c0_154 = arith.constant 0 : index
    %c0_155 = arith.constant 0 : index
    %354 = vector.load %arg17[%c0_154, %c0_155] : memref<128x128xbf16, #tpu.memory_space<vmem>>, vector<128x128xbf16>
    %cst_156 = arith.constant dense<0.000000e+00> : vector<24x128xf32>
    %355 = tpu.matmul %353, %354, %cst_156 {dimension_numbers = #tpu.dot_dimension_numbers<[1], [0], [0], [1], [0, 0, 1, 1], [], []>} : vector<24x128xbf16>, vector<128x128xbf16>, vector<24x128xf32> -> vector<24x128xf32>
    %c0_157 = arith.constant 0 : index
    %c0_158 = arith.constant 0 : index
    %356 = vector.load %arg18[%c0_157, %c0_158] : memref<1x128xf32, #tpu.memory_space<vmem>>, vector<1x128xf32>
    %357 = vector.broadcast %356 : vector<1x128xf32> to vector<24x128xf32>
    %358 = arith.addf %355, %357 : vector<24x128xf32>
    %c0_159 = arith.constant 0 : index
    %c0_160 = arith.constant 0 : index
    %359 = vector.load %arg4[%c0_159, %c0_160] : memref<8x24xf32, #tpu.memory_space<vmem>>, vector<8x24xf32>
    %cst_161 = arith.constant dense<0.000000e+00> : vector<8x128xf32>
    %360 = tpu.matmul %359, %358, %cst_161 {dimension_numbers = #tpu.dot_dimension_numbers<[1], [0], [0], [1], [0, 0, 1, 1], [], []>} : vector<8x24xf32>, vector<24x128xf32>, vector<8x128xf32> -> vector<8x128xf32>
    %cst_162 = arith.constant dense<0.000000e+00> : vector<8xf32>
    %361 = vector.multi_reduction <add>, %360, %cst_162 [1] : vector<8x128xf32> to vector<8xf32>
    %362 = vector.shape_cast %361 : vector<8xf32> to vector<8x1xf32>
    %cst_163 = arith.constant 1.280000e+02 : f32
    %363 = vector.broadcast %cst_163 : f32 to vector<8x1xf32>
    %364 = arith.divf %362, %363 : vector<8x1xf32>
    %365 = vector.broadcast %364 : vector<8x1xf32> to vector<8x128xf32>
    %366 = arith.subf %360, %365 : vector<8x128xf32>
    %367 = arith.mulf %366, %366 : vector<8x128xf32>
    %cst_164 = arith.constant dense<0.000000e+00> : vector<8xf32>
    %368 = vector.multi_reduction <add>, %367, %cst_164 [1] : vector<8x128xf32> to vector<8xf32>
    %369 = vector.shape_cast %368 : vector<8xf32> to vector<8x1xf32>
    %cst_165 = arith.constant 1.280000e+02 : f32
    %370 = vector.broadcast %cst_165 : f32 to vector<8x1xf32>
    %371 = arith.divf %369, %370 : vector<8x1xf32>
    %372 = vector.broadcast %364 : vector<8x1xf32> to vector<8x128xf32>
    %373 = arith.subf %360, %372 : vector<8x128xf32>
    %cst_166 = arith.constant 9.99999974E-6 : f32
    %374 = vector.broadcast %cst_166 : f32 to vector<8x1xf32>
    %375 = arith.addf %371, %374 : vector<8x1xf32>
    %376 = math.rsqrt %375 : vector<8x1xf32>
    %377 = vector.broadcast %376 : vector<8x1xf32> to vector<8x128xf32>
    %378 = arith.mulf %373, %377 : vector<8x128xf32>
    %c0_167 = arith.constant 0 : index
    %c0_168 = arith.constant 0 : index
    %379 = vector.load %arg23[%c0_167, %c0_168] : memref<1x128xf32, #tpu.memory_space<vmem>>, vector<1x128xf32>
    %380 = vector.broadcast %379 : vector<1x128xf32> to vector<8x128xf32>
    %381 = arith.mulf %378, %380 : vector<8x128xf32>
    %c0_169 = arith.constant 0 : index
    %c0_170 = arith.constant 0 : index
    %382 = vector.load %arg24[%c0_169, %c0_170] : memref<1x128xf32, #tpu.memory_space<vmem>>, vector<1x128xf32>
    %383 = vector.broadcast %382 : vector<1x128xf32> to vector<8x128xf32>
    %384 = arith.addf %381, %383 : vector<8x128xf32>
    %385 = arith.truncf %384 : vector<8x128xf32> to vector<8x128xbf16>
    %c0_171 = arith.constant 0 : index
    %c0_172 = arith.constant 0 : index
    %386 = vector.load %arg25[%c0_171, %c0_172] : memref<128x128xbf16, #tpu.memory_space<vmem>>, vector<128x128xbf16>
    %cst_173 = arith.constant dense<0.000000e+00> : vector<8x128xf32>
    %387 = tpu.matmul %385, %386, %cst_173 {dimension_numbers = #tpu.dot_dimension_numbers<[1], [0], [0], [1], [0, 0, 1, 1], [], []>} : vector<8x128xbf16>, vector<128x128xbf16>, vector<8x128xf32> -> vector<8x128xf32>
    %c0_174 = arith.constant 0 : index
    %c0_175 = arith.constant 0 : index
    %388 = vector.load %arg26[%c0_174, %c0_175] : memref<1x128xf32, #tpu.memory_space<vmem>>, vector<1x128xf32>
    %389 = vector.broadcast %388 : vector<1x128xf32> to vector<8x128xf32>
    %390 = arith.addf %387, %389 : vector<8x128xf32>
    %c0_176 = arith.constant 0 : index
    %c0_177 = arith.constant 0 : index
    %391 = vector.load %arg28[%c0_176, %c0_177] : memref<8x128xf32, #tpu.memory_space<vmem>>, vector<8x128xf32>
    tpu.vector_store %arg28[%c0_176, %c0_177], %390 {strides = array<i32>} : memref<8x128xf32, #tpu.memory_space<vmem>>, vector<8x128xf32>,
    return
  }
  func.func @transform_0(%arg0: i32) -> (i32, i32) {
    %c0_i32 = arith.constant 0 : i32
    %c0_i32_0 = arith.constant 0 : i32
    return %arg0, %c0_i32 : i32, i32
  }
  func.func @transform_1(%arg0: i32) -> (i32, i32) {
    %c0_i32 = arith.constant 0 : i32
    %c0_i32_0 = arith.constant 0 : i32
    %c0_i32_1 = arith.constant 0 : i32
    return %c0_i32, %c0_i32_0 : i32, i32
  }
  func.func @transform_2(%arg0: i32) -> (i32, i32) {
    %c0_i32 = arith.constant 0 : i32
    %c0_i32_0 = arith.constant 0 : i32
    %c0_i32_1 = arith.constant 0 : i32
    return %c0_i32, %c0_i32_0 : i32, i32
  }
  func.func @transform_3(%arg0: i32) -> (i32, i32) {
    %c0_i32 = arith.constant 0 : i32
    %c0_i32_0 = arith.constant 0 : i32
    %c0_i32_1 = arith.constant 0 : i32
    return %c0_i32, %c0_i32_0 : i32, i32
  }
  func.func @transform_4(%arg0: i32) -> (i32, i32) {
    %c0_i32 = arith.constant 0 : i32
    %c0_i32_0 = arith.constant 0 : i32
    %c0_i32_1 = arith.constant 0 : i32
    return %c0_i32, %c0_i32_0 : i32, i32
  }
  func.func @transform_5(%arg0: i32) -> (i32, i32) {
    %c0_i32 = arith.constant 0 : i32
    %c0_i32_0 = arith.constant 0 : i32
    %c0_i32_1 = arith.constant 0 : i32
    return %c0_i32, %c0_i32_0 : i32, i32
  }
  func.func @transform_6(%arg0: i32) -> (i32, i32) {
    %c0_i32 = arith.constant 0 : i32
    %c0_i32_0 = arith.constant 0 : i32
    %c0_i32_1 = arith.constant 0 : i32
    return %c0_i32, %c0_i32_0 : i32, i32
  }
  func.func @transform_7(%arg0: i32) -> (i32, i32) {
    %c0_i32 = arith.constant 0 : i32
    %c0_i32_0 = arith.constant 0 : i32
    %c0_i32_1 = arith.constant 0 : i32
    return %c0_i32, %c0_i32_0 : i32, i32
  }
  func.func @transform_8(%arg0: i32) -> (i32, i32) {
    %c0_i32 = arith.constant 0 : i32
    %c0_i32_0 = arith.constant 0 : i32
    %c0_i32_1 = arith.constant 0 : i32
    return %c0_i32, %c0_i32_0 : i32, i32
  }
  func.func @transform_9(%arg0: i32) -> (i32, i32) {
    %c0_i32 = arith.constant 0 : i32
    %c0_i32_0 = arith.constant 0 : i32
    %c0_i32_1 = arith.constant 0 : i32
    return %c0_i32, %c0_i32_0 : i32, i32
  }
  func.func @transform_10(%arg0: i32) -> (i32, i32) {
    %c0_i32 = arith.constant 0 : i32
    %c0_i32_0 = arith.constant 0 : i32
    %c0_i32_1 = arith.constant 0 : i32
    return %c0_i32, %c0_i32_0 : i32, i32
  }
  func.func @transform_11(%arg0: i32) -> (i32, i32) {
    %c0_i32 = arith.constant 0 : i32
    %c0_i32_0 = arith.constant 0 : i32
    %c0_i32_1 = arith.constant 0 : i32
    return %c0_i32, %c0_i32_0 : i32, i32
  }
  func.func @transform_12(%arg0: i32) -> (i32, i32) {
    %c0_i32 = arith.constant 0 : i32
    %c0_i32_0 = arith.constant 0 : i32
    %c0_i32_1 = arith.constant 0 : i32
    return %c0_i32, %c0_i32_0 : i32, i32
  }
  func.func @transform_13(%arg0: i32) -> (i32, i32) {
    %c0_i32 = arith.constant 0 : i32
    %c0_i32_0 = arith.constant 0 : i32
    %c0_i32_1 = arith.constant 0 : i32
    return %c0_i32, %c0_i32_0 : i32, i32
  }
  func.func @transform_14(%arg0: i32) -> (i32, i32) {
    %c0_i32 = arith.constant 0 : i32
    %c0_i32_0 = arith.constant 0 : i32
    %c0_i32_1 = arith.constant 0 : i32
    return %c0_i32, %c0_i32_0 : i32, i32
  }
  func.func @transform_15(%arg0: i32) -> (i32, i32) {
    %c0_i32 = arith.constant 0 : i32
    %c0_i32_0 = arith.constant 0 : i32
    %c0_i32_1 = arith.constant 0 : i32
    return %c0_i32, %c0_i32_0 : i32, i32
  }
  func.func @transform_16(%arg0: i32) -> (i32, i32) {
    %c0_i32 = arith.constant 0 : i32
    %c0_i32_0 = arith.constant 0 : i32
    %c0_i32_1 = arith.constant 0 : i32
    return %c0_i32, %c0_i32_0 : i32, i32
  }
  func.func @transform_17(%arg0: i32) -> (i32, i32) {
    %c0_i32 = arith.constant 0 : i32
    %c0_i32_0 = arith.constant 0 : i32
    %c0_i32_1 = arith.constant 0 : i32
    return %c0_i32, %c0_i32_0 : i32, i32
  }
  func.func @transform_18(%arg0: i32) -> (i32, i32) {
    %c0_i32 = arith.constant 0 : i32
    %c0_i32_0 = arith.constant 0 : i32
    %c0_i32_1 = arith.constant 0 : i32
    return %c0_i32, %c0_i32_0 : i32, i32
  }
  func.func @transform_19(%arg0: i32) -> (i32, i32) {
    %c0_i32 = arith.constant 0 : i32
    %c0_i32_0 = arith.constant 0 : i32
    %c0_i32_1 = arith.constant 0 : i32
    return %c0_i32, %c0_i32_0 : i32, i32
  }
  func.func @transform_20(%arg0: i32) -> (i32, i32) {
    %c0_i32 = arith.constant 0 : i32
    %c0_i32_0 = arith.constant 0 : i32
    %c0_i32_1 = arith.constant 0 : i32
    return %c0_i32, %c0_i32_0 : i32, i32
  }
  func.func @transform_21(%arg0: i32) -> (i32, i32) {
    %c0_i32 = arith.constant 0 : i32
    %c0_i32_0 = arith.constant 0 : i32
    %c0_i32_1 = arith.constant 0 : i32
    return %c0_i32, %c0_i32_0 : i32, i32
  }
  func.func @transform_22(%arg0: i32) -> (i32, i32) {
    %c0_i32 = arith.constant 0 : i32
    %c0_i32_0 = arith.constant 0 : i32
    %c0_i32_1 = arith.constant 0 : i32
    return %c0_i32, %c0_i32_0 : i32, i32
  }
  func.func @transform_23(%arg0: i32) -> (i32, i32) {
    %c0_i32 = arith.constant 0 : i32
    %c0_i32_0 = arith.constant 0 : i32
    %c0_i32_1 = arith.constant 0 : i32
    return %c0_i32, %c0_i32_0 : i32, i32
  }
  func.func @transform_24(%arg0: i32) -> (i32, i32) {
    %c0_i32 = arith.constant 0 : i32
    %c0_i32_0 = arith.constant 0 : i32
    %c0_i32_1 = arith.constant 0 : i32
    return %c0_i32, %c0_i32_0 : i32, i32
  }
  func.func @transform_25(%arg0: i32) -> (i32, i32) {
    %c0_i32 = arith.constant 0 : i32
    %c0_i32_0 = arith.constant 0 : i32
    %c0_i32_1 = arith.constant 0 : i32
    return %c0_i32, %c0_i32_0 : i32, i32
  }
  func.func @transform_26(%arg0: i32) -> (i32, i32) {
    %c0_i32 = arith.constant 0 : i32
    %c0_i32_0 = arith.constant 0 : i32
    return %arg0, %c0_i32 : i32, i32
  }
  func.func @transform_27(%arg0: i32) -> (i32, i32) {
    %c0_i32 = arith.constant 0 : i32
    %c0_i32_0 = arith.constant 0 : i32
    return %arg0, %c0_i32 : i32, i32
  }
}

</mosaic_0001>

<llo_original>
// kernel: tpu_custom_call.1
$region0: #{tpu_custom_call.1}
  #allocation0 [shape = 'u32[]', space=smem, size = 0x4, offset = 0x4, fixed_abs, tag = 'smem constant byte address 0x4 - core index']
  #allocation1 [shape = 'u32[144,128]{1,0:T(1,128)}', space=vmem, size = 0x12000, scoped, tag = 'internal scratch']
  #allocation2 [shape = 'f32[24,128]{1,0:T(8,128)}', space=vmem, size = 0x3000, scoped, tag = 'scratch operand']
  %s0 = inlined_call_operand.hbm [shape: f32[48,128], index: 0, kind: input, shape index: {}]
  %s1 = inlined_call_operand.hbm [shape: bf16[24,24], index: 1, kind: input, shape index: {}]
  %s2 = inlined_call_operand.hbm [shape: f32[24,24], index: 2, kind: input, shape index: {}]
  %s3 = inlined_call_operand.hbm [shape: f32[8,24], index: 3, kind: input, shape index: {}]
  %s4 = inlined_call_operand.hbm [shape: bf16[128,128], index: 4, kind: input, shape index: {}]
  %s5 = inlined_call_operand.hbm [shape: bf16[128,128], index: 5, kind: input, shape index: {}]
  %s6 = inlined_call_operand.hbm [shape: bf16[128,384], index: 6, kind: input, shape index: {}]
  %s7 = inlined_call_operand.vmem [shape: f32[1,384], index: 7, kind: input, shape index: {}]
  %s8 = inlined_call_operand.hbm [shape: bf16[128,128], index: 8, kind: input, shape index: {}]
  %s9 = inlined_call_operand.vmem [shape: f32[1,128], index: 9, kind: input, shape index: {}]
  %s10 = inlined_call_operand.hbm [shape: bf16[128,384], index: 10, kind: input, shape index: {}]
  %s11 = inlined_call_operand.vmem [shape: f32[1,384], index: 11, kind: input, shape index: {}]
  %s12 = inlined_call_operand.hbm [shape: bf16[128,128], index: 12, kind: input, shape index: {}]
  %s13 = inlined_call_operand.vmem [shape: f32[1,128], index: 13, kind: input, shape index: {}]
  %s14 = inlined_call_operand.hbm [shape: bf16[128,384], index: 14, kind: input, shape index: {}]
  %s15 = inlined_call_operand.vmem [shape: f32[1,384], index: 15, kind: input, shape index: {}]
  %s16 = inlined_call_operand.hbm [shape: bf16[128,128], index: 16, kind: input, shape index: {}]
  %s17 = inlined_call_operand.vmem [shape: f32[1,128], index: 17, kind: input, shape index: {}]
  %s18 = inlined_call_operand.vmem [shape: f32[1,128], index: 18, kind: input, shape index: {}]
  %s19 = inlined_call_operand.vmem [shape: f32[1,128], index: 19, kind: input, shape index: {}]
  %s20 = inlined_call_operand.hbm [shape: bf16[128,128], index: 20, kind: input, shape index: {}]
  %s21 = inlined_call_operand.vmem [shape: f32[1,128], index: 21, kind: input, shape index: {}]
  %s22 = inlined_call_operand.vmem [shape: f32[1,128], index: 22, kind: input, shape index: {}]
  %s23 = inlined_call_operand.vmem [shape: f32[1,128], index: 23, kind: input, shape index: {}]
  %s24 = inlined_call_operand.hbm [shape: bf16[128,128], index: 24, kind: input, shape index: {}]
  %s25 = inlined_call_operand.vmem [shape: f32[1,128], index: 25, kind: input, shape index: {}]
  %s26 = inlined_call_operand.hbm [shape: f32[48,128], index: 26, kind: output, shape index: {0}]
  %s27 = inlined_call_operand.hbm [shape: f32[16,128], index: 27, kind: output, shape index: {1}]
  %28 = xla_tuple %s26, %s27
  %s29 = sld [smem:[#allocation0]]
  $region201: #{tpu_custom_call.1} parent=0
    _
  %s31 = ssub.s32 1, %s29
  %s32 = scalar_select 0, %s31, %s29
  $region1: #{tpu_custom_call.1} parent=0
    #allocation3 [shape = 'u8[24576]{0}', space=vmem, size = 0x6000, scoped, tag = 'input window, operand 0']
    #allocation4 [shape = 's32[2]{0}', space=sflag, size = 0x8, scoped, tag = 'scoped memory for tpu_custom_call.1']
    #allocation5 [shape = 's32[2]{0}', space=sflag, size = 0x8, scoped, tag = 'scoped memory for tpu_custom_call.1']
    #allocation6 [shape = 'u8[6144]{0}', space=vmem, size = 0x1800, scoped, tag = 'input window, operand 1, single buffered']
    #allocation7 [shape = 's32[1]{0}', space=sflag, size = 0x4, scoped, tag = 'scoped memory for tpu_custom_call.1']
    #allocation8 [shape = 'u8[12288]{0}', space=vmem, size = 0x3000, scoped, tag = 'input window, operand 2, single buffered']
    #allocation9 [shape = 'u8[4096]{0}', space=vmem, size = 0x1000, scoped, tag = 'input window, operand 3, single buffered']
    #allocation10 [shape = 's32[1]{0}', space=sflag, size = 0x4, scoped, tag = 'scoped memory for tpu_custom_call.1']
    #allocation11 [shape = 'u8[32768]{0}', space=vmem, size = 0x8000, scoped, tag = 'input window, operand 4, single buffered']
    #allocation12 [shape = 'u8[32768]{0}', space=vmem, size = 0x8000, scoped, tag = 'input window, operand 5, single buffered']
    #allocation13 [shape = 's32[1]{0}', space=sflag, size = 0x4, scoped, tag = 'scoped memory for tpu_custom_call.1']
    #allocation14 [shape = 'u8[98304]{0}', space=vmem, size = 0x18000, scoped, tag = 'input window, operand 6, single buffered']
    #allocation15 [shape = 'u8[32768]{0}', space=vmem, size = 0x8000, scoped, tag = 'input window, operand 8, single buffered']
    #allocation16 [shape = 's32[1]{0}', space=sflag, size = 0x4, scoped, tag = 'scoped memory for tpu_custom_call.1']
    #allocation17 [shape = 'u8[98304]{0}', space=vmem, size = 0x18000, scoped, tag = 'input window, operand 10, single buffered']
    #allocation18 [shape = 'u8[32768]{0}', space=vmem, size = 0x8000, scoped, tag = 'input window, operand 12, single buffered']
    #allocation19 [shape = 's32[1]{0}', space=sflag, size = 0x4, scoped, tag = 'scoped memory for tpu_custom_call.1']
    #allocation20 [shape = 'u8[98304]{0}', space=vmem, size = 0x18000, scoped, tag = 'input window, operand 14, single buffered']
    #allocation21 [shape = 'u8[32768]{0}', space=vmem, size = 0x8000, scoped, tag = 'input window, operand 16, single buffered']
    #allocation22 [shape = 's32[1]{0}', space=sflag, size = 0x4, scoped, tag = 'scoped memory for tpu_custom_call.1']
    #allocation23 [shape = 'u8[32768]{0}', space=vmem, size = 0x8000, scoped, tag = 'input window, operand 20, single buffered']
    #allocation24 [shape = 'u8[32768]{0}', space=vmem, size = 0x8000, scoped, tag = 'input window, operand 24, single buffered']
    #allocation25 [shape = 's32[1]{0}', space=sflag, size = 0x4, scoped, tag = 'scoped memory for tpu_custom_call.1']
    #allocation26 [shape = 'u8[24576]{0}', space=vmem, size = 0x6000, scoped, tag = 'output window, operand 0']
    #allocation27 [shape = 'u8[8192]{0}', space=vmem, size = 0x2000, scoped, tag = 'output window, operand 1']
    #allocation28 [shape = 's32[2]{0}', space=sflag, size = 0x8, scoped, tag = 'scoped memory for tpu_custom_call.1']
    %33 = vsyncpa [#allocation4], 0
    %s34 = scalar_lea.sflag [#allocation4], 1
    %35 = vsyncpa %s34, 0
    %36 = vsyncpa [#allocation7], 0
    %37 = vsyncpa [#allocation10], 0
    %38 = vsyncpa [#allocation13], 0
    %39 = vsyncpa [#allocation16], 0
    %40 = vsyncpa [#allocation19], 0
    %41 = vsyncpa [#allocation22], 0
    %42 = vsyncpa [#allocation25], 0
    %43 = vsyncpa [#allocation5], 0
    %s44 = scalar_lea.sflag [#allocation5], 1
    %45 = vsyncpa %s44, 0
    %46 = vsyncpa [#allocation28], 0
    %s47 = scalar_lea.sflag [#allocation28], 1
    %48 = vsyncpa %s47, 0
    loop: start=0, step=1, limit=4
    $region2: #{tpu_custom_call.1} parent=1 // loop_pre_header
      _
    $region3: #{tpu_custom_call.1} parent=1 // loop_header
      %s50 = sphi 0, %s54
      %p51 = scmp.ge.s32.totalorder %s50, 4
      %s60 = sphi 0, %s62
      %s63 = sphi 0, %s60
      %s64 = sphi 0, %s63
      %s80 = sphi 0, %s64
      %s84 = sphi 0, %s84
      %s86 = sphi 0, %s84
      %s87 = sphi 0, %s86
      %s101 = sphi 0, %s87
      %s105 = sphi 0, %s105
      %s107 = sphi 0, %s105
      %s108 = sphi 0, %s107
      %s122 = sphi 0, %s108
      %s126 = sphi 0, %s126
      %s128 = sphi 0, %s126
      %s129 = sphi 0, %s128
      %s143 = sphi 0, %s129
      %s147 = sphi 0, %s147
      %s149 = sphi 0, %s147
      %s150 = sphi 0, %s149
      %s164 = sphi 0, %s150
      %s168 = sphi 0, %s168
      %s170 = sphi 0, %s168
      %s171 = sphi 0, %s170
      %s185 = sphi 0, %s171
      %s189 = sphi 0, %s189
      %s191 = sphi 0, %s189
      %s192 = sphi 0, %s191
      %s206 = sphi 0, %s192
      %s210 = sphi 0, %s210
      %s212 = sphi 0, %s210
      %s213 = sphi 0, %s212
      %s227 = sphi 0, %s213
      %s231 = sphi 0, %s231
      %s233 = sphi 0, %s231
      %s234 = sphi 0, %s233
      %s248 = sphi 0, %s234
      %s252 = sphi 0, %s252
      %s254 = sphi 0, %s252
      %s255 = sphi 0, %s254
      %s269 = sphi 0, %s255
      %s273 = sphi 0, %s273
      %s275 = sphi 0, %s273
      %s276 = sphi 0, %s275
      %s290 = sphi 0, %s276
      %s294 = sphi 0, %s294
      %s296 = sphi 0, %s294
      %s297 = sphi 0, %s296
      %s311 = sphi 0, %s297
      %s315 = sphi 0, %s315
      %s317 = sphi 0, %s315
      %s318 = sphi 0, %s317
      %s332 = sphi 0, %s318
      %s336 = sphi 0, %s336
      %s338 = sphi 0, %s336
      %s339 = sphi 0, %s338
      %s353 = sphi 0, %s339
      %s357 = sphi 0, %s357
      %s359 = sphi 0, %s357
      %s360 = sphi 0, %s359
      %s374 = sphi 0, %s360
      %s378 = sphi 0, %s378
      %s380 = sphi 0, %s378
      %s381 = sphi 0, %s380
      %s395 = sphi 0, %s381
      %s399 = sphi 0, %s399
      %s401 = sphi 0, %s399
      %s402 = sphi 0, %s401
      %s416 = sphi 0, %s402
      %s420 = sphi 0, %s420
      %s422 = sphi 0, %s420
      %s423 = sphi 0, %s422
      %s437 = sphi 0, %s423
      %s441 = sphi 0, %s441
      %s443 = sphi 0, %s441
      %s444 = sphi 0, %s443
      %s458 = sphi 0, %s444
      %s462 = sphi 0, %s462
      %s464 = sphi 0, %s462
      %s465 = sphi 0, %s464
      %s479 = sphi 0, %s465
      %s483 = sphi 0, %s483
      %s485 = sphi 0, %s483
      %s486 = sphi 0, %s485
      %s500 = sphi 0, %s486
      %s504 = sphi 0, %s504
      %s506 = sphi 0, %s504
      %s507 = sphi 0, %s506
      %s521 = sphi 0, %s507
      %s525 = sphi 0, %s525
      %s527 = sphi 0, %s525
      %s528 = sphi 0, %s527
      %s542 = sphi 0, %s528
      %s546 = sphi 0, %s546
      %s548 = sphi 0, %s546
      %s549 = sphi 0, %s548
      %s563 = sphi 0, %s549
      %s567 = sphi 0, %s567
      %s569 = sphi 0, %s567
      %s570 = sphi 0, %s569
      %s584 = sphi 0, %s570
      %s588 = sphi 0, %s588
      %s590 = sphi 0, %s588
      %s591 = sphi 0, %s590
      %s605 = sphi 0, %s591
      %s611 = sphi 0, %s613
      %s614 = sphi 0, %s611
      %s615 = sphi 0, %s614
      %s631 = sphi 0, %s615
      %s637 = sphi 0, %s639
      %s640 = sphi 0, %s637
      %s641 = sphi 0, %s640
      %s657 = sphi 0, %s641
    $region4: #{tpu_custom_call.1} parent=1 // loop_header_branch
      %53 = sbr.rel (%p51) target = $region8
    $region5: #{tpu_custom_call.1} parent=1 // loop_body
      %s55 = ssub.s32 %s50, 1
      %s56 = ssub.s32 %s50, 2
      %s57 = sadd.s32 %s50, 1
      %s58 = ssub.s32 %s50, %s57
      %p59 = scmp.eq.s32.totalorder %s58, 0
      %s61 = sadd.s32 %s60, 1
      %s62 = scalar_select %p59, %s60, %s61
      %p65 = pneg %p59
      %p66 = scmp.eq.s32.totalorder %s50, 1
      %p67 = por %p65, %p66
      %p68 = scmp.ne.s32.totalorder %s60, %s63
      %p69 = scmp.eq.s32.totalorder %s50, 0
      %p70 = por %p68, %p69
      %p71 = scmp.ne.s32.totalorder %s60, %s63
      %p72 = scmp.eq.s32.totalorder %s55, 1
      %p73 = por %p71, %p72
      %p74 = scmp.ne.s32.totalorder %s63, %s64
      %p75 = scmp.eq.s32.totalorder %s55, 0
      %p76 = por %p74, %p75
      %p77 = scmp.ne.s32.totalorder %s63, %s64
      %p78 = scmp.eq.s32.totalorder %s56, 1
      %p79 = por %p77, %p78
      %p81 = scmp.ne.s32.totalorder %s64, %s80
      %p82 = scmp.eq.s32.totalorder %s56, 0
      %p83 = por %p81, %p82
      %s85 = sadd.s32 %s84, 1
      %p88 = scmp.eq.s32.totalorder %s50, 1
      %p89 = scmp.ne.s32.totalorder %s84, %s86
      %p90 = scmp.eq.s32.totalorder %s50, 0
      %p91 = por %p89, %p90
      %p92 = scmp.ne.s32.totalorder %s84, %s86
      %p93 = scmp.eq.s32.totalorder %s55, 1
      %p94 = por %p92, %p93
      %p95 = scmp.ne.s32.totalorder %s86, %s87
      %p96 = scmp.eq.s32.totalorder %s55, 0
      %p97 = por %p95, %p96
      %p98 = scmp.ne.s32.totalorder %s86, %s87
      %p99 = scmp.eq.s32.totalorder %s56, 1
      %p100 = por %p98, %p99
      %p102 = scmp.ne.s32.totalorder %s87, %s101
      %p103 = scmp.eq.s32.totalorder %s56, 0
      %p104 = por %p102, %p103
      %s106 = sadd.s32 %s105, 1
      %p109 = scmp.eq.s32.totalorder %s50, 1
      %p110 = scmp.ne.s32.totalorder %s105, %s107
      %p111 = scmp.eq.s32.totalorder %s50, 0
      %p112 = por %p110, %p111
      %p113 = scmp.ne.s32.totalorder %s105, %s107
      %p114 = scmp.eq.s32.totalorder %s55, 1
      %p115 = por %p113, %p114
      %p116 = scmp.ne.s32.totalorder %s107, %s108
      %p117 = scmp.eq.s32.totalorder %s55, 0
      %p118 = por %p116, %p117
      %p119 = scmp.ne.s32.totalorder %s107, %s108
      %p120 = scmp.eq.s32.totalorder %s56, 1
      %p121 = por %p119, %p120
      %p123 = scmp.ne.s32.totalorder %s108, %s122
      %p124 = scmp.eq.s32.totalorder %s56, 0
      %p125 = por %p123, %p124
      %s127 = sadd.s32 %s126, 1
      %p130 = scmp.eq.s32.totalorder %s50, 1
      %p131 = scmp.ne.s32.totalorder %s126, %s128
      %p132 = scmp.eq.s32.totalorder %s50, 0
      %p133 = por %p131, %p132
      %p134 = scmp.ne.s32.totalorder %s126, %s128
      %p135 = scmp.eq.s32.totalorder %s55, 1
      %p136 = por %p134, %p135
      %p137 = scmp.ne.s32.totalorder %s128, %s129
      %p138 = scmp.eq.s32.totalorder %s55, 0
      %p139 = por %p137, %p138
      %p140 = scmp.ne.s32.totalorder %s128, %s129
      %p141 = scmp.eq.s32.totalorder %s56, 1
      %p142 = por %p140, %p141
      %p144 = scmp.ne.s32.totalorder %s129, %s143
      %p145 = scmp.eq.s32.totalorder %s56, 0
      %p146 = por %p144, %p145
      %s148 = sadd.s32 %s147, 1
      %p151 = scmp.eq.s32.totalorder %s50, 1
      %p152 = scmp.ne.s32.totalorder %s147, %s149
      %p153 = scmp.eq.s32.totalorder %s50, 0
      %p154 = por %p152, %p153
      %p155 = scmp.ne.s32.totalorder %s147, %s149
      %p156 = scmp.eq.s32.totalorder %s55, 1
      %p157 = por %p155, %p156
      %p158 = scmp.ne.s32.totalorder %s149, %s150
      %p159 = scmp.eq.s32.totalorder %s55, 0
      %p160 = por %p158, %p159
      %p161 = scmp.ne.s32.totalorder %s149, %s150
      %p162 = scmp.eq.s32.totalorder %s56, 1
      %p163 = por %p161, %p162
      %p165 = scmp.ne.s32.totalorder %s150, %s164
      %p166 = scmp.eq.s32.totalorder %s56, 0
      %p167 = por %p165, %p166
      %s169 = sadd.s32 %s168, 1
      %p172 = scmp.eq.s32.totalorder %s50, 1
      %p173 = scmp.ne.s32.totalorder %s168, %s170
      %p174 = scmp.eq.s32.totalorder %s50, 0
      %p175 = por %p173, %p174
      %p176 = scmp.ne.s32.totalorder %s168, %s170
      %p177 = scmp.eq.s32.totalorder %s55, 1
      %p178 = por %p176, %p177
      %p179 = scmp.ne.s32.totalorder %s170, %s171
      %p180 = scmp.eq.s32.totalorder %s55, 0
      %p181 = por %p179, %p180
      %p182 = scmp.ne.s32.totalorder %s170, %s171
      %p183 = scmp.eq.s32.totalorder %s56, 1
      %p184 = por %p182, %p183
      %p186 = scmp.ne.s32.totalorder %s171, %s185
      %p187 = scmp.eq.s32.totalorder %s56, 0
      %p188 = por %p186, %p187
      %s190 = sadd.s32 %s189, 1
      %p193 = scmp.eq.s32.totalorder %s50, 1
      %p194 = scmp.ne.s32.totalorder %s189, %s191
      %p195 = scmp.eq.s32.totalorder %s50, 0
      %p196 = por %p194, %p195
      %p197 = scmp.ne.s32.totalorder %s189, %s191
      %p198 = scmp.eq.s32.totalorder %s55, 1
      %p199 = por %p197, %p198
      %p200 = scmp.ne.s32.totalorder %s191, %s192
      %p201 = scmp.eq.s32.totalorder %s55, 0
      %p202 = por %p200, %p201
      %p203 = scmp.ne.s32.totalorder %s191, %s192
      %p204 = scmp.eq.s32.totalorder %s56, 1
      %p205 = por %p203, %p204
      %p207 = scmp.ne.s32.totalorder %s192, %s206
      %p208 = scmp.eq.s32.totalorder %s56, 0
      %p209 = por %p207, %p208
      %s211 = sadd.s32 %s210, 1
      %p214 = scmp.eq.s32.totalorder %s50, 1
      %p215 = scmp.ne.s32.totalorder %s210, %s212
      %p216 = scmp.eq.s32.totalorder %s50, 0
      %p217 = por %p215, %p216
      %p218 = scmp.ne.s32.totalorder %s210, %s212
      %p219 = scmp.eq.s32.totalorder %s55, 1
      %p220 = por %p218, %p219
      %p221 = scmp.ne.s32.totalorder %s212, %s213
      %p222 = scmp.eq.s32.totalorder %s55, 0
      %p223 = por %p221, %p222
      %p224 = scmp.ne.s32.totalorder %s212, %s213
      %p225 = scmp.eq.s32.totalorder %s56, 1
      %p226 = por %p224, %p225
      %p228 = scmp.ne.s32.totalorder %s213, %s227
      %p229 = scmp.eq.s32.totalorder %s56, 0
      %p230 = por %p228, %p229
      %s232 = sadd.s32 %s231, 1
      %p235 = scmp.eq.s32.totalorder %s50, 1
      %p236 = scmp.ne.s32.totalorder %s231, %s233
      %p237 = scmp.eq.s32.totalorder %s50, 0
      %p238 = por %p236, %p237
      %p239 = scmp.ne.s32.totalorder %s231, %s233
      %p240 = scmp.eq.s32.totalorder %s55, 1
      %p241 = por %p239, %p240
      %p242 = scmp.ne.s32.totalorder %s233, %s234
      %p243 = scmp.eq.s32.totalorder %s55, 0
      %p244 = por %p242, %p243
      %p245 = scmp.ne.s32.totalorder %s233, %s234
      %p246 = scmp.eq.s32.totalorder %s56, 1
      %p247 = por %p245, %p246
      %p249 = scmp.ne.s32.totalorder %s234, %s248
      %p250 = scmp.eq.s32.totalorder %s56, 0
      %p251 = por %p249, %p250
      %s253 = sadd.s32 %s252, 1
      %p256 = scmp.eq.s32.totalorder %s50, 1
      %p257 = scmp.ne.s32.totalorder %s252, %s254
      %p258 = scmp.eq.s32.totalorder %s50, 0
      %p259 = por %p257, %p258
      %p260 = scmp.ne.s32.totalorder %s252, %s254
      %p261 = scmp.eq.s32.totalorder %s55, 1
      %p262 = por %p260, %p261
      %p263 = scmp.ne.s32.totalorder %s254, %s255
      %p264 = scmp.eq.s32.totalorder %s55, 0
      %p265 = por %p263, %p264
      %p266 = scmp.ne.s32.totalorder %s254, %s255
      %p267 = scmp.eq.s32.totalorder %s56, 1
      %p268 = por %p266, %p267
      %p270 = scmp.ne.s32.totalorder %s255, %s269
      %p271 = scmp.eq.s32.totalorder %s56, 0
      %p272 = por %p270, %p271
      %s274 = sadd.s32 %s273, 1
      %p277 = scmp.eq.s32.totalorder %s50, 1
      %p278 = scmp.ne.s32.totalorder %s273, %s275
      %p279 = scmp.eq.s32.totalorder %s50, 0
      %p280 = por %p278, %p279
      %p281 = scmp.ne.s32.totalorder %s273, %s275
      %p282 = scmp.eq.s32.totalorder %s55, 1
      %p283 = por %p281, %p282
      %p284 = scmp.ne.s32.totalorder %s275, %s276
      %p285 = scmp.eq.s32.totalorder %s55, 0
      %p286 = por %p284, %p285
      %p287 = scmp.ne.s32.totalorder %s275, %s276
      %p288 = scmp.eq.s32.totalorder %s56, 1
      %p289 = por %p287, %p288
      %p291 = scmp.ne.s32.totalorder %s276, %s290
      %p292 = scmp.eq.s32.totalorder %s56, 0
      %p293 = por %p291, %p292
      %s295 = sadd.s32 %s294, 1
      %p298 = scmp.eq.s32.totalorder %s50, 1
      %p299 = scmp.ne.s32.totalorder %s294, %s296
      %p300 = scmp.eq.s32.totalorder %s50, 0
      %p301 = por %p299, %p300
      %p302 = scmp.ne.s32.totalorder %s294, %s296
      %p303 = scmp.eq.s32.totalorder %s55, 1
      %p304 = por %p302, %p303
      %p305 = scmp.ne.s32.totalorder %s296, %s297
      %p306 = scmp.eq.s32.totalorder %s55, 0
      %p307 = por %p305, %p306
      %p308 = scmp.ne.s32.totalorder %s296, %s297
      %p309 = scmp.eq.s32.totalorder %s56, 1
      %p310 = por %p308, %p309
      %p312 = scmp.ne.s32.totalorder %s297, %s311
      %p313 = scmp.eq.s32.totalorder %s56, 0
      %p314 = por %p312, %p313
      %s316 = sadd.s32 %s315, 1
      %p319 = scmp.eq.s32.totalorder %s50, 1
      %p320 = scmp.ne.s32.totalorder %s315, %s317
      %p321 = scmp.eq.s32.totalorder %s50, 0
      %p322 = por %p320, %p321
      %p323 = scmp.ne.s32.totalorder %s315, %s317
      %p324 = scmp.eq.s32.totalorder %s55, 1
      %p325 = por %p323, %p324
      %p326 = scmp.ne.s32.totalorder %s317, %s318
      %p327 = scmp.eq.s32.totalorder %s55, 0
      %p328 = por %p326, %p327
      %p329 = scmp.ne.s32.totalorder %s317, %s318
      %p330 = scmp.eq.s32.totalorder %s56, 1
      %p331 = por %p329, %p330
      %p333 = scmp.ne.s32.totalorder %s318, %s332
      %p334 = scmp.eq.s32.totalorder %s56, 0
      %p335 = por %p333, %p334
      %s337 = sadd.s32 %s336, 1
      %p340 = scmp.eq.s32.totalorder %s50, 1
      %p341 = scmp.ne.s32.totalorder %s336, %s338
      %p342 = scmp.eq.s32.totalorder %s50, 0
      %p343 = por %p341, %p342
      %p344 = scmp.ne.s32.totalorder %s336, %s338
      %p345 = scmp.eq.s32.totalorder %s55, 1
      %p346 = por %p344, %p345
      %p347 = scmp.ne.s32.totalorder %s338, %s339
      %p348 = scmp.eq.s32.totalorder %s55, 0
      %p349 = por %p347, %p348
      %p350 = scmp.ne.s32.totalorder %s338, %s339
      %p351 = scmp.eq.s32.totalorder %s56, 1
      %p352 = por %p350, %p351
      %p354 = scmp.ne.s32.totalorder %s339, %s353
      %p355 = scmp.eq.s32.totalorder %s56, 0
      %p356 = por %p354, %p355
      %s358 = sadd.s32 %s357, 1
      %p361 = scmp.eq.s32.totalorder %s50, 1
      %p362 = scmp.ne.s32.totalorder %s357, %s359
      %p363 = scmp.eq.s32.totalorder %s50, 0
      %p364 = por %p362, %p363
      %p365 = scmp.ne.s32.totalorder %s357, %s359
      %p366 = scmp.eq.s32.totalorder %s55, 1
      %p367 = por %p365, %p366
      %p368 = scmp.ne.s32.totalorder %s359, %s360
      %p369 = scmp.eq.s32.totalorder %s55, 0
      %p370 = por %p368, %p369
      %p371 = scmp.ne.s32.totalorder %s359, %s360
      %p372 = scmp.eq.s32.totalorder %s56, 1
      %p373 = por %p371, %p372
      %p375 = scmp.ne.s32.totalorder %s360, %s374
      %p376 = scmp.eq.s32.totalorder %s56, 0
      %p377 = por %p375, %p376
      %s379 = sadd.s32 %s378, 1
      %p382 = scmp.eq.s32.totalorder %s50, 1
      %p383 = scmp.ne.s32.totalorder %s378, %s380
      %p384 = scmp.eq.s32.totalorder %s50, 0
      %p385 = por %p383, %p384
      %p386 = scmp.ne.s32.totalorder %s378, %s380
      %p387 = scmp.eq.s32.totalorder %s55, 1
      %p388 = por %p386, %p387
      %p389 = scmp.ne.s32.totalorder %s380, %s381
      %p390 = scmp.eq.s32.totalorder %s55, 0
      %p391 = por %p389, %p390
      %p392 = scmp.ne.s32.totalorder %s380, %s381
      %p393 = scmp.eq.s32.totalorder %s56, 1
      %p394 = por %p392, %p393
      %p396 = scmp.ne.s32.totalorder %s381, %s395
      %p397 = scmp.eq.s32.totalorder %s56, 0
      %p398 = por %p396, %p397
      %s400 = sadd.s32 %s399, 1
      %p403 = scmp.eq.s32.totalorder %s50, 1
      %p404 = scmp.ne.s32.totalorder %s399, %s401
      %p405 = scmp.eq.s32.totalorder %s50, 0
      %p406 = por %p404, %p405
      %p407 = scmp.ne.s32.totalorder %s399, %s401
      %p408 = scmp.eq.s32.totalorder %s55, 1
      %p409 = por %p407, %p408
      %p410 = scmp.ne.s32.totalorder %s401, %s402
      %p411 = scmp.eq.s32.totalorder %s55, 0
      %p412 = por %p410, %p411
      %p413 = scmp.ne.s32.totalorder %s401, %s402
      %p414 = scmp.eq.s32.totalorder %s56, 1
      %p415 = por %p413, %p414
      %p417 = scmp.ne.s32.totalorder %s402, %s416
      %p418 = scmp.eq.s32.totalorder %s56, 0
      %p419 = por %p417, %p418
      %s421 = sadd.s32 %s420, 1
      %p424 = scmp.eq.s32.totalorder %s50, 1
      %p425 = scmp.ne.s32.totalorder %s420, %s422
      %p426 = scmp.eq.s32.totalorder %s50, 0
      %p427 = por %p425, %p426
      %p428 = scmp.ne.s32.totalorder %s420, %s422
      %p429 = scmp.eq.s32.totalorder %s55, 1
      %p430 = por %p428, %p429
      %p431 = scmp.ne.s32.totalorder %s422, %s423
      %p432 = scmp.eq.s32.totalorder %s55, 0
      %p433 = por %p431, %p432
      %p434 = scmp.ne.s32.totalorder %s422, %s423
      %p435 = scmp.eq.s32.totalorder %s56, 1
      %p436 = por %p434, %p435
      %p438 = scmp.ne.s32.totalorder %s423, %s437
      %p439 = scmp.eq.s32.totalorder %s56, 0
      %p440 = por %p438, %p439
      %s442 = sadd.s32 %s441, 1
      %p445 = scmp.eq.s32.totalorder %s50, 1
      %p446 = scmp.ne.s32.totalorder %s441, %s443
      %p447 = scmp.eq.s32.totalorder %s50, 0
      %p448 = por %p446, %p447
      %p449 = scmp.ne.s32.totalorder %s441, %s443
      %p450 = scmp.eq.s32.totalorder %s55, 1
      %p451 = por %p449, %p450
      %p452 = scmp.ne.s32.totalorder %s443, %s444
      %p453 = scmp.eq.s32.totalorder %s55, 0
      %p454 = por %p452, %p453
      %p455 = scmp.ne.s32.totalorder %s443, %s444
      %p456 = scmp.eq.s32.totalorder %s56, 1
      %p457 = por %p455, %p456
      %p459 = scmp.ne.s32.totalorder %s444, %s458
      %p460 = scmp.eq.s32.totalorder %s56, 0
      %p461 = por %p459, %p460
      %s463 = sadd.s32 %s462, 1
      %p466 = scmp.eq.s32.totalorder %s50, 1
      %p467 = scmp.ne.s32.totalorder %s462, %s464
      %p468 = scmp.eq.s32.totalorder %s50, 0
      %p469 = por %p467, %p468
      %p470 = scmp.ne.s32.totalorder %s462, %s464
      %p471 = scmp.eq.s32.totalorder %s55, 1
      %p472 = por %p470, %p471
      %p473 = scmp.ne.s32.totalorder %s464, %s465
      %p474 = scmp.eq.s32.totalorder %s55, 0
      %p475 = por %p473, %p474
      %p476 = scmp.ne.s32.totalorder %s464, %s465
      %p477 = scmp.eq.s32.totalorder %s56, 1
      %p478 = por %p476, %p477
      %p480 = scmp.ne.s32.totalorder %s465, %s479
      %p481 = scmp.eq.s32.totalorder %s56, 0
      %p482 = por %p480, %p481
      %s484 = sadd.s32 %s483, 1
      %p487 = scmp.eq.s32.totalorder %s50, 1
      %p488 = scmp.ne.s32.totalorder %s483, %s485
      %p489 = scmp.eq.s32.totalorder %s50, 0
      %p490 = por %p488, %p489
      %p491 = scmp.ne.s32.totalorder %s483, %s485
      %p492 = scmp.eq.s32.totalorder %s55, 1
      %p493 = por %p491, %p492
      %p494 = scmp.ne.s32.totalorder %s485, %s486
      %p495 = scmp.eq.s32.totalorder %s55, 0
      %p496 = por %p494, %p495
      %p497 = scmp.ne.s32.totalorder %s485, %s486
      %p498 = scmp.eq.s32.totalorder %s56, 1
      %p499 = por %p497, %p498
      %p501 = scmp.ne.s32.totalorder %s486, %s500
      %p502 = scmp.eq.s32.totalorder %s56, 0
      %p503 = por %p501, %p502
      %s505 = sadd.s32 %s504, 1
      %p508 = scmp.eq.s32.totalorder %s50, 1
      %p509 = scmp.ne.s32.totalorder %s504, %s506
      %p510 = scmp.eq.s32.totalorder %s50, 0
      %p511 = por %p509, %p510
      %p512 = scmp.ne.s32.totalorder %s504, %s506
      %p513 = scmp.eq.s32.totalorder %s55, 1
      %p514 = por %p512, %p513
      %p515 = scmp.ne.s32.totalorder %s506, %s507
      %p516 = scmp.eq.s32.totalorder %s55, 0
      %p517 = por %p515, %p516
      %p518 = scmp.ne.s32.totalorder %s506, %s507
      %p519 = scmp.eq.s32.totalorder %s56, 1
      %p520 = por %p518, %p519
      %p522 = scmp.ne.s32.totalorder %s507, %s521
      %p523 = scmp.eq.s32.totalorder %s56, 0
      %p524 = por %p522, %p523
      %s526 = sadd.s32 %s525, 1
      %p529 = scmp.eq.s32.totalorder %s50, 1
      %p530 = scmp.ne.s32.totalorder %s525, %s527
      %p531 = scmp.eq.s32.totalorder %s50, 0
      %p532 = por %p530, %p531
      %p533 = scmp.ne.s32.totalorder %s525, %s527
      %p534 = scmp.eq.s32.totalorder %s55, 1
      %p535 = por %p533, %p534
      %p536 = scmp.ne.s32.totalorder %s527, %s528
      %p537 = scmp.eq.s32.totalorder %s55, 0
      %p538 = por %p536, %p537
      %p539 = scmp.ne.s32.totalorder %s527, %s528
      %p540 = scmp.eq.s32.totalorder %s56, 1
      %p541 = por %p539, %p540
      %p543 = scmp.ne.s32.totalorder %s528, %s542
      %p544 = scmp.eq.s32.totalorder %s56, 0
      %p545 = por %p543, %p544
      %s547 = sadd.s32 %s546, 1
      %p550 = scmp.eq.s32.totalorder %s50, 1
      %p551 = scmp.ne.s32.totalorder %s546, %s548
      %p552 = scmp.eq.s32.totalorder %s50, 0
      %p553 = por %p551, %p552
      %p554 = scmp.ne.s32.totalorder %s546, %s548
      %p555 = scmp.eq.s32.totalorder %s55, 1
      %p556 = por %p554, %p555
      %p557 = scmp.ne.s32.totalorder %s548, %s549
      %p558 = scmp.eq.s32.totalorder %s55, 0
      %p559 = por %p557, %p558
      %p560 = scmp.ne.s32.totalorder %s548, %s549
      %p561 = scmp.eq.s32.totalorder %s56, 1
      %p562 = por %p560, %p561
      %p564 = scmp.ne.s32.totalorder %s549, %s563
      %p565 = scmp.eq.s32.totalorder %s56, 0
      %p566 = por %p564, %p565
      %s568 = sadd.s32 %s567, 1
      %p571 = scmp.eq.s32.totalorder %s50, 1
      %p572 = scmp.ne.s32.totalorder %s567, %s569
      %p573 = scmp.eq.s32.totalorder %s50, 0
      %p574 = por %p572, %p573
      %p575 = scmp.ne.s32.totalorder %s567, %s569
      %p576 = scmp.eq.s32.totalorder %s55, 1
      %p577 = por %p575, %p576
      %p578 = scmp.ne.s32.totalorder %s569, %s570
      %p579 = scmp.eq.s32.totalorder %s55, 0
      %p580 = por %p578, %p579
      %p581 = scmp.ne.s32.totalorder %s569, %s570
      %p582 = scmp.eq.s32.totalorder %s56, 1
      %p583 = por %p581, %p582
      %p585 = scmp.ne.s32.totalorder %s570, %s584
      %p586 = scmp.eq.s32.totalorder %s56, 0
      %p587 = por %p585, %p586
      %s589 = sadd.s32 %s588, 1
      %p592 = scmp.eq.s32.totalorder %s50, 1
      %p593 = scmp.ne.s32.totalorder %s588, %s590
      %p594 = scmp.eq.s32.totalorder %s50, 0
      %p595 = por %p593, %p594
      %p596 = scmp.ne.s32.totalorder %s588, %s590
      %p597 = scmp.eq.s32.totalorder %s55, 1
      %p598 = por %p596, %p597
      %p599 = scmp.ne.s32.totalorder %s590, %s591
      %p600 = scmp.eq.s32.totalorder %s55, 0
      %p601 = por %p599, %p600
      %p602 = scmp.ne.s32.totalorder %s590, %s591
      %p603 = scmp.eq.s32.totalorder %s56, 1
      %p604 = por %p602, %p603
      %p606 = scmp.ne.s32.totalorder %s591, %s605
      %p607 = scmp.eq.s32.totalorder %s56, 0
      %p608 = por %p606, %p607
      %s609 = ssub.s32 %s50, %s57
      %p610 = scmp.eq.s32.totalorder %s609, 0
      %s612 = sadd.s32 %s611, 1
      %s613 = scalar_select %p610, %s611, %s612
      %p616 = pneg %p610
      %p617 = scmp.eq.s32.totalorder %s50, 1
      %p618 = por %p616, %p617
      %p619 = scmp.ne.s32.totalorder %s611, %s614
      %p620 = scmp.eq.s32.totalorder %s50, 0
      %p621 = por %p619, %p620
      %p622 = scmp.ne.s32.totalorder %s611, %s614
      %p623 = scmp.eq.s32.totalorder %s55, 1
      %p624 = por %p622, %p623
      %p625 = scmp.ne.s32.totalorder %s614, %s615
      %p626 = scmp.eq.s32.totalorder %s55, 0
      %p627 = por %p625, %p626
      %p628 = scmp.ne.s32.totalorder %s614, %s615
      %p629 = scmp.eq.s32.totalorder %s56, 1
      %p630 = por %p628, %p629
      %p632 = scmp.ne.s32.totalorder %s615, %s631
      %p633 = scmp.eq.s32.totalorder %s56, 0
      %p634 = por %p632, %p633
      %s635 = ssub.s32 %s50, %s57
      %p636 = scmp.eq.s32.totalorder %s635, 0
      %s638 = sadd.s32 %s637, 1
      %s639 = scalar_select %p636, %s637, %s638
      %p642 = pneg %p636
      %p643 = scmp.eq.s32.totalorder %s50, 1
      %p644 = por %p642, %p643
      %p645 = scmp.ne.s32.totalorder %s637, %s640
      %p646 = scmp.eq.s32.totalorder %s50, 0
      %p647 = por %p645, %p646
      %p648 = scmp.ne.s32.totalorder %s637, %s640
      %p649 = scmp.eq.s32.totalorder %s55, 1
      %p650 = por %p648, %p649
      %p651 = scmp.ne.s32.totalorder %s640, %s641
      %p652 = scmp.eq.s32.totalorder %s55, 0
      %p653 = por %p651, %p652
      %p654 = scmp.ne.s32.totalorder %s640, %s641
      %p655 = scmp.eq.s32.totalorder %s56, 1
      %p656 = por %p654, %p655
      %p658 = scmp.ne.s32.totalorder %s641, %s657
      %p659 = scmp.eq.s32.totalorder %s56, 0
      %p660 = por %p658, %p659
      %p661 = scmp.le.s32.totalorder 1, %s50
      %p662 = scmp.lt.s32.totalorder %s50, 3
      %p663 = pnand %p661, %p662
      %p664 = pneg %p663
      // Predicated region
      $region9: #{tpu_custom_call.1} parent=5 // pred_check
        _
      $region10: #{tpu_custom_call.1} parent=5 // pred_check_branch
        %666 = sbr.rel (%p663) target = $region12
      $region11: #{tpu_custom_call.1} parent=5 // pred_region
        %s667 = ssub.s32 %s50, 1
        // Predicated region
        $region13: #{tpu_custom_call.1} parent=11 // pred_check
          %p668 = pneg %p97
        $region14: #{tpu_custom_call.1} parent=11 // pred_check_branch
          %670 = sbr.rel (%p668) target = $region16
        $region15: #{tpu_custom_call.1} parent=11 // pred_region
          %s672 = ssub.s32 192, 192
          %673 = vsyncadd [#allocation7], %s672
          %s674 = sshll.u32 [#allocation6], 4
          %s675 = int_to_ptr.vmem [resolvable:$true] %s674
          %680 = dma.hbm_to_vmem [thread:$0]  %s1, 192, %s675, [#allocation7], 64, 64, 4
        $region16: #{tpu_custom_call.1} parent=11 // pred_fallthru
          _
        // Predicated region
        $region17: #{tpu_custom_call.1} parent=11 // pred_check
          %p681 = pneg %p118
        $region18: #{tpu_custom_call.1} parent=11 // pred_check_branch
          %683 = sbr.rel (%p681) target = $region20
        $region19: #{tpu_custom_call.1} parent=11 // pred_region
          %s685 = ssub.s32 384, 384
          %686 = vsyncadd [#allocation7], %s685
          %s687 = sshll.u32 [#allocation8], 4
          %s688 = int_to_ptr.vmem [resolvable:$true] %s687
          %693 = dma.hbm_to_vmem [thread:$0]  %s2, 384, %s688, [#allocation7], 128, 128, 8
        $region20: #{tpu_custom_call.1} parent=11 // pred_fallthru
          _
        // Predicated region
        $region21: #{tpu_custom_call.1} parent=11 // pred_check
          %p694 = pneg %p139
        $region22: #{tpu_custom_call.1} parent=11 // pred_check_branch
          %696 = sbr.rel (%p694) target = $region24
        $region23: #{tpu_custom_call.1} parent=11 // pred_region
          %s698 = ssub.s32 128, 128
          %699 = vsyncadd [#allocation10], %s698
          %s701 = sshll.u32 [#allocation9], 4
          %s702 = int_to_ptr.vmem [resolvable:$true] %s701
          %704 = dma.hbm_to_vmem [thread:$0]  %s3, 128, %s702, [#allocation10]
        $region24: #{tpu_custom_call.1} parent=11 // pred_fallthru
          _
        // Predicated region
        $region25: #{tpu_custom_call.1} parent=11 // pred_check
          %p705 = pneg %p160
        $region26: #{tpu_custom_call.1} parent=11 // pred_check_branch
          %707 = sbr.rel (%p705) target = $region28
        $region27: #{tpu_custom_call.1} parent=11 // pred_region
          %s709 = ssub.s32 1024, 1024
          %710 = vsyncadd [#allocation10], %s709
          %s711 = sshll.u32 [#allocation11], 4
          %s712 = int_to_ptr.vmem [resolvable:$true] %s711
          %717 = dma.hbm_to_vmem [thread:$0]  %s4, 1024, %s712, [#allocation10], 64, 64, 4
        $region28: #{tpu_custom_call.1} parent=11 // pred_fallthru
          _
        // Predicated region
        $region29: #{tpu_custom_call.1} parent=11 // pred_check
          %p718 = pneg %p181
        $region30: #{tpu_custom_call.1} parent=11 // pred_check_branch
          %720 = sbr.rel (%p718) target = $region32
        $region31: #{tpu_custom_call.1} parent=11 // pred_region
          %s722 = ssub.s32 1024, 1024
          %723 = vsyncadd [#allocation13], %s722
          %s724 = sshll.u32 [#allocation12], 4
          %s725 = int_to_ptr.vmem [resolvable:$true] %s724
          %730 = dma.hbm_to_vmem [thread:$0]  %s5, 1024, %s725, [#allocation13], 64, 64, 4
        $region32: #{tpu_custom_call.1} parent=11 // pred_fallthru
          _
        // Predicated region
        $region33: #{tpu_custom_call.1} parent=11 // pred_check
          %p731 = pneg %p202
        $region34: #{tpu_custom_call.1} parent=11 // pred_check_branch
          %733 = sbr.rel (%p731) target = $region36
        $region35: #{tpu_custom_call.1} parent=11 // pred_region
          %s735 = ssub.s32 3072, 3072
          %736 = vsyncadd [#allocation13], %s735
          %s737 = sshll.u32 [#allocation14], 4
          %s738 = int_to_ptr.vmem [resolvable:$true] %s737
          %743 = dma.hbm_to_vmem [thread:$0]  %s6, 3072, %s738, [#allocation13], 192, 192, 12
        $region36: #{tpu_custom_call.1} parent=11 // pred_fallthru
          _
        // Predicated region
        $region37: #{tpu_custom_call.1} parent=11 // pred_check
          %p744 = pneg %p223
        $region38: #{tpu_custom_call.1} parent=11 // pred_check_branch
          %746 = sbr.rel (%p744) target = $region40
        $region39: #{tpu_custom_call.1} parent=11 // pred_region
          _
        $region40: #{tpu_custom_call.1} parent=11 // pred_fallthru
          _
        // Predicated region
        $region41: #{tpu_custom_call.1} parent=11 // pred_check
          %p747 = pneg %p244
        $region42: #{tpu_custom_call.1} parent=11 // pred_check_branch
          %749 = sbr.rel (%p747) target = $region44
        $region43: #{tpu_custom_call.1} parent=11 // pred_region
          %s751 = ssub.s32 1024, 1024
          %752 = vsyncadd [#allocation16], %s751
          %s753 = sshll.u32 [#allocation15], 4
          %s754 = int_to_ptr.vmem [resolvable:$true] %s753
          %759 = dma.hbm_to_vmem [thread:$0]  %s8, 1024, %s754, [#allocation16], 64, 64, 4
        $region44: #{tpu_custom_call.1} parent=11 // pred_fallthru
          _
        // Predicated region
        $region45: #{tpu_custom_call.1} parent=11 // pred_check
          %p760 = pneg %p265
        $region46: #{tpu_custom_call.1} parent=11 // pred_check_branch
          %762 = sbr.rel (%p760) target = $region48
        $region47: #{tpu_custom_call.1} parent=11 // pred_region
          _
        $region48: #{tpu_custom_call.1} parent=11 // pred_fallthru
          _
        // Predicated region
        $region49: #{tpu_custom_call.1} parent=11 // pred_check
          %p763 = pneg %p286
        $region50: #{tpu_custom_call.1} parent=11 // pred_check_branch
          %765 = sbr.rel (%p763) target = $region52
        $region51: #{tpu_custom_call.1} parent=11 // pred_region
          %s767 = ssub.s32 3072, 3072
          %768 = vsyncadd [#allocation16], %s767
          %s769 = sshll.u32 [#allocation17], 4
          %s770 = int_to_ptr.vmem [resolvable:$true] %s769
          %775 = dma.hbm_to_vmem [thread:$0]  %s10, 3072, %s770, [#allocation16], 192, 192, 12
        $region52: #{tpu_custom_call.1} parent=11 // pred_fallthru
          _
        // Predicated region
        $region53: #{tpu_custom_call.1} parent=11 // pred_check
          %p776 = pneg %p307
        $region54: #{tpu_custom_call.1} parent=11 // pred_check_branch
          %778 = sbr.rel (%p776) target = $region56
        $region55: #{tpu_custom_call.1} parent=11 // pred_region
          _
        $region56: #{tpu_custom_call.1} parent=11 // pred_fallthru
          _
        // Predicated region
        $region57: #{tpu_custom_call.1} parent=11 // pred_check
          %p779 = pneg %p328
        $region58: #{tpu_custom_call.1} parent=11 // pred_check_branch
          %781 = sbr.rel (%p779) target = $region60
        $region59: #{tpu_custom_call.1} parent=11 // pred_region
          %s783 = ssub.s32 1024, 1024
          %784 = vsyncadd [#allocation19], %s783
          %s785 = sshll.u32 [#allocation18], 4
          %s786 = int_to_ptr.vmem [resolvable:$true] %s785
          %791 = dma.hbm_to_vmem [thread:$0]  %s12, 1024, %s786, [#allocation19], 64, 64, 4
        $region60: #{tpu_custom_call.1} parent=11 // pred_fallthru
          _
        // Predicated region
        $region61: #{tpu_custom_call.1} parent=11 // pred_check
          %p792 = pneg %p349
        $region62: #{tpu_custom_call.1} parent=11 // pred_check_branch
          %794 = sbr.rel (%p792) target = $region64
        $region63: #{tpu_custom_call.1} parent=11 // pred_region
          _
        $region64: #{tpu_custom_call.1} parent=11 // pred_fallthru
          _
        // Predicated region
        $region65: #{tpu_custom_call.1} parent=11 // pred_check
          %p795 = pneg %p370
        $region66: #{tpu_custom_call.1} parent=11 // pred_check_branch
          %797 = sbr.rel (%p795) target = $region68
        $region67: #{tpu_custom_call.1} parent=11 // pred_region
          %s799 = ssub.s32 3072, 3072
          %800 = vsyncadd [#allocation19], %s799
          %s801 = sshll.u32 [#allocation20], 4
          %s802 = int_to_ptr.vmem [resolvable:$true] %s801
          %807 = dma.hbm_to_vmem [thread:$0]  %s14, 3072, %s802, [#allocation19], 192, 192, 12
        $region68: #{tpu_custom_call.1} parent=11 // pred_fallthru
          _
        // Predicated region
        $region69: #{tpu_custom_call.1} parent=11 // pred_check
          %p808 = pneg %p391
        $region70: #{tpu_custom_call.1} parent=11 // pred_check_branch
          %810 = sbr.rel (%p808) target = $region72
        $region71: #{tpu_custom_call.1} parent=11 // pred_region
          _
        $region72: #{tpu_custom_call.1} parent=11 // pred_fallthru
          _
        // Predicated region
        $region73: #{tpu_custom_call.1} parent=11 // pred_check
          %p811 = pneg %p412
        $region74: #{tpu_custom_call.1} parent=11 // pred_check_branch
          %813 = sbr.rel (%p811) target = $region76
        $region75: #{tpu_custom_call.1} parent=11 // pred_region
          %s815 = ssub.s32 1024, 1024
          %816 = vsyncadd [#allocation22], %s815
          %s817 = sshll.u32 [#allocation21], 4
          %s818 = int_to_ptr.vmem [resolvable:$true] %s817
          %823 = dma.hbm_to_vmem [thread:$0]  %s16, 1024, %s818, [#allocation22], 64, 64, 4
        $region76: #{tpu_custom_call.1} parent=11 // pred_fallthru
          _
        // Predicated region
        $region77: #{tpu_custom_call.1} parent=11 // pred_check
          %p824 = pneg %p433
        $region78: #{tpu_custom_call.1} parent=11 // pred_check_branch
          %826 = sbr.rel (%p824) target = $region80
        $region79: #{tpu_custom_call.1} parent=11 // pred_region
          _
        $region80: #{tpu_custom_call.1} parent=11 // pred_fallthru
          _
        // Predicated region
        $region81: #{tpu_custom_call.1} parent=11 // pred_check
          %p827 = pneg %p454
        $region82: #{tpu_custom_call.1} parent=11 // pred_check_branch
          %829 = sbr.rel (%p827) target = $region84
        $region83: #{tpu_custom_call.1} parent=11 // pred_region
          _
        $region84: #{tpu_custom_call.1} parent=11 // pred_fallthru
          _
        // Predicated region
        $region85: #{tpu_custom_call.1} parent=11 // pred_check
          %p830 = pneg %p475
        $region86: #{tpu_custom_call.1} parent=11 // pred_check_branch
          %832 = sbr.rel (%p830) target = $region88
        $region87: #{tpu_custom_call.1} parent=11 // pred_region
          _
        $region88: #{tpu_custom_call.1} parent=11 // pred_fallthru
          _
        // Predicated region
        $region89: #{tpu_custom_call.1} parent=11 // pred_check
          %p833 = pneg %p496
        $region90: #{tpu_custom_call.1} parent=11 // pred_check_branch
          %835 = sbr.rel (%p833) target = $region92
        $region91: #{tpu_custom_call.1} parent=11 // pred_region
          %s837 = ssub.s32 1024, 1024
          %838 = vsyncadd [#allocation22], %s837
          %s839 = sshll.u32 [#allocation23], 4
          %s840 = int_to_ptr.vmem [resolvable:$true] %s839
          %845 = dma.hbm_to_vmem [thread:$0]  %s20, 1024, %s840, [#allocation22], 64, 64, 4
        $region92: #{tpu_custom_call.1} parent=11 // pred_fallthru
          _
        // Predicated region
        $region93: #{tpu_custom_call.1} parent=11 // pred_check
          %p846 = pneg %p517
        $region94: #{tpu_custom_call.1} parent=11 // pred_check_branch
          %848 = sbr.rel (%p846) target = $region96
        $region95: #{tpu_custom_call.1} parent=11 // pred_region
          _
        $region96: #{tpu_custom_call.1} parent=11 // pred_fallthru
          _
        // Predicated region
        $region97: #{tpu_custom_call.1} parent=11 // pred_check
          %p849 = pneg %p538
        $region98: #{tpu_custom_call.1} parent=11 // pred_check_branch
          %851 = sbr.rel (%p849) target = $region100
        $region99: #{tpu_custom_call.1} parent=11 // pred_region
          _
        $region100: #{tpu_custom_call.1} parent=11 // pred_fallthru
          _
        // Predicated region
        $region101: #{tpu_custom_call.1} parent=11 // pred_check
          %p852 = pneg %p559
        $region102: #{tpu_custom_call.1} parent=11 // pred_check_branch
          %854 = sbr.rel (%p852) target = $region104
        $region103: #{tpu_custom_call.1} parent=11 // pred_region
          _
        $region104: #{tpu_custom_call.1} parent=11 // pred_fallthru
          _
        // Predicated region
        $region105: #{tpu_custom_call.1} parent=11 // pred_check
          %p855 = pneg %p580
        $region106: #{tpu_custom_call.1} parent=11 // pred_check_branch
          %857 = sbr.rel (%p855) target = $region108
        $region107: #{tpu_custom_call.1} parent=11 // pred_region
          %s859 = ssub.s32 1024, 1024
          %860 = vsyncadd [#allocation25], %s859
          %s861 = sshll.u32 [#allocation24], 4
          %s862 = int_to_ptr.vmem [resolvable:$true] %s861
          %867 = dma.hbm_to_vmem [thread:$0]  %s24, 1024, %s862, [#allocation25], 64, 64, 4
        $region108: #{tpu_custom_call.1} parent=11 // pred_fallthru
          _
        // Predicated region
        $region109: #{tpu_custom_call.1} parent=11 // pred_check
          %p868 = pneg %p601
        $region110: #{tpu_custom_call.1} parent=11 // pred_check_branch
          %870 = sbr.rel (%p868) target = $region112
        $region111: #{tpu_custom_call.1} parent=11 // pred_region
          _
        $region112: #{tpu_custom_call.1} parent=11 // pred_fallthru
          _
      $region12: #{tpu_custom_call.1} parent=5 // pred_fallthru
        _
      %p871 = scmp.lt.s32.totalorder %s50, 2
      // Predicated region
      $region113: #{tpu_custom_call.1} parent=5 // pred_check
        %p872 = pneg %p871
      $region114: #{tpu_custom_call.1} parent=5 // pred_check_branch
        %874 = sbr.rel (%p872) target = $region116
      $region115: #{tpu_custom_call.1} parent=5 // pred_region
        // Predicated region
        $region117: #{tpu_custom_call.1} parent=115 // pred_check
          %p875 = pneg %p70
        $region118: #{tpu_custom_call.1} parent=115 // pred_check_branch
          %877 = sbr.rel (%p875) target = $region120
        $region119: #{tpu_custom_call.1} parent=115 // pred_region
          %s878 = sand.u32 %s60, 1
          %s879 = scalar_lea.sflag [#allocation4], %s878
          %s880 = sand.u32 %s60, 1
          %s881 = smul.addr %s880, 24
          %s882 = scalar_lea.vmem [#allocation3], %s881
          %s883 = smul.u32 3, %s50
          %s885 = ssub.s32 384, 384
          %886 = vsyncadd %s879, %s885
          %s887 = smul.addr %s883, 128
          %s888 = scalar_lea.hbm %s0, %s887
          %s889 = sshll.u32 %s882, 4
          %s890 = int_to_ptr.vmem [resolvable:$true] %s889
          %895 = dma.hbm_to_vmem [thread:$0]  %s888, 384, %s890, %s879, 128, 128, 8
        $region120: #{tpu_custom_call.1} parent=115 // pred_fallthru
          _
      $region116: #{tpu_custom_call.1} parent=5 // pred_fallthru
        _
      %p896 = scmp.le.s32.totalorder 1, %s50
      %p897 = scmp.lt.s32.totalorder %s50, 3
      %p898 = pnand %p896, %p897
      %p899 = pneg %p898
      // Predicated region
      $region121: #{tpu_custom_call.1} parent=5 // pred_check
        _
      $region122: #{tpu_custom_call.1} parent=5 // pred_check_branch
        %901 = sbr.rel (%p898) target = $region124
      $region123: #{tpu_custom_call.1} parent=5 // pred_region
        %s902 = ssub.s32 %s50, 1
        %s903 = sand.u32 %s63, 1
        %s904 = scalar_lea.sflag [#allocation4], %s903
        %s905 = sand.u32 %s63, 1
        %s906 = smul.addr %s905, 24
        %s907 = scalar_lea.vmem [#allocation3], %s906
        // Predicated region
        $region125: #{tpu_custom_call.1} parent=123 // pred_check
          %p908 = pneg %p76
        $region126: #{tpu_custom_call.1} parent=123 // pred_check_branch
          %910 = sbr.rel (%p908) target = $region128
        $region127: #{tpu_custom_call.1} parent=123 // pred_region
          %911 = dma.done %s904, 384
        $region128: #{tpu_custom_call.1} parent=123 // pred_fallthru
          _
        // Predicated region
        $region129: #{tpu_custom_call.1} parent=123 // pred_check
          %p912 = pneg %p97
        $region130: #{tpu_custom_call.1} parent=123 // pred_check_branch
          %914 = sbr.rel (%p912) target = $region132
        $region131: #{tpu_custom_call.1} parent=123 // pred_region
          %915 = dma.done [#allocation7], 192
        $region132: #{tpu_custom_call.1} parent=123 // pred_fallthru
          _
        // Predicated region
        $region133: #{tpu_custom_call.1} parent=123 // pred_check
          %p916 = pneg %p118
        $region134: #{tpu_custom_call.1} parent=123 // pred_check_branch
          %918 = sbr.rel (%p916) target = $region136
        $region135: #{tpu_custom_call.1} parent=123 // pred_region
          %919 = dma.done [#allocation7], 384
        $region136: #{tpu_custom_call.1} parent=123 // pred_fallthru
          _
        // Predicated region
        $region137: #{tpu_custom_call.1} parent=123 // pred_check
          %p920 = pneg %p139
        $region138: #{tpu_custom_call.1} parent=123 // pred_check_branch
          %922 = sbr.rel (%p920) target = $region140
        $region139: #{tpu_custom_call.1} parent=123 // pred_region
          %923 = dma.done [#allocation10], 128
        $region140: #{tpu_custom_call.1} parent=123 // pred_fallthru
          _
        // Predicated region
        $region141: #{tpu_custom_call.1} parent=123 // pred_check
          %p924 = pneg %p160
        $region142: #{tpu_custom_call.1} parent=123 // pred_check_branch
          %926 = sbr.rel (%p924) target = $region144
        $region143: #{tpu_custom_call.1} parent=123 // pred_region
          %927 = dma.done [#allocation10], 1024
        $region144: #{tpu_custom_call.1} parent=123 // pred_fallthru
          _
        // Predicated region
        $region145: #{tpu_custom_call.1} parent=123 // pred_check
          %p928 = pneg %p181
        $region146: #{tpu_custom_call.1} parent=123 // pred_check_branch
          %930 = sbr.rel (%p928) target = $region148
        $region147: #{tpu_custom_call.1} parent=123 // pred_region
          %931 = dma.done [#allocation13], 1024
        $region148: #{tpu_custom_call.1} parent=123 // pred_fallthru
          _
        // Predicated region
        $region149: #{tpu_custom_call.1} parent=123 // pred_check
          %p932 = pneg %p202
        $region150: #{tpu_custom_call.1} parent=123 // pred_check_branch
          %934 = sbr.rel (%p932) target = $region152
        $region151: #{tpu_custom_call.1} parent=123 // pred_region
          %935 = dma.done [#allocation13], 3072
        $region152: #{tpu_custom_call.1} parent=123 // pred_fallthru
          _
        // Predicated region
        $region153: #{tpu_custom_call.1} parent=123 // pred_check
          %p936 = pneg %p244
        $region154: #{tpu_custom_call.1} parent=123 // pred_check_branch
          %938 = sbr.rel (%p936) target = $region156
        $region155: #{tpu_custom_call.1} parent=123 // pred_region
          %939 = dma.done [#allocation16], 1024
        $region156: #{tpu_custom_call.1} parent=123 // pred_fallthru
          _
        // Predicated region
        $region157: #{tpu_custom_call.1} parent=123 // pred_check
          %p940 = pneg %p286
        $region158: #{tpu_custom_call.1} parent=123 // pred_check_branch
          %942 = sbr.rel (%p940) target = $region160
        $region159: #{tpu_custom_call.1} parent=123 // pred_region
          %943 = dma.done [#allocation16], 3072
        $region160: #{tpu_custom_call.1} parent=123 // pred_fallthru
          _
        // Predicated region
        $region161: #{tpu_custom_call.1} parent=123 // pred_check
          %p944 = pneg %p328
        $region162: #{tpu_custom_call.1} parent=123 // pred_check_branch
          %946 = sbr.rel (%p944) target = $region164
        $region163: #{tpu_custom_call.1} parent=123 // pred_region
          %947 = dma.done [#allocation19], 1024
        $region164: #{tpu_custom_call.1} parent=123 // pred_fallthru
          _
        // Predicated region
        $region165: #{tpu_custom_call.1} parent=123 // pred_check
          %p948 = pneg %p370
        $region166: #{tpu_custom_call.1} parent=123 // pred_check_branch
          %950 = sbr.rel (%p948) target = $region168
        $region167: #{tpu_custom_call.1} parent=123 // pred_region
          %951 = dma.done [#allocation19], 3072
        $region168: #{tpu_custom_call.1} parent=123 // pred_fallthru
          _
        // Predicated region
        $region169: #{tpu_custom_call.1} parent=123 // pred_check
          %p952 = pneg %p412
        $region170: #{tpu_custom_call.1} parent=123 // pred_check_branch
          %954 = sbr.rel (%p952) target = $region172
        $region171: #{tpu_custom_call.1} parent=123 // pred_region
          %955 = dma.done [#allocation22], 1024
        $region172: #{tpu_custom_call.1} parent=123 // pred_fallthru
          _
        // Predicated region
        $region173: #{tpu_custom_call.1} parent=123 // pred_check
          %p956 = pneg %p496
        $region174: #{tpu_custom_call.1} parent=123 // pred_check_branch
          %958 = sbr.rel (%p956) target = $region176
        $region175: #{tpu_custom_call.1} parent=123 // pred_region
          %959 = dma.done [#allocation22], 1024
        $region176: #{tpu_custom_call.1} parent=123 // pred_fallthru
          _
        // Predicated region
        $region177: #{tpu_custom_call.1} parent=123 // pred_check
          %p960 = pneg %p580
        $region178: #{tpu_custom_call.1} parent=123 // pred_check_branch
          %962 = sbr.rel (%p960) target = $region180
        $region179: #{tpu_custom_call.1} parent=123 // pred_region
          %963 = dma.done [#allocation25], 1024
        $region180: #{tpu_custom_call.1} parent=123 // pred_fallthru
          _
        %s964 = sand.u32 %s63, 1
        %s965 = scalar_lea.sflag [#allocation4], %s964
        %s966 = sand.u32 %s63, 1
        %s967 = smul.addr %s966, 24
        %s968 = scalar_lea.vmem [#allocation3], %s967
        %p969 = pneg %p76
        %p970 = pneg %p73
        %p971 = pneg %p97
        %p972 = pneg %p94
        %p973 = pneg %p118
        %p974 = pneg %p115
        %p975 = pneg %p139
        %p976 = pneg %p136
        %p977 = pneg %p160
        %p978 = pneg %p157
        %p979 = pneg %p181
        %p980 = pneg %p178
        %p981 = pneg %p202
        %p982 = pneg %p199
        %p983 = pneg %p223
        %p984 = pneg %p220
        %p985 = pneg %p244
        %p986 = pneg %p241
        %p987 = pneg %p265
        %p988 = pneg %p262
        %p989 = pneg %p286
        %p990 = pneg %p283
        %p991 = pneg %p307
        %p992 = pneg %p304
        %p993 = pneg %p328
        %p994 = pneg %p325
        %p995 = pneg %p349
        %p996 = pneg %p346
        %p997 = pneg %p370
        %p998 = pneg %p367
        %p999 = pneg %p391
        %p1000 = pneg %p388
        %p1001 = pneg %p412
        %p1002 = pneg %p409
        %p1003 = pneg %p433
        %p1004 = pneg %p430
        %p1005 = pneg %p454
        %p1006 = pneg %p451
        %p1007 = pneg %p475
        %p1008 = pneg %p472
        %p1009 = pneg %p496
        %p1010 = pneg %p493
        %p1011 = pneg %p517
        %p1012 = pneg %p514
        %p1013 = pneg %p538
        %p1014 = pneg %p535
        %p1015 = pneg %p559
        %p1016 = pneg %p556
        %p1017 = pneg %p580
        %p1018 = pneg %p577
        %p1019 = pneg %p601
        %p1020 = pneg %p598
        %p1021 = pneg %p627
        %p1022 = pneg %p624
        %s1023 = sand.u32 %s614, 1
        %s1024 = scalar_lea.sflag [#allocation5], %s1023
        %s1025 = sand.u32 %s614, 1
        %s1026 = smul.addr %s1025, 24
        %s1027 = scalar_lea.vmem [#allocation26], %s1026
        %p1028 = pneg %p653
        %p1029 = pneg %p650
        %s1030 = sand.u32 %s640, 1
        %s1031 = scalar_lea.sflag [#allocation28], %s1030
        %s1032 = sand.u32 %s640, 1
        %s1033 = smul.addr %s1032, 8
        %s1034 = scalar_lea.vmem [#allocation27], %s1033
        %s1035 = smul.u32 3, %s55
        %s1036 = smul.u32 3, %s55
        %v1038 = vld [vmem:[%s907] sm:$0xff]
        %v1039 = vld [vmem:[%s907 + $0x8] sm:$0xff]
        %v1040 = vld [vmem:[%s907 + $0x10] sm:$0xff]
        %v1041 = vld [vmem:[#allocation6] sm:$0xf]
        %v1042 = vld [vmem:[#allocation6 + $0x4] sm:$0xf]
        %v1043 = vld [vmem:[#allocation6 + $0x8] sm:$0xf]
        %v1044 = vld [vmem:[#allocation8] sm:$0xff]
        %v1045 = vld [vmem:[#allocation8 + $0x8] sm:$0xff]
        %v1046 = vld [vmem:[#allocation8 + $0x10] sm:$0xff]
        %v1047 = vpack.c.bf16 %v1039, %v1038
        %v1048 = vpack.c.bf16 %v1040, %v1040
        %v1049 = vld [vmem:[#allocation11] sm:$0xf]
        %v1050 = vld [vmem:[#allocation11 + $0x4] sm:$0xf]
        %v1051 = vld [vmem:[#allocation11 + $0x8] sm:$0xf]
        %v1052 = vld [vmem:[#allocation11 + $0xc] sm:$0xf]
        %v1053 = vld [vmem:[#allocation11 + $0x10] sm:$0xf]
        %v1054 = vld [vmem:[#allocation11 + $0x14] sm:$0xf]
        %v1055 = vld [vmem:[#allocation11 + $0x18] sm:$0xf]
        %v1056 = vld [vmem:[#allocation11 + $0x1c] sm:$0xf]
        %v1057 = vld [vmem:[#allocation11 + $0x20] sm:$0xf]
        %v1058 = vld [vmem:[#allocation11 + $0x24] sm:$0xf]
        %v1059 = vld [vmem:[#allocation11 + $0x28] sm:$0xf]
        %v1060 = vld [vmem:[#allocation11 + $0x2c] sm:$0xf]
        %v1061 = vld [vmem:[#allocation11 + $0x30] sm:$0xf]
        %v1062 = vld [vmem:[#allocation11 + $0x34] sm:$0xf]
        %v1063 = vld [vmem:[#allocation11 + $0x38] sm:$0xf]
        %v1064 = vld [vmem:[#allocation11 + $0x3c] sm:$0xf]
        %v1081 = vunpack.c.l.b16 %v1049
        %v1082 = vunpack.c.l.b16 %v1050
        %v1083 = vunpack.c.l.b16 %v1051
        %v1084 = vunpack.c.l.b16 %v1052
        %v1085 = vunpack.c.l.b16 %v1053
        %v1086 = vunpack.c.l.b16 %v1054
        %v1087 = vunpack.c.l.b16 %v1055
        %v1088 = vunpack.c.l.b16 %v1056
        %v1089 = vunpack.c.l.b16 %v1057
        %v1090 = vunpack.c.l.b16 %v1058
        %v1091 = vunpack.c.l.b16 %v1059
        %v1092 = vunpack.c.l.b16 %v1060
        %v1093 = vunpack.c.l.b16 %v1061
        %v1094 = vunpack.c.l.b16 %v1062
        %v1095 = vunpack.c.l.b16 %v1063
        %v1096 = vunpack.c.l.b16 %v1064
        %v1097 = vpack.c.b16 %v1082, %v1081
        %v1098 = vpack.c.b16 %v1084, %v1083
        %v1099 = vpack.c.b16 %v1086, %v1085
        %v1100 = vpack.c.b16 %v1088, %v1087
        %v1101 = vpack.c.b16 %v1090, %v1089
        %v1102 = vpack.c.b16 %v1092, %v1091
        %v1103 = vpack.c.b16 %v1094, %v1093
        %v1104 = vpack.c.b16 %v1096, %v1095
        %1113 = vmatprep.subr.bf16.mxu0 0
        %1114 = vmatpush1.bf16.msra.mxu0 %v1104
        %1115 = vmatprep.subr.bf16.mxu0 0
        %1116 = vmatpush1.bf16.msra.mxu0 %v1103
        %1117 = vmatprep.subr.bf16.mxu0 0
        %1118 = vmatpush1.bf16.msra.mxu0 %v1102
        %1119 = vmatprep.subr.bf16.mxu0 0
        %1120 = vmatpush1.bf16.msra.mxu0 %v1101
        %1121 = vmatprep.subr.bf16.mxu0 0
        %1122 = vmatpush1.bf16.msra.mxu0 %v1100
        %1123 = vmatprep.subr.bf16.mxu0 0
        %1124 = vmatpush1.bf16.msra.mxu0 %v1099
        %1125 = vmatprep.subr.bf16.mxu0 0
        %1126 = vmatpush1.bf16.msra.mxu0 %v1098
        %1127 = vmatprep.subr.bf16.mxu0 0
        %1128 = vmatpush1.bf16.msra.mxu0 %v1097
        %1129 = vmatprep.subr.bf16.mxu0 0
        %1130 = vmatpush2.bf16.msra.mxu0 0
        %1131 = vmatprep.subr.bf16.mxu0 0
        %1132 = vmatpush2.bf16.msra.mxu0 0
        %1133 = vmatprep.subr.bf16.mxu0 0
        %1134 = vmatpush2.bf16.msra.mxu0 0
        %1135 = vmatprep.subr.bf16.mxu0 0
        %1136 = vmatpush2.bf16.msra.mxu0 0
        %1137 = vmatprep.subr.bf16.mxu0 0
        %1138 = vmatpush2.bf16.msra.mxu0 0
        %1139 = vmatprep.subr.bf16.mxu0 0
        %1140 = vmatpush2.bf16.msra.mxu0 0
        %1141 = vmatprep.subr.bf16.mxu0 0
        %1142 = vmatpush2.bf16.msra.mxu0 0
        %1143 = vmatprep.subr.bf16.mxu0 0
        %1144 = vmatpush2.bf16.msra.mxu0 0
        %1145 = vmatprep.mubr.bf16.mxu0 0
        %1146 = vmatmul.mubr.bf16.gmra.mxu0 %v1047
        %v1147 = vpop.f32.mrf.mxu0
        %v1148 = vadd.f32 0.0, %v1147
        %v1149 = vpop.f32.mrf.mxu0
        %v1150 = vpop.f32.mrf.mxu0
        %v1151 = vadd.f32 0.0, %v1150
        %v1152 = vpop.f32.mrf.mxu0
        %1153 = vmatprep.mubr.bf16.mxu0 0
        %1154 = vmatmul.mubr.bf16.gmra.mxu0 %v1048
        %v1155 = vpop.f32.mrf.mxu0
        %v1156 = vadd.f32 0.0, %v1155
        %v1157 = vpop.f32.mrf.mxu0
        %v1158 = vpop.f32.mrf.mxu0
        %v1159 = vpop.f32.mrf.mxu0
        %1160 = vdwg.mxu0
        %v1161 = vpack.c.bf16 %v1151, %v1148
        %v1162 = vpack.c.bf16 %v1156, %v1156
        %v1166 = vunpack.c.l.b16 %v1041
        %v1167 = vunpack.c.l.b16 %v1042
        %v1168 = vunpack.c.l.b16 %v1043
        %v1169 = vpack.c.b16 %v1167, %v1166
        %v1170 = vpack.c.b16 %v1168, %v1168
        %vm1171 = vcmask 195584
        %v1173 = vsel %vm1171, %v1169, 0
        %v1176 = vsel %vm1171, %v1170, 0
        %vm1178 = vcmask 1043456
        %v1180 = vsel %vm1178, %v1162, 0
        %1182 = vmatprep.subr.bf16.mxu0 0
        %1183 = vmatpush1.bf16.msra.mxu0 0
        %1184 = vmatprep.subr.bf16.mxu0 0
        %1185 = vmatpush1.bf16.msra.mxu0 0
        %1186 = vmatprep.subr.bf16.mxu0 0
        %1187 = vmatpush1.bf16.msra.mxu0 0
        %1188 = vmatprep.subr.bf16.mxu0 0
        %1189 = vmatpush1.bf16.msra.mxu0 0
        %1190 = vmatprep.subr.bf16.mxu0 0
        %1191 = vmatpush1.bf16.msra.mxu0 0
        %1192 = vmatprep.subr.bf16.mxu0 0
        %1193 = vmatpush1.bf16.msra.mxu0 0
        %1194 = vmatprep.subr.bf16.mxu0 0
        %1195 = vmatpush1.bf16.msra.mxu0 %v1180
        %1196 = vmatprep.subr.bf16.mxu0 0
        %1197 = vmatpush1.bf16.msra.mxu0 %v1161
        %1198 = vmatprep.subr.bf16.mxu0 0
        %1199 = vmatpush2.bf16.msra.mxu0 0
        %1200 = vmatprep.subr.bf16.mxu0 0
        %1201 = vmatpush2.bf16.msra.mxu0 0
        %1202 = vmatprep.subr.bf16.mxu0 0
        %1203 = vmatpush2.bf16.msra.mxu0 0
        %1204 = vmatprep.subr.bf16.mxu0 0
        %1205 = vmatpush2.bf16.msra.mxu0 0
        %1206 = vmatprep.subr.bf16.mxu0 0
        %1207 = vmatpush2.bf16.msra.mxu0 0
        %1208 = vmatprep.subr.bf16.mxu0 0
        %1209 = vmatpush2.bf16.msra.mxu0 0
        %1210 = vmatprep.subr.bf16.mxu0 0
        %1211 = vmatpush2.bf16.msra.mxu0 0
        %1212 = vmatprep.subr.bf16.mxu0 0
        %1213 = vmatpush2.bf16.msra.mxu0 0
        %1214 = vmatprep.mubr.bf16.mxu0 0
        %1215 = vmatmul.mubr.bf16.gmra.mxu0 %v1173
        %v1216 = vpop.f32.mrf.mxu0
        %v1217 = vadd.f32 0.0, %v1216
        %v1218 = vpop.f32.mrf.mxu0
        %v1219 = vpop.f32.mrf.mxu0
        %v1220 = vadd.f32 0.0, %v1219
        %v1221 = vpop.f32.mrf.mxu0
        %1222 = vmatprep.mubr.bf16.mxu0 0
        %1223 = vmatmul.mubr.bf16.gmra.mxu0 %v1176
        %v1224 = vpop.f32.mrf.mxu0
        %v1225 = vadd.f32 0.0, %v1224
        %v1226 = vpop.f32.mrf.mxu0
        %v1227 = vpop.f32.mrf.mxu0
        %v1228 = vpop.f32.mrf.mxu0
        %1229 = vdwg.mxu0
        %v1230 = vpack.c.bf16 %v1220, %v1217
        %v1231 = vpack.c.bf16 %v1225, %v1225
        %v1232 = vld [vmem:[#allocation14] sm:$0xff]
        %v1233 = vld [vmem:[#allocation14 + $0x8] sm:$0xf]
        %v1234 = vld [vmem:[#allocation14 + $0xc] sm:$0xff]
        %v1235 = vld [vmem:[#allocation14 + $0x14] sm:$0xf]
        %v1236 = vld [vmem:[#allocation14 + $0x18] sm:$0xff]
        %v1237 = vld [vmem:[#allocation14 + $0x20] sm:$0xf]
        %v1238 = vld [vmem:[#allocation14 + $0x24] sm:$0xff]
        %v1239 = vld [vmem:[#allocation14 + $0x2c] sm:$0xf]
        %v1240 = vld [vmem:[#allocation14 + $0x30] sm:$0xff]
        %v1241 = vld [vmem:[#allocation14 + $0x38] sm:$0xf]
        %v1242 = vld [vmem:[#allocation14 + $0x3c] sm:$0xff]
        %v1243 = vld [vmem:[#allocation14 + $0x44] sm:$0xf]
        %v1244 = vld [vmem:[#allocation14 + $0x48] sm:$0xff]
        %v1245 = vld [vmem:[#allocation14 + $0x50] sm:$0xf]
        %v1246 = vld [vmem:[#allocation14 + $0x54] sm:$0xff]
        %v1247 = vld [vmem:[#allocation14 + $0x5c] sm:$0xf]
        %v1248 = vld [vmem:[#allocation14 + $0x60] sm:$0xff]
        %v1249 = vld [vmem:[#allocation14 + $0x68] sm:$0xf]
        %v1250 = vld [vmem:[#allocation14 + $0x6c] sm:$0xff]
        %v1251 = vld [vmem:[#allocation14 + $0x74] sm:$0xf]
        %v1252 = vld [vmem:[#allocation14 + $0x78] sm:$0xff]
        %v1253 = vld [vmem:[#allocation14 + $0x80] sm:$0xf]
        %v1254 = vld [vmem:[#allocation14 + $0x84] sm:$0xff]
        %v1255 = vld [vmem:[#allocation14 + $0x8c] sm:$0xf]
        %v1256 = vld [vmem:[#allocation14 + $0x90] sm:$0xff]
        %v1257 = vld [vmem:[#allocation14 + $0x98] sm:$0xf]
        %v1258 = vld [vmem:[#allocation14 + $0x9c] sm:$0xff]
        %v1259 = vld [vmem:[#allocation14 + $0xa4] sm:$0xf]
        %v1260 = vld [vmem:[#allocation14 + $0xa8] sm:$0xff]
        %v1261 = vld [vmem:[#allocation14 + $0xb0] sm:$0xf]
        %v1262 = vld [vmem:[#allocation14 + $0xb4] sm:$0xff]
        %v1263 = vld [vmem:[#allocation14 + $0xbc] sm:$0xf]
        %v1264 = vld [vmem:[%s7] sm:$0x7]
        %v1266 = vlaneseq
        %v1267 = vshrl.u32 %v1266, 7
        %v1268 = vsub.s32 0, %v1267
        %v1269 = vrot.slane %v1264, %v1268
        %v1270 = vlaneseq
        %v1271 = vshrl.u32 %v1270, 7
        %v1272 = vsub.s32 1, %v1271
        %v1273 = vrot.slane %v1264, %v1272
        %v1274 = vlaneseq
        %v1275 = vshrl.u32 %v1274, 7
        %v1276 = vsub.s32 2, %v1275
        %v1277 = vrot.slane %v1264, %v1276
        %v1313 = vunpack.c.l.b16 %v1232
        %v1314 = vunpack.c.h.b16 %v1232
        %v1315 = vunpack.c.l.b16 %v1233
        %v1316 = vunpack.c.l.b16 %v1234
        %v1317 = vunpack.c.h.b16 %v1234
        %v1318 = vunpack.c.l.b16 %v1235
        %v1319 = vunpack.c.l.b16 %v1236
        %v1320 = vunpack.c.h.b16 %v1236
        %v1321 = vunpack.c.l.b16 %v1237
        %v1322 = vunpack.c.l.b16 %v1238
        %v1323 = vunpack.c.h.b16 %v1238
        %v1324 = vunpack.c.l.b16 %v1239
        %v1325 = vunpack.c.l.b16 %v1240
        %v1326 = vunpack.c.h.b16 %v1240
        %v1327 = vunpack.c.l.b16 %v1241
        %v1328 = vunpack.c.l.b16 %v1242
        %v1329 = vunpack.c.h.b16 %v1242
        %v1330 = vunpack.c.l.b16 %v1243
        %v1331 = vunpack.c.l.b16 %v1244
        %v1332 = vunpack.c.h.b16 %v1244
        %v1333 = vunpack.c.l.b16 %v1245
        %v1334 = vunpack.c.l.b16 %v1246
        %v1335 = vunpack.c.h.b16 %v1246
        %v1336 = vunpack.c.l.b16 %v1247
        %v1337 = vunpack.c.l.b16 %v1248
        %v1338 = vunpack.c.h.b16 %v1248
        %v1339 = vunpack.c.l.b16 %v1249
        %v1340 = vunpack.c.l.b16 %v1250
        %v1341 = vunpack.c.h.b16 %v1250
        %v1342 = vunpack.c.l.b16 %v1251
        %v1343 = vunpack.c.l.b16 %v1252
        %v1344 = vunpack.c.h.b16 %v1252
        %v1345 = vunpack.c.l.b16 %v1253
        %v1346 = vunpack.c.l.b16 %v1254
        %v1347 = vunpack.c.h.b16 %v1254
        %v1348 = vunpack.c.l.b16 %v1255
        %v1349 = vunpack.c.l.b16 %v1256
        %v1350 = vunpack.c.h.b16 %v1256
        %v1351 = vunpack.c.l.b16 %v1257
        %v1352 = vunpack.c.l.b16 %v1258
        %v1353 = vunpack.c.h.b16 %v1258
        %v1354 = vunpack.c.l.b16 %v1259
        %v1355 = vunpack.c.l.b16 %v1260
        %v1356 = vunpack.c.h.b16 %v1260
        %v1357 = vunpack.c.l.b16 %v1261
        %v1358 = vunpack.c.l.b16 %v1262
        %v1359 = vunpack.c.h.b16 %v1262
        %v1360 = vunpack.c.l.b16 %v1263
        %v1361 = vpack.c.b16 %v1316, %v1313
        %v1362 = vpack.c.b16 %v1317, %v1314
        %v1363 = vpack.c.b16 %v1318, %v1315
        %v1364 = vpack.c.b16 %v1322, %v1319
        %v1365 = vpack.c.b16 %v1323, %v1320
        %v1366 = vpack.c.b16 %v1324, %v1321
        %v1367 = vpack.c.b16 %v1328, %v1325
        %v1368 = vpack.c.b16 %v1329, %v1326
        %v1369 = vpack.c.b16 %v1330, %v1327
        %v1370 = vpack.c.b16 %v1334, %v1331
        %v1371 = vpack.c.b16 %v1335, %v1332
        %v1372 = vpack.c.b16 %v1336, %v1333
        %v1373 = vpack.c.b16 %v1340, %v1337
        %v1374 = vpack.c.b16 %v1341, %v1338
        %v1375 = vpack.c.b16 %v1342, %v1339
        %v1376 = vpack.c.b16 %v1346, %v1343
        %v1377 = vpack.c.b16 %v1347, %v1344
        %v1378 = vpack.c.b16 %v1348, %v1345
        %v1379 = vpack.c.b16 %v1352, %v1349
        %v1380 = vpack.c.b16 %v1353, %v1350
        %v1381 = vpack.c.b16 %v1354, %v1351
        %v1382 = vpack.c.b16 %v1358, %v1355
        %v1383 = vpack.c.b16 %v1359, %v1356
        %v1384 = vpack.c.b16 %v1360, %v1357
        %1409 = vmatprep.subr.bf16.mxu0 %v1383
        %1410 = vmatpush1.bf16.msra.mxu0 %v1382
        %1411 = vmatprep.subr.bf16.mxu0 %v1380
        %1412 = vmatpush1.bf16.msra.mxu0 %v1379
        %1413 = vmatprep.subr.bf16.mxu0 %v1377
        %1414 = vmatpush1.bf16.msra.mxu0 %v1376
        %1415 = vmatprep.subr.bf16.mxu0 %v1374
        %1416 = vmatpush1.bf16.msra.mxu0 %v1373
        %1417 = vmatprep.subr.bf16.mxu0 %v1371
        %1418 = vmatpush1.bf16.msra.mxu0 %v1370
        %1419 = vmatprep.subr.bf16.mxu0 %v1368
        %1420 = vmatpush1.bf16.msra.mxu0 %v1367
        %1421 = vmatprep.subr.bf16.mxu0 %v1365
        %1422 = vmatpush1.bf16.msra.mxu0 %v1364
        %1423 = vmatprep.subr.bf16.mxu0 %v1362
        %1424 = vmatpush1.bf16.msra.mxu0 %v1361
        %1425 = vmatprep.subr.bf16.mxu0 0
        %1426 = vmatpush2.bf16.msra.mxu0 0
        %1427 = vmatprep.subr.bf16.mxu0 0
        %1428 = vmatpush2.bf16.msra.mxu0 0
        %1429 = vmatprep.subr.bf16.mxu0 0
        %1430 = vmatpush2.bf16.msra.mxu0 0
        %1431 = vmatprep.subr.bf16.mxu0 0
        %1432 = vmatpush2.bf16.msra.mxu0 0
        %1433 = vmatprep.subr.bf16.mxu0 0
        %1434 = vmatpush2.bf16.msra.mxu0 0
        %1435 = vmatprep.subr.bf16.mxu0 0
        %1436 = vmatpush2.bf16.msra.mxu0 0
        %1437 = vmatprep.subr.bf16.mxu0 0
        %1438 = vmatpush2.bf16.msra.mxu0 0
        %1439 = vmatprep.subr.bf16.mxu0 0
        %1440 = vmatpush2.bf16.msra.mxu0 0
        %1441 = vmatprep.mubr.bf16.mxu0 0
        %1442 = vmatmul.mubr.bf16.gmra.mxu0 %v1230
        %v1443 = vpop.f32.mrf.mxu0
        %v1444 = vadd.f32 %v1269, %v1443
        %v1445 = vpop.f32.mrf.mxu0
        %v1446 = vadd.f32 %v1273, %v1445
        %v1447 = vpop.f32.mrf.mxu0
        %v1448 = vadd.f32 %v1269, %v1447
        %v1449 = vpop.f32.mrf.mxu0
        %v1450 = vadd.f32 %v1273, %v1449
        %1451 = vmatprep.mubr.bf16.mxu0 0
        %1452 = vmatmul.mubr.bf16.gmra.mxu0 %v1231
        %v1453 = vpop.f32.mrf.mxu0
        %v1454 = vadd.f32 %v1269, %v1453
        %v1455 = vpop.f32.mrf.mxu0
        %v1456 = vadd.f32 %v1273, %v1455
        %v1457 = vpop.f32.mrf.mxu0
        %v1458 = vpop.f32.mrf.mxu0
        %1459 = vdwg.mxu0
        %1460 = vmatprep.subr.bf16.mxu0 0
        %1461 = vmatpush1.bf16.msra.mxu0 %v1384
        %1462 = vmatprep.subr.bf16.mxu0 0
        %1463 = vmatpush1.bf16.msra.mxu0 %v1381
        %1464 = vmatprep.subr.bf16.mxu0 0
        %1465 = vmatpush1.bf16.msra.mxu0 %v1378
        %1466 = vmatprep.subr.bf16.mxu0 0
        %1467 = vmatpush1.bf16.msra.mxu0 %v1375
        %1468 = vmatprep.subr.bf16.mxu0 0
        %1469 = vmatpush1.bf16.msra.mxu0 %v1372
        %1470 = vmatprep.subr.bf16.mxu0 0
        %1471 = vmatpush1.bf16.msra.mxu0 %v1369
        %1472 = vmatprep.subr.bf16.mxu0 0
        %1473 = vmatpush1.bf16.msra.mxu0 %v1366
        %1474 = vmatprep.subr.bf16.mxu0 0
        %1475 = vmatpush1.bf16.msra.mxu0 %v1363
        %1476 = vmatprep.subr.bf16.mxu0 0
        %1477 = vmatpush2.bf16.msra.mxu0 0
        %1478 = vmatprep.subr.bf16.mxu0 0
        %1479 = vmatpush2.bf16.msra.mxu0 0
        %1480 = vmatprep.subr.bf16.mxu0 0
        %1481 = vmatpush2.bf16.msra.mxu0 0
        %1482 = vmatprep.subr.bf16.mxu0 0
        %1483 = vmatpush2.bf16.msra.mxu0 0
        %1484 = vmatprep.subr.bf16.mxu0 0
        %1485 = vmatpush2.bf16.msra.mxu0 0
        %1486 = vmatprep.subr.bf16.mxu0 0
        %1487 = vmatpush2.bf16.msra.mxu0 0
        %1488 = vmatprep.subr.bf16.mxu0 0
        %1489 = vmatpush2.bf16.msra.mxu0 0
        %1490 = vmatprep.subr.bf16.mxu0 0
        %1491 = vmatpush2.bf16.msra.mxu0 0
        %1492 = vmatprep.mubr.bf16.mxu0 0
        %1493 = vmatmul.mubr.bf16.gmra.mxu0 %v1230
        %v1494 = vpop.f32.mrf.mxu0
        %v1495 = vadd.f32 %v1277, %v1494
        %v1496 = vpop.f32.mrf.mxu0
        %v1497 = vpop.f32.mrf.mxu0
        %v1498 = vadd.f32 %v1277, %v1497
        %v1499 = vpop.f32.mrf.mxu0
        %1500 = vmatprep.mubr.bf16.mxu0 0
        %1501 = vmatmul.mubr.bf16.gmra.mxu0 %v1231
        %v1502 = vpop.f32.mrf.mxu0
        %v1503 = vadd.f32 %v1277, %v1502
        %v1504 = vpop.f32.mrf.mxu0
        %v1505 = vpop.f32.mrf.mxu0
        %v1506 = vpop.f32.mrf.mxu0
        %1507 = vdwg.mxu0
        %v1508 = vpack.c.bf16 %v1448, %v1444
        %v1509 = vpack.c.bf16 %v1454, %v1454
        %v1510 = vpack.c.bf16 %v1450, %v1446
        %v1511 = vpack.c.bf16 %v1456, %v1456
        %v1512 = vpack.c.bf16 %v1498, %v1495
        %v1513 = vpack.c.bf16 %v1503, %v1503
        %vm1514 = vcmask 261120
        %v1516 = vsel %vm1514, %v1508, 0
        %v1519 = vsel %vm1514, %v1509, 0
        %v1522 = vsel %vm1514, %v1510, 0
        %v1525 = vsel %vm1514, %v1511, 0
        %1527 = vmatprep.subr.bf16.mxu0 0
        %1528 = vmatpush1.bf16.xpose.msra.mxu0 0
        %1529 = vmatprep.subr.bf16.mxu0 0
        %1530 = vmatpush1.bf16.xpose.msra.mxu0 0
        %1531 = vmatprep.subr.bf16.mxu0 0
        %1532 = vmatpush1.bf16.xpose.msra.mxu0 0
        %1533 = vmatprep.subr.bf16.mxu0 0
        %1534 = vmatpush1.bf16.xpose.msra.mxu0 0
        %1535 = vmatprep.subr.bf16.mxu0 0
        %1536 = vmatpush1.bf16.xpose.msra.mxu0 0
        %1537 = vmatprep.subr.bf16.mxu0 0
        %1538 = vmatpush1.bf16.xpose.msra.mxu0 0
        %1539 = vmatprep.subr.bf16.mxu0 0
        %1540 = vmatpush1.bf16.xpose.msra.mxu0 %v1525
        %1541 = vmatprep.subr.bf16.mxu0 0
        %1542 = vmatpush1.bf16.xpose.msra.mxu0 %v1522
        %1543 = vmatprep.subr.bf16.mxu0 0
        %1544 = vmatpush2.bf16.xpose.msra.mxu0 0
        %1545 = vmatprep.subr.bf16.mxu0 0
        %1546 = vmatpush2.bf16.xpose.msra.mxu0 0
        %1547 = vmatprep.subr.bf16.mxu0 0
        %1548 = vmatpush2.bf16.xpose.msra.mxu0 0
        %1549 = vmatprep.subr.bf16.mxu0 0
        %1550 = vmatpush2.bf16.xpose.msra.mxu0 0
        %1551 = vmatprep.subr.bf16.mxu0 0
        %1552 = vmatpush2.bf16.xpose.msra.mxu0 0
        %1553 = vmatprep.subr.bf16.mxu0 0
        %1554 = vmatpush2.bf16.xpose.msra.mxu0 0
        %1555 = vmatprep.subr.bf16.mxu0 0
        %1556 = vmatpush2.bf16.xpose.msra.mxu0 0
        %1557 = vmatprep.subr.bf16.mxu0 0
        %1558 = vmatpush2.bf16.xpose.msra.mxu0 0
        %1559 = vmatprep.mubr.bf16.mxu0 0
        %1560 = vmatmul.mubr.bf16.gmra.mxu0 %v1516
        %v1561 = vpop.f32.mrf.mxu0
        %v1562 = vadd.f32 0.0, %v1561
        %v1563 = vpop.f32.mrf.mxu0
        %v1564 = vpop.f32.mrf.mxu0
        %v1565 = vadd.f32 0.0, %v1564
        %v1566 = vpop.f32.mrf.mxu0
        %1567 = vmatprep.mubr.bf16.mxu0 0
        %1568 = vmatmul.mubr.bf16.gmra.mxu0 %v1519
        %v1569 = vpop.f32.mrf.mxu0
        %v1570 = vadd.f32 0.0, %v1569
        %v1571 = vpop.f32.mrf.mxu0
        %v1572 = vpop.f32.mrf.mxu0
        %v1573 = vpop.f32.mrf.mxu0
        %1574 = vdwg.mxu0
        %v1575 = vmul.f32 %v1562, 0.17677669
        %v1576 = vmul.f32 %v1565, 0.17677669
        %v1577 = vmul.f32 %v1570, 0.17677669
        %v1578 = vadd.f32 %v1575, %v1044
        %v1579 = vadd.f32 %v1576, %v1045
        %v1580 = vadd.f32 %v1577, %v1046
        %v1581 = vsel %vm1171, %v1578, -inf
        %1582 = vmax.xlane.f32.xlu0 %v1581
        %v1583 = vpop.xlane.xlu0 %1582
        %v1584 = vsel %vm1171, %v1579, -inf
        %1585 = vmax.xlane.f32.xlu0 %v1584
        %v1586 = vpop.xlane.xlu0 %1585
        %v1587 = vsel %vm1171, %v1580, -inf
        %1588 = vmax.xlane.f32.xlu0 %v1587
        %v1589 = vpop.xlane.xlu0 %1588
        %v1590 = vsub.f32 %v1578, %v1583
        %v1591 = vsub.f32 %v1579, %v1586
        %v1592 = vsub.f32 %v1580, %v1589
        %v1593 = vmul.f32 %v1590, 1.442695
        %v1594 = vpow.pop %v1593
        %v1595 = vmul.f32 %v1591, 1.442695
        %v1596 = vpow.pop %v1595
        %v1597 = vmul.f32 %v1592, 1.442695
        %v1598 = vpow.pop %v1597
        %v1599 = vsel %vm1171, %v1594, 0.0
        %1600 = vadd.xlane.f32.xlu0 %v1599
        %v1601 = vpop.xlane.xlu0 %1600
        %v1602 = vsel %vm1171, %v1596, 0.0
        %1603 = vadd.xlane.f32.xlu0 %v1602
        %v1604 = vpop.xlane.xlu0 %1603
        %v1605 = vsel %vm1171, %v1598, 0.0
        %1606 = vadd.xlane.f32.xlu0 %v1605
        %v1607 = vpop.xlane.xlu0 %1606
        %v1608 = vrcp.pop %v1601
        %v1609 = vmul.f32 %v1594, %v1608
        %v1610 = vrcp.pop %v1604
        %v1611 = vmul.f32 %v1596, %v1610
        %v1612 = vrcp.pop %v1607
        %v1613 = vmul.f32 %v1598, %v1612
        %v1614 = vpack.c.bf16 %v1611, %v1609
        %v1615 = vpack.c.bf16 %v1613, %v1613
        %v1617 = vsel %vm1171, %v1614, 0
        %v1620 = vsel %vm1171, %v1615, 0
        %v1623 = vsel %vm1178, %v1513, 0
        %1625 = vmatprep.subr.bf16.mxu0 0
        %1626 = vmatpush1.bf16.msra.mxu0 0
        %1627 = vmatprep.subr.bf16.mxu0 0
        %1628 = vmatpush1.bf16.msra.mxu0 0
        %1629 = vmatprep.subr.bf16.mxu0 0
        %1630 = vmatpush1.bf16.msra.mxu0 0
        %1631 = vmatprep.subr.bf16.mxu0 0
        %1632 = vmatpush1.bf16.msra.mxu0 0
        %1633 = vmatprep.subr.bf16.mxu0 0
        %1634 = vmatpush1.bf16.msra.mxu0 0
        %1635 = vmatprep.subr.bf16.mxu0 0
        %1636 = vmatpush1.bf16.msra.mxu0 0
        %1637 = vmatprep.subr.bf16.mxu0 0
        %1638 = vmatpush1.bf16.msra.mxu0 %v1623
        %1639 = vmatprep.subr.bf16.mxu0 0
        %1640 = vmatpush1.bf16.msra.mxu0 %v1512
        %1641 = vmatprep.subr.bf16.mxu0 0
        %1642 = vmatpush2.bf16.msra.mxu0 0
        %1643 = vmatprep.subr.bf16.mxu0 0
        %1644 = vmatpush2.bf16.msra.mxu0 0
        %1645 = vmatprep.subr.bf16.mxu0 0
        %1646 = vmatpush2.bf16.msra.mxu0 0
        %1647 = vmatprep.subr.bf16.mxu0 0
        %1648 = vmatpush2.bf16.msra.mxu0 0
        %1649 = vmatprep.subr.bf16.mxu0 0
        %1650 = vmatpush2.bf16.msra.mxu0 0
        %1651 = vmatprep.subr.bf16.mxu0 0
        %1652 = vmatpush2.bf16.msra.mxu0 0
        %1653 = vmatprep.subr.bf16.mxu0 0
        %1654 = vmatpush2.bf16.msra.mxu0 0
        %1655 = vmatprep.subr.bf16.mxu0 0
        %1656 = vmatpush2.bf16.msra.mxu0 0
        %1657 = vmatprep.mubr.bf16.mxu0 0
        %1658 = vmatmul.mubr.bf16.gmra.mxu0 %v1617
        %v1659 = vpop.f32.mrf.mxu0
        %v1660 = vadd.f32 0.0, %v1659
        %v1661 = vpop.f32.mrf.mxu0
        %v1662 = vpop.f32.mrf.mxu0
        %v1663 = vadd.f32 0.0, %v1662
        %v1664 = vpop.f32.mrf.mxu0
        %1665 = vmatprep.mubr.bf16.mxu0 0
        %1666 = vmatmul.mubr.bf16.gmra.mxu0 %v1620
        %v1667 = vpop.f32.mrf.mxu0
        %v1668 = vadd.f32 0.0, %v1667
        %v1669 = vpop.f32.mrf.mxu0
        %v1670 = vpop.f32.mrf.mxu0
        %v1671 = vpop.f32.mrf.mxu0
        %1672 = vdwg.mxu0
        %1673 = vst.msk [vmem:[#allocation2] sm:$0xff] %vm1514, %v1660
        %1674 = vst.msk [vmem:[#allocation2 + $0x8] sm:$0xff] %vm1514, %v1663
        %1675 = vst.msk [vmem:[#allocation2 + $0x10] sm:$0xff] %vm1514, %v1668
        %1678 = vrot.lane.b32.xlu0 %v1508, 96
        %v1679 = vpop.permute.xlu0 %1678
        %1680 = vrot.lane.b32.xlu0 %v1509, 96
        %v1681 = vpop.permute.xlu0 %1680
        %1684 = vrot.lane.b32.xlu0 %v1510, 96
        %v1685 = vpop.permute.xlu0 %1684
        %1686 = vrot.lane.b32.xlu0 %v1511, 96
        %v1687 = vpop.permute.xlu0 %1686
        %v1689 = vsel %vm1514, %v1679, 0
        %v1692 = vsel %vm1514, %v1681, 0
        %v1695 = vsel %vm1514, %v1685, 0
        %v1698 = vsel %vm1514, %v1687, 0
        %1700 = vmatprep.subr.bf16.mxu0 0
        %1701 = vmatpush1.bf16.xpose.msra.mxu0 0
        %1702 = vmatprep.subr.bf16.mxu0 0
        %1703 = vmatpush1.bf16.xpose.msra.mxu0 0
        %1704 = vmatprep.subr.bf16.mxu0 0
        %1705 = vmatpush1.bf16.xpose.msra.mxu0 0
        %1706 = vmatprep.subr.bf16.mxu0 0
        %1707 = vmatpush1.bf16.xpose.msra.mxu0 0
        %1708 = vmatprep.subr.bf16.mxu0 0
        %1709 = vmatpush1.bf16.xpose.msra.mxu0 0
        %1710 = vmatprep.subr.bf16.mxu0 0
        %1711 = vmatpush1.bf16.xpose.msra.mxu0 0
        %1712 = vmatprep.subr.bf16.mxu0 0
        %1713 = vmatpush1.bf16.xpose.msra.mxu0 %v1698
        %1714 = vmatprep.subr.bf16.mxu0 0
        %1715 = vmatpush1.bf16.xpose.msra.mxu0 %v1695
        %1716 = vmatprep.subr.bf16.mxu0 0
        %1717 = vmatpush2.bf16.xpose.msra.mxu0 0
        %1718 = vmatprep.subr.bf16.mxu0 0
        %1719 = vmatpush2.bf16.xpose.msra.mxu0 0
        %1720 = vmatprep.subr.bf16.mxu0 0
        %1721 = vmatpush2.bf16.xpose.msra.mxu0 0
        %1722 = vmatprep.subr.bf16.mxu0 0
        %1723 = vmatpush2.bf16.xpose.msra.mxu0 0
        %1724 = vmatprep.subr.bf16.mxu0 0
        %1725 = vmatpush2.bf16.xpose.msra.mxu0 0
        %1726 = vmatprep.subr.bf16.mxu0 0
        %1727 = vmatpush2.bf16.xpose.msra.mxu0 0
        %1728 = vmatprep.subr.bf16.mxu0 0
        %1729 = vmatpush2.bf16.xpose.msra.mxu0 0
        %1730 = vmatprep.subr.bf16.mxu0 0
        %1731 = vmatpush2.bf16.xpose.msra.mxu0 0
        %1732 = vmatprep.mubr.bf16.mxu0 0
        %1733 = vmatmul.mubr.bf16.gmra.mxu0 %v1689
        %v1734 = vpop.f32.mrf.mxu0
        %v1735 = vadd.f32 0.0, %v1734
        %v1736 = vpop.f32.mrf.mxu0
        %v1737 = vpop.f32.mrf.mxu0
        %v1738 = vadd.f32 0.0, %v1737
        %v1739 = vpop.f32.mrf.mxu0
        %1740 = vmatprep.mubr.bf16.mxu0 0
        %1741 = vmatmul.mubr.bf16.gmra.mxu0 %v1692
        %v1742 = vpop.f32.mrf.mxu0
        %v1743 = vadd.f32 0.0, %v1742
        %v1744 = vpop.f32.mrf.mxu0
        %v1745 = vpop.f32.mrf.mxu0
        %v1746 = vpop.f32.mrf.mxu0
        %1747 = vdwg.mxu0
        %v1748 = vmul.f32 %v1735, 0.17677669
        %v1749 = vmul.f32 %v1738, 0.17677669
        %v1750 = vmul.f32 %v1743, 0.17677669
        %v1751 = vadd.f32 %v1748, %v1044
        %v1752 = vadd.f32 %v1749, %v1045
        %v1753 = vadd.f32 %v1750, %v1046
        %v1754 = vsel %vm1171, %v1751, -inf
        %1755 = vmax.xlane.f32.xlu0 %v1754
        %v1756 = vpop.xlane.xlu0 %1755
        %v1757 = vsel %vm1171, %v1752, -inf
        %1758 = vmax.xlane.f32.xlu0 %v1757
        %v1759 = vpop.xlane.xlu0 %1758
        %v1760 = vsel %vm1171, %v1753, -inf
        %1761 = vmax.xlane.f32.xlu0 %v1760
        %v1762 = vpop.xlane.xlu0 %1761
        %v1763 = vsub.f32 %v1751, %v1756
        %v1764 = vsub.f32 %v1752, %v1759
        %v1765 = vsub.f32 %v1753, %v1762
        %v1766 = vmul.f32 %v1763, 1.442695
        %v1767 = vpow.pop %v1766
        %v1768 = vmul.f32 %v1764, 1.442695
        %v1769 = vpow.pop %v1768
        %v1770 = vmul.f32 %v1765, 1.442695
        %v1771 = vpow.pop %v1770
        %v1772 = vsel %vm1171, %v1767, 0.0
        %1773 = vadd.xlane.f32.xlu0 %v1772
        %v1774 = vpop.xlane.xlu0 %1773
        %v1775 = vsel %vm1171, %v1769, 0.0
        %1776 = vadd.xlane.f32.xlu0 %v1775
        %v1777 = vpop.xlane.xlu0 %1776
        %v1778 = vsel %vm1171, %v1771, 0.0
        %1779 = vadd.xlane.f32.xlu0 %v1778
        %v1780 = vpop.xlane.xlu0 %1779
        %v1781 = vrcp.pop %v1774
        %v1782 = vmul.f32 %v1767, %v1781
        %v1783 = vrcp.pop %v1777
        %v1784 = vmul.f32 %v1769, %v1783
        %v1785 = vrcp.pop %v1780
        %v1786 = vmul.f32 %v1771, %v1785
        %v1787 = vpack.c.bf16 %v1784, %v1782
        %v1788 = vpack.c.bf16 %v1786, %v1786
        %1791 = vrot.lane.b32.xlu0 %v1512, 96
        %v1792 = vpop.permute.xlu0 %1791
        %1793 = vrot.lane.b32.xlu0 %v1513, 96
        %v1794 = vpop.permute.xlu0 %1793
        %v1797 = vsel %vm1171, %v1787, 0
        %v1800 = vsel %vm1171, %v1788, 0
        %v1803 = vsel %vm1178, %v1794, 0
        %1805 = vmatprep.subr.bf16.mxu0 0
        %1806 = vmatpush1.bf16.msra.mxu0 0
        %1807 = vmatprep.subr.bf16.mxu0 0
        %1808 = vmatpush1.bf16.msra.mxu0 0
        %1809 = vmatprep.subr.bf16.mxu0 0
        %1810 = vmatpush1.bf16.msra.mxu0 0
        %1811 = vmatprep.subr.bf16.mxu0 0
        %1812 = vmatpush1.bf16.msra.mxu0 0
        %1813 = vmatprep.subr.bf16.mxu0 0
        %1814 = vmatpush1.bf16.msra.mxu0 0
        %1815 = vmatprep.subr.bf16.mxu0 0
        %1816 = vmatpush1.bf16.msra.mxu0 0
        %1817 = vmatprep.subr.bf16.mxu0 0
        %1818 = vmatpush1.bf16.msra.mxu0 %v1803
        %1819 = vmatprep.subr.bf16.mxu0 0
        %1820 = vmatpush1.bf16.msra.mxu0 %v1792
        %1821 = vmatprep.subr.bf16.mxu0 0
        %1822 = vmatpush2.bf16.msra.mxu0 0
        %1823 = vmatprep.subr.bf16.mxu0 0
        %1824 = vmatpush2.bf16.msra.mxu0 0
        %1825 = vmatprep.subr.bf16.mxu0 0
        %1826 = vmatpush2.bf16.msra.mxu0 0
        %1827 = vmatprep.subr.bf16.mxu0 0
        %1828 = vmatpush2.bf16.msra.mxu0 0
        %1829 = vmatprep.subr.bf16.mxu0 0
        %1830 = vmatpush2.bf16.msra.mxu0 0
        %1831 = vmatprep.subr.bf16.mxu0 0
        %1832 = vmatpush2.bf16.msra.mxu0 0
        %1833 = vmatprep.subr.bf16.mxu0 0
        %1834 = vmatpush2.bf16.msra.mxu0 0
        %1835 = vmatprep.subr.bf16.mxu0 0
        %1836 = vmatpush2.bf16.msra.mxu0 0
        %1837 = vmatprep.mubr.bf16.mxu0 0
        %1838 = vmatmul.mubr.bf16.gmra.mxu0 %v1797
        %v1839 = vpop.f32.mrf.mxu0
        %v1840 = vadd.f32 0.0, %v1839
        %v1841 = vpop.f32.mrf.mxu0
        %v1842 = vpop.f32.mrf.mxu0
        %v1843 = vadd.f32 0.0, %v1842
        %v1844 = vpop.f32.mrf.mxu0
        %1845 = vmatprep.mubr.bf16.mxu0 0
        %1846 = vmatmul.mubr.bf16.gmra.mxu0 %v1800
        %v1847 = vpop.f32.mrf.mxu0
        %v1848 = vadd.f32 0.0, %v1847
        %v1849 = vpop.f32.mrf.mxu0
        %v1850 = vpop.f32.mrf.mxu0
        %v1851 = vpop.f32.mrf.mxu0
        %1852 = vdwg.mxu0
        %1856 = vrot.lane.b32.xlu0 %v1840, 32
        %v1857 = vpop.permute.xlu0 %1856
        %1858 = vrot.lane.b32.xlu0 %v1843, 32
        %v1859 = vpop.permute.xlu0 %1858
        %1860 = vrot.lane.b32.xlu0 %v1848, 32
        %v1861 = vpop.permute.xlu0 %1860
        %vm1865 = vcmask 523520
        %1866 = vst.msk [vmem:[#allocation2] sm:$0xff] %vm1865, %v1857
        %1867 = vst.msk [vmem:[#allocation2 + $0x8] sm:$0xff] %vm1865, %v1859
        %1868 = vst.msk [vmem:[#allocation2 + $0x10] sm:$0xff] %vm1865, %v1861
        %1869 = vrot.lane.b32.xlu0 %v1508, 64
        %v1870 = vpop.permute.xlu0 %1869
        %1871 = vrot.lane.b32.xlu0 %v1509, 64
        %v1872 = vpop.permute.xlu0 %1871
        %1873 = vrot.lane.b32.xlu0 %v1510, 64
        %v1874 = vpop.permute.xlu0 %1873
        %1875 = vrot.lane.b32.xlu0 %v1511, 64
        %v1876 = vpop.permute.xlu0 %1875
        %v1878 = vsel %vm1514, %v1870, 0
        %v1881 = vsel %vm1514, %v1872, 0
        %v1884 = vsel %vm1514, %v1874, 0
        %v1887 = vsel %vm1514, %v1876, 0
        %1889 = vmatprep.subr.bf16.mxu0 0
        %1890 = vmatpush1.bf16.xpose.msra.mxu0 0
        %1891 = vmatprep.subr.bf16.mxu0 0
        %1892 = vmatpush1.bf16.xpose.msra.mxu0 0
        %1893 = vmatprep.subr.bf16.mxu0 0
        %1894 = vmatpush1.bf16.xpose.msra.mxu0 0
        %1895 = vmatprep.subr.bf16.mxu0 0
        %1896 = vmatpush1.bf16.xpose.msra.mxu0 0
        %1897 = vmatprep.subr.bf16.mxu0 0
        %1898 = vmatpush1.bf16.xpose.msra.mxu0 0
        %1899 = vmatprep.subr.bf16.mxu0 0
        %1900 = vmatpush1.bf16.xpose.msra.mxu0 0
        %1901 = vmatprep.subr.bf16.mxu0 0
        %1902 = vmatpush1.bf16.xpose.msra.mxu0 %v1887
        %1903 = vmatprep.subr.bf16.mxu0 0
        %1904 = vmatpush1.bf16.xpose.msra.mxu0 %v1884
        %1905 = vmatprep.subr.bf16.mxu0 0
        %1906 = vmatpush2.bf16.xpose.msra.mxu0 0
        %1907 = vmatprep.subr.bf16.mxu0 0
        %1908 = vmatpush2.bf16.xpose.msra.mxu0 0
        %1909 = vmatprep.subr.bf16.mxu0 0
        %1910 = vmatpush2.bf16.xpose.msra.mxu0 0
        %1911 = vmatprep.subr.bf16.mxu0 0
        %1912 = vmatpush2.bf16.xpose.msra.mxu0 0
        %1913 = vmatprep.subr.bf16.mxu0 0
        %1914 = vmatpush2.bf16.xpose.msra.mxu0 0
        %1915 = vmatprep.subr.bf16.mxu0 0
        %1916 = vmatpush2.bf16.xpose.msra.mxu0 0
        %1917 = vmatprep.subr.bf16.mxu0 0
        %1918 = vmatpush2.bf16.xpose.msra.mxu0 0
        %1919 = vmatprep.subr.bf16.mxu0 0
        %1920 = vmatpush2.bf16.xpose.msra.mxu0 0
        %1921 = vmatprep.mubr.bf16.mxu0 0
        %1922 = vmatmul.mubr.bf16.gmra.mxu0 %v1878
        %v1923 = vpop.f32.mrf.mxu0
        %v1924 = vadd.f32 0.0, %v1923
        %v1925 = vpop.f32.mrf.mxu0
        %v1926 = vpop.f32.mrf.mxu0
        %v1927 = vadd.f32 0.0, %v1926
        %v1928 = vpop.f32.mrf.mxu0
        %1929 = vmatprep.mubr.bf16.mxu0 0
        %1930 = vmatmul.mubr.bf16.gmra.mxu0 %v1881
        %v1931 = vpop.f32.mrf.mxu0
        %v1932 = vadd.f32 0.0, %v1931
        %v1933 = vpop.f32.mrf.mxu0
        %v1934 = vpop.f32.mrf.mxu0
        %v1935 = vpop.f32.mrf.mxu0
        %1936 = vdwg.mxu0
        %v1937 = vmul.f32 %v1924, 0.17677669
        %v1938 = vmul.f32 %v1927, 0.17677669
        %v1939 = vmul.f32 %v1932, 0.17677669
        %v1940 = vadd.f32 %v1937, %v1044
        %v1941 = vadd.f32 %v1938, %v1045
        %v1942 = vadd.f32 %v1939, %v1046
        %v1943 = vsel %vm1171, %v1940, -inf
        %1944 = vmax.xlane.f32.xlu0 %v1943
        %v1945 = vpop.xlane.xlu0 %1944
        %v1946 = vsel %vm1171, %v1941, -inf
        %1947 = vmax.xlane.f32.xlu0 %v1946
        %v1948 = vpop.xlane.xlu0 %1947
        %v1949 = vsel %vm1171, %v1942, -inf
        %1950 = vmax.xlane.f32.xlu0 %v1949
        %v1951 = vpop.xlane.xlu0 %1950
        %v1952 = vsub.f32 %v1940, %v1945
        %v1953 = vsub.f32 %v1941, %v1948
        %v1954 = vsub.f32 %v1942, %v1951
        %v1955 = vmul.f32 %v1952, 1.442695
        %v1956 = vpow.pop %v1955
        %v1957 = vmul.f32 %v1953, 1.442695
        %v1958 = vpow.pop %v1957
        %v1959 = vmul.f32 %v1954, 1.442695
        %v1960 = vpow.pop %v1959
        %v1961 = vsel %vm1171, %v1956, 0.0
        %1962 = vadd.xlane.f32.xlu0 %v1961
        %v1963 = vpop.xlane.xlu0 %1962
        %v1964 = vsel %vm1171, %v1958, 0.0
        %1965 = vadd.xlane.f32.xlu0 %v1964
        %v1966 = vpop.xlane.xlu0 %1965
        %v1967 = vsel %vm1171, %v1960, 0.0
        %1968 = vadd.xlane.f32.xlu0 %v1967
        %v1969 = vpop.xlane.xlu0 %1968
        %v1970 = vrcp.pop %v1963
        %v1971 = vmul.f32 %v1956, %v1970
        %v1972 = vrcp.pop %v1966
        %v1973 = vmul.f32 %v1958, %v1972
        %v1974 = vrcp.pop %v1969
        %v1975 = vmul.f32 %v1960, %v1974
        %v1976 = vpack.c.bf16 %v1973, %v1971
        %v1977 = vpack.c.bf16 %v1975, %v1975
        %1978 = vrot.lane.b32.xlu0 %v1512, 64
        %v1979 = vpop.permute.xlu0 %1978
        %1980 = vrot.lane.b32.xlu0 %v1513, 64
        %v1981 = vpop.permute.xlu0 %1980
        %v1984 = vsel %vm1171, %v1976, 0
        %v1987 = vsel %vm1171, %v1977, 0
        %v1990 = vsel %vm1178, %v1981, 0
        %1992 = vmatprep.subr.bf16.mxu0 0
        %1993 = vmatpush1.bf16.msra.mxu0 0
        %1994 = vmatprep.subr.bf16.mxu0 0
        %1995 = vmatpush1.bf16.msra.mxu0 0
        %1996 = vmatprep.subr.bf16.mxu0 0
        %1997 = vmatpush1.bf16.msra.mxu0 0
        %1998 = vmatprep.subr.bf16.mxu0 0
        %1999 = vmatpush1.bf16.msra.mxu0 0
        %2000 = vmatprep.subr.bf16.mxu0 0
        %2001 = vmatpush1.bf16.msra.mxu0 0
        %2002 = vmatprep.subr.bf16.mxu0 0
        %2003 = vmatpush1.bf16.msra.mxu0 0
        %2004 = vmatprep.subr.bf16.mxu0 0
        %2005 = vmatpush1.bf16.msra.mxu0 %v1990
        %2006 = vmatprep.subr.bf16.mxu0 0
        %2007 = vmatpush1.bf16.msra.mxu0 %v1979
        %2008 = vmatprep.subr.bf16.mxu0 0
        %2009 = vmatpush2.bf16.msra.mxu0 0
        %2010 = vmatprep.subr.bf16.mxu0 0
        %2011 = vmatpush2.bf16.msra.mxu0 0
        %2012 = vmatprep.subr.bf16.mxu0 0
        %2013 = vmatpush2.bf16.msra.mxu0 0
        %2014 = vmatprep.subr.bf16.mxu0 0
        %2015 = vmatpush2.bf16.msra.mxu0 0
        %2016 = vmatprep.subr.bf16.mxu0 0
        %2017 = vmatpush2.bf16.msra.mxu0 0
        %2018 = vmatprep.subr.bf16.mxu0 0
        %2019 = vmatpush2.bf16.msra.mxu0 0
        %2020 = vmatprep.subr.bf16.mxu0 0
        %2021 = vmatpush2.bf16.msra.mxu0 0
        %2022 = vmatprep.subr.bf16.mxu0 0
        %2023 = vmatpush2.bf16.msra.mxu0 0
        %2024 = vmatprep.mubr.bf16.mxu0 0
        %2025 = vmatmul.mubr.bf16.gmra.mxu0 %v1984
        %v2026 = vpop.f32.mrf.mxu0
        %v2027 = vadd.f32 0.0, %v2026
        %v2028 = vpop.f32.mrf.mxu0
        %v2029 = vpop.f32.mrf.mxu0
        %v2030 = vadd.f32 0.0, %v2029
        %v2031 = vpop.f32.mrf.mxu0
        %2032 = vmatprep.mubr.bf16.mxu0 0
        %2033 = vmatmul.mubr.bf16.gmra.mxu0 %v1987
        %v2034 = vpop.f32.mrf.mxu0
        %v2035 = vadd.f32 0.0, %v2034
        %v2036 = vpop.f32.mrf.mxu0
        %v2037 = vpop.f32.mrf.mxu0
        %v2038 = vpop.f32.mrf.mxu0
        %2039 = vdwg.mxu0
        %2043 = vrot.lane.b32.xlu0 %v2027, 64
        %v2044 = vpop.permute.xlu0 %2043
        %2045 = vrot.lane.b32.xlu0 %v2030, 64
        %v2046 = vpop.permute.xlu0 %2045
        %2047 = vrot.lane.b32.xlu0 %v2035, 64
        %v2048 = vpop.permute.xlu0 %2047
        %vm2052 = vcmask 785920
        %2053 = vst.msk [vmem:[#allocation2] sm:$0xff] %vm2052, %v2044
        %2054 = vst.msk [vmem:[#allocation2 + $0x8] sm:$0xff] %vm2052, %v2046
        %2055 = vst.msk [vmem:[#allocation2 + $0x10] sm:$0xff] %vm2052, %v2048
        %2056 = vrot.lane.b32.xlu0 %v1508, 32
        %v2057 = vpop.permute.xlu0 %2056
        %2058 = vrot.lane.b32.xlu0 %v1509, 32
        %v2059 = vpop.permute.xlu0 %2058
        %2060 = vrot.lane.b32.xlu0 %v1510, 32
        %v2061 = vpop.permute.xlu0 %2060
        %2062 = vrot.lane.b32.xlu0 %v1511, 32
        %v2063 = vpop.permute.xlu0 %2062
        %v2065 = vsel %vm1514, %v2057, 0
        %v2068 = vsel %vm1514, %v2059, 0
        %v2071 = vsel %vm1514, %v2061, 0
        %v2074 = vsel %vm1514, %v2063, 0
        %2076 = vmatprep.subr.bf16.mxu0 0
        %2077 = vmatpush1.bf16.xpose.msra.mxu0 0
        %2078 = vmatprep.subr.bf16.mxu0 0
        %2079 = vmatpush1.bf16.xpose.msra.mxu0 0
        %2080 = vmatprep.subr.bf16.mxu0 0
        %2081 = vmatpush1.bf16.xpose.msra.mxu0 0
        %2082 = vmatprep.subr.bf16.mxu0 0
        %2083 = vmatpush1.bf16.xpose.msra.mxu0 0
        %2084 = vmatprep.subr.bf16.mxu0 0
        %2085 = vmatpush1.bf16.xpose.msra.mxu0 0
        %2086 = vmatprep.subr.bf16.mxu0 0
        %2087 = vmatpush1.bf16.xpose.msra.mxu0 0
        %2088 = vmatprep.subr.bf16.mxu0 0
        %2089 = vmatpush1.bf16.xpose.msra.mxu0 %v2074
        %2090 = vmatprep.subr.bf16.mxu0 0
        %2091 = vmatpush1.bf16.xpose.msra.mxu0 %v2071
        %2092 = vmatprep.subr.bf16.mxu0 0
        %2093 = vmatpush2.bf16.xpose.msra.mxu0 0
        %2094 = vmatprep.subr.bf16.mxu0 0
        %2095 = vmatpush2.bf16.xpose.msra.mxu0 0
        %2096 = vmatprep.subr.bf16.mxu0 0
        %2097 = vmatpush2.bf16.xpose.msra.mxu0 0
        %2098 = vmatprep.subr.bf16.mxu0 0
        %2099 = vmatpush2.bf16.xpose.msra.mxu0 0
        %2100 = vmatprep.subr.bf16.mxu0 0
        %2101 = vmatpush2.bf16.xpose.msra.mxu0 0
        %2102 = vmatprep.subr.bf16.mxu0 0
        %2103 = vmatpush2.bf16.xpose.msra.mxu0 0
        %2104 = vmatprep.subr.bf16.mxu0 0
        %2105 = vmatpush2.bf16.xpose.msra.mxu0 0
        %2106 = vmatprep.subr.bf16.mxu0 0
        %2107 = vmatpush2.bf16.xpose.msra.mxu0 0
        %2108 = vmatprep.mubr.bf16.mxu0 0
        %2109 = vmatmul.mubr.bf16.gmra.mxu0 %v2065
        %v2110 = vpop.f32.mrf.mxu0
        %v2111 = vadd.f32 0.0, %v2110
        %v2112 = vpop.f32.mrf.mxu0
        %v2113 = vpop.f32.mrf.mxu0
        %v2114 = vadd.f32 0.0, %v2113
        %v2115 = vpop.f32.mrf.mxu0
        %2116 = vmatprep.mubr.bf16.mxu0 0
        %2117 = vmatmul.mubr.bf16.gmra.mxu0 %v2068
        %v2118 = vpop.f32.mrf.mxu0
        %v2119 = vadd.f32 0.0, %v2118
        %v2120 = vpop.f32.mrf.mxu0
        %v2121 = vpop.f32.mrf.mxu0
        %v2122 = vpop.f32.mrf.mxu0
        %2123 = vdwg.mxu0
        %v2124 = vmul.f32 %v2111, 0.17677669
        %v2125 = vmul.f32 %v2114, 0.17677669
        %v2126 = vmul.f32 %v2119, 0.17677669
        %v2127 = vadd.f32 %v2124, %v1044
        %v2128 = vadd.f32 %v2125, %v1045
        %v2129 = vadd.f32 %v2126, %v1046
        %v2130 = vsel %vm1171, %v2127, -inf
        %2131 = vmax.xlane.f32.xlu0 %v2130
        %v2132 = vpop.xlane.xlu0 %2131
        %v2133 = vsel %vm1171, %v2128, -inf
        %2134 = vmax.xlane.f32.xlu0 %v2133
        %v2135 = vpop.xlane.xlu0 %2134
        %v2136 = vsel %vm1171, %v2129, -inf
        %2137 = vmax.xlane.f32.xlu0 %v2136
        %v2138 = vpop.xlane.xlu0 %2137
        %v2139 = vsub.f32 %v2127, %v2132
        %v2140 = vsub.f32 %v2128, %v2135
        %v2141 = vsub.f32 %v2129, %v2138
        %v2142 = vmul.f32 %v2139, 1.442695
        %v2143 = vpow.pop %v2142
        %v2144 = vmul.f32 %v2140, 1.442695
        %v2145 = vpow.pop %v2144
        %v2146 = vmul.f32 %v2141, 1.442695
        %v2147 = vpow.pop %v2146
        %v2148 = vsel %vm1171, %v2143, 0.0
        %2149 = vadd.xlane.f32.xlu0 %v2148
        %v2150 = vpop.xlane.xlu0 %2149
        %v2151 = vsel %vm1171, %v2145, 0.0
        %2152 = vadd.xlane.f32.xlu0 %v2151
        %v2153 = vpop.xlane.xlu0 %2152
        %v2154 = vsel %vm1171, %v2147, 0.0
        %2155 = vadd.xlane.f32.xlu0 %v2154
        %v2156 = vpop.xlane.xlu0 %2155
        %v2157 = vrcp.pop %v2150
        %v2158 = vmul.f32 %v2143, %v2157
        %v2159 = vrcp.pop %v2153
        %v2160 = vmul.f32 %v2145, %v2159
        %v2161 = vrcp.pop %v2156
        %v2162 = vmul.f32 %v2147, %v2161
        %v2163 = vpack.c.bf16 %v2160, %v2158
        %v2164 = vpack.c.bf16 %v2162, %v2162
        %2165 = vrot.lane.b32.xlu0 %v1512, 32
        %v2166 = vpop.permute.xlu0 %2165
        %2167 = vrot.lane.b32.xlu0 %v1513, 32
        %v2168 = vpop.permute.xlu0 %2167
        %v2171 = vsel %vm1171, %v2163, 0
        %v2174 = vsel %vm1171, %v2164, 0
        %v2177 = vsel %vm1178, %v2168, 0
        %2179 = vmatprep.subr.bf16.mxu0 0
        %2180 = vmatpush1.bf16.msra.mxu0 0
        %2181 = vmatprep.subr.bf16.mxu0 0
        %2182 = vmatpush1.bf16.msra.mxu0 0
        %2183 = vmatprep.subr.bf16.mxu0 0
        %2184 = vmatpush1.bf16.msra.mxu0 0
        %2185 = vmatprep.subr.bf16.mxu0 0
        %2186 = vmatpush1.bf16.msra.mxu0 0
        %2187 = vmatprep.subr.bf16.mxu0 0
        %2188 = vmatpush1.bf16.msra.mxu0 0
        %2189 = vmatprep.subr.bf16.mxu0 0
        %2190 = vmatpush1.bf16.msra.mxu0 0
        %2191 = vmatprep.subr.bf16.mxu0 0
        %2192 = vmatpush1.bf16.msra.mxu0 %v2177
        %2193 = vmatprep.subr.bf16.mxu0 0
        %2194 = vmatpush1.bf16.msra.mxu0 %v2166
        %2195 = vmatprep.subr.bf16.mxu0 0
        %2196 = vmatpush2.bf16.msra.mxu0 0
        %2197 = vmatprep.subr.bf16.mxu0 0
        %2198 = vmatpush2.bf16.msra.mxu0 0
        %2199 = vmatprep.subr.bf16.mxu0 0
        %2200 = vmatpush2.bf16.msra.mxu0 0
        %2201 = vmatprep.subr.bf16.mxu0 0
        %2202 = vmatpush2.bf16.msra.mxu0 0
        %2203 = vmatprep.subr.bf16.mxu0 0
        %2204 = vmatpush2.bf16.msra.mxu0 0
        %2205 = vmatprep.subr.bf16.mxu0 0
        %2206 = vmatpush2.bf16.msra.mxu0 0
        %2207 = vmatprep.subr.bf16.mxu0 0
        %2208 = vmatpush2.bf16.msra.mxu0 0
        %2209 = vmatprep.subr.bf16.mxu0 0
        %2210 = vmatpush2.bf16.msra.mxu0 0
        %2211 = vmatprep.mubr.bf16.mxu0 0
        %2212 = vmatmul.mubr.bf16.gmra.mxu0 %v2171
        %v2213 = vpop.f32.mrf.mxu0
        %v2214 = vadd.f32 0.0, %v2213
        %v2215 = vpop.f32.mrf.mxu0
        %v2216 = vpop.f32.mrf.mxu0
        %v2217 = vadd.f32 0.0, %v2216
        %v2218 = vpop.f32.mrf.mxu0
        %2219 = vmatprep.mubr.bf16.mxu0 0
        %2220 = vmatmul.mubr.bf16.gmra.mxu0 %v2174
        %v2221 = vpop.f32.mrf.mxu0
        %v2222 = vadd.f32 0.0, %v2221
        %v2223 = vpop.f32.mrf.mxu0
        %v2224 = vpop.f32.mrf.mxu0
        %v2225 = vpop.f32.mrf.mxu0
        %2226 = vdwg.mxu0
        %2230 = vrot.lane.b32.xlu0 %v2214, 96
        %v2231 = vpop.permute.xlu0 %2230
        %2232 = vrot.lane.b32.xlu0 %v2217, 96
        %v2233 = vpop.permute.xlu0 %2232
        %2234 = vrot.lane.b32.xlu0 %v2222, 96
        %v2235 = vpop.permute.xlu0 %2234
        %vm2239 = vcmask 1048320
        %2240 = vst.msk [vmem:[#allocation2] sm:$0xff] %vm2239, %v2231
        %2241 = vst.msk [vmem:[#allocation2 + $0x8] sm:$0xff] %vm2239, %v2233
        %2242 = vst.msk [vmem:[#allocation2 + $0x10] sm:$0xff] %vm2239, %v2235
        %v2243 = vld [vmem:[#allocation2] sm:$0xff]
        %v2244 = vld [vmem:[#allocation2 + $0x8] sm:$0xff]
        %v2245 = vld [vmem:[#allocation2 + $0x10] sm:$0xff]
        %v2246 = vpack.c.bf16 %v2244, %v2243
        %v2247 = vpack.c.bf16 %v2245, %v2245
        %v2248 = vld [vmem:[#allocation15] sm:$0xf]
        %v2249 = vld [vmem:[#allocation15 + $0x4] sm:$0xf]
        %v2250 = vld [vmem:[#allocation15 + $0x8] sm:$0xf]
        %v2251 = vld [vmem:[#allocation15 + $0xc] sm:$0xf]
        %v2252 = vld [vmem:[#allocation15 + $0x10] sm:$0xf]
        %v2253 = vld [vmem:[#allocation15 + $0x14] sm:$0xf]
        %v2254 = vld [vmem:[#allocation15 + $0x18] sm:$0xf]
        %v2255 = vld [vmem:[#allocation15 + $0x1c] sm:$0xf]
        %v2256 = vld [vmem:[#allocation15 + $0x20] sm:$0xf]
        %v2257 = vld [vmem:[#allocation15 + $0x24] sm:$0xf]
        %v2258 = vld [vmem:[#allocation15 + $0x28] sm:$0xf]
        %v2259 = vld [vmem:[#allocation15 + $0x2c] sm:$0xf]
        %v2260 = vld [vmem:[#allocation15 + $0x30] sm:$0xf]
        %v2261 = vld [vmem:[#allocation15 + $0x34] sm:$0xf]
        %v2262 = vld [vmem:[#allocation15 + $0x38] sm:$0xf]
        %v2263 = vld [vmem:[#allocation15 + $0x3c] sm:$0xf]
        %v2264 = vld [vmem:[%s9] sm:$0x1]
        %v2266 = vlaneseq
        %v2267 = vshrl.u32 %v2266, 7
        %v2268 = vsub.s32 0, %v2267
        %v2269 = vrot.slane %v2264, %v2268
        %v2287 = vunpack.c.l.b16 %v2248
        %v2288 = vunpack.c.l.b16 %v2249
        %v2289 = vunpack.c.l.b16 %v2250
        %v2290 = vunpack.c.l.b16 %v2251
        %v2291 = vunpack.c.l.b16 %v2252
        %v2292 = vunpack.c.l.b16 %v2253
        %v2293 = vunpack.c.l.b16 %v2254
        %v2294 = vunpack.c.l.b16 %v2255
        %v2295 = vunpack.c.l.b16 %v2256
        %v2296 = vunpack.c.l.b16 %v2257
        %v2297 = vunpack.c.l.b16 %v2258
        %v2298 = vunpack.c.l.b16 %v2259
        %v2299 = vunpack.c.l.b16 %v2260
        %v2300 = vunpack.c.l.b16 %v2261
        %v2301 = vunpack.c.l.b16 %v2262
        %v2302 = vunpack.c.l.b16 %v2263
        %v2303 = vpack.c.b16 %v2288, %v2287
        %v2304 = vpack.c.b16 %v2290, %v2289
        %v2305 = vpack.c.b16 %v2292, %v2291
        %v2306 = vpack.c.b16 %v2294, %v2293
        %v2307 = vpack.c.b16 %v2296, %v2295
        %v2308 = vpack.c.b16 %v2298, %v2297
        %v2309 = vpack.c.b16 %v2300, %v2299
        %v2310 = vpack.c.b16 %v2302, %v2301
        %2319 = vmatprep.subr.bf16.mxu0 0
        %2320 = vmatpush1.bf16.msra.mxu0 %v2310
        %2321 = vmatprep.subr.bf16.mxu0 0
        %2322 = vmatpush1.bf16.msra.mxu0 %v2309
        %2323 = vmatprep.subr.bf16.mxu0 0
        %2324 = vmatpush1.bf16.msra.mxu0 %v2308
        %2325 = vmatprep.subr.bf16.mxu0 0
        %2326 = vmatpush1.bf16.msra.mxu0 %v2307
        %2327 = vmatprep.subr.bf16.mxu0 0
        %2328 = vmatpush1.bf16.msra.mxu0 %v2306
        %2329 = vmatprep.subr.bf16.mxu0 0
        %2330 = vmatpush1.bf16.msra.mxu0 %v2305
        %2331 = vmatprep.subr.bf16.mxu0 0
        %2332 = vmatpush1.bf16.msra.mxu0 %v2304
        %2333 = vmatprep.subr.bf16.mxu0 0
        %2334 = vmatpush1.bf16.msra.mxu0 %v2303
        %2335 = vmatprep.subr.bf16.mxu0 0
        %2336 = vmatpush2.bf16.msra.mxu0 0
        %2337 = vmatprep.subr.bf16.mxu0 0
        %2338 = vmatpush2.bf16.msra.mxu0 0
        %2339 = vmatprep.subr.bf16.mxu0 0
        %2340 = vmatpush2.bf16.msra.mxu0 0
        %2341 = vmatprep.subr.bf16.mxu0 0
        %2342 = vmatpush2.bf16.msra.mxu0 0
        %2343 = vmatprep.subr.bf16.mxu0 0
        %2344 = vmatpush2.bf16.msra.mxu0 0
        %2345 = vmatprep.subr.bf16.mxu0 0
        %2346 = vmatpush2.bf16.msra.mxu0 0
        %2347 = vmatprep.subr.bf16.mxu0 0
        %2348 = vmatpush2.bf16.msra.mxu0 0
        %2349 = vmatprep.subr.bf16.mxu0 0
        %2350 = vmatpush2.bf16.msra.mxu0 0
        %2351 = vmatprep.mubr.bf16.mxu0 0
        %2352 = vmatmul.mubr.bf16.gmra.mxu0 %v2246
        %v2353 = vpop.f32.mrf.mxu0
        %v2354 = vadd.f32 %v2269, %v2353
        %v2355 = vpop.f32.mrf.mxu0
        %v2356 = vpop.f32.mrf.mxu0
        %v2357 = vadd.f32 %v2269, %v2356
        %v2358 = vpop.f32.mrf.mxu0
        %2359 = vmatprep.mubr.bf16.mxu0 0
        %2360 = vmatmul.mubr.bf16.gmra.mxu0 %v2247
        %v2361 = vpop.f32.mrf.mxu0
        %v2362 = vadd.f32 %v2269, %v2361
        %v2363 = vpop.f32.mrf.mxu0
        %v2364 = vpop.f32.mrf.mxu0
        %v2365 = vpop.f32.mrf.mxu0
        %2366 = vdwg.mxu0
        %vm2367 = vcmp.gt.f32.partialorder %v2354, 0.0
        %vm2368 = vcmp.gt.f32.partialorder %v2357, 0.0
        %vm2369 = vcmp.gt.f32.partialorder %v2362, 0.0
        %v2370 = vmul.f32 %v2354, 0.2
        %v2371 = vmul.f32 %v2357, 0.2
        %v2372 = vmul.f32 %v2362, 0.2
        %v2373 = vsel %vm2367, %v2354, %v2370
        %v2374 = vsel %vm2368, %v2357, %v2371
        %v2375 = vsel %vm2369, %v2362, %v2372
        %v2376 = vpack.c.bf16 %v2374, %v2373
        %v2377 = vpack.c.bf16 %v2375, %v2375
        %v2378 = vld [vmem:[#allocation12] sm:$0xf]
        %v2379 = vld [vmem:[#allocation12 + $0x4] sm:$0xf]
        %v2380 = vld [vmem:[#allocation12 + $0x8] sm:$0xf]
        %v2381 = vld [vmem:[#allocation12 + $0xc] sm:$0xf]
        %v2382 = vld [vmem:[#allocation12 + $0x10] sm:$0xf]
        %v2383 = vld [vmem:[#allocation12 + $0x14] sm:$0xf]
        %v2384 = vld [vmem:[#allocation12 + $0x18] sm:$0xf]
        %v2385 = vld [vmem:[#allocation12 + $0x1c] sm:$0xf]
        %v2386 = vld [vmem:[#allocation12 + $0x20] sm:$0xf]
        %v2387 = vld [vmem:[#allocation12 + $0x24] sm:$0xf]
        %v2388 = vld [vmem:[#allocation12 + $0x28] sm:$0xf]
        %v2389 = vld [vmem:[#allocation12 + $0x2c] sm:$0xf]
        %v2390 = vld [vmem:[#allocation12 + $0x30] sm:$0xf]
        %v2391 = vld [vmem:[#allocation12 + $0x34] sm:$0xf]
        %v2392 = vld [vmem:[#allocation12 + $0x38] sm:$0xf]
        %v2393 = vld [vmem:[#allocation12 + $0x3c] sm:$0xf]
        %v2410 = vunpack.c.l.b16 %v2378
        %v2411 = vunpack.c.l.b16 %v2379
        %v2412 = vunpack.c.l.b16 %v2380
        %v2413 = vunpack.c.l.b16 %v2381
        %v2414 = vunpack.c.l.b16 %v2382
        %v2415 = vunpack.c.l.b16 %v2383
        %v2416 = vunpack.c.l.b16 %v2384
        %v2417 = vunpack.c.l.b16 %v2385
        %v2418 = vunpack.c.l.b16 %v2386
        %v2419 = vunpack.c.l.b16 %v2387
        %v2420 = vunpack.c.l.b16 %v2388
        %v2421 = vunpack.c.l.b16 %v2389
        %v2422 = vunpack.c.l.b16 %v2390
        %v2423 = vunpack.c.l.b16 %v2391
        %v2424 = vunpack.c.l.b16 %v2392
        %v2425 = vunpack.c.l.b16 %v2393
        %v2426 = vpack.c.b16 %v2411, %v2410
        %v2427 = vpack.c.b16 %v2413, %v2412
        %v2428 = vpack.c.b16 %v2415, %v2414
        %v2429 = vpack.c.b16 %v2417, %v2416
        %v2430 = vpack.c.b16 %v2419, %v2418
        %v2431 = vpack.c.b16 %v2421, %v2420
        %v2432 = vpack.c.b16 %v2423, %v2422
        %v2433 = vpack.c.b16 %v2425, %v2424
        %2442 = vmatprep.subr.bf16.mxu0 0
        %2443 = vmatpush1.bf16.msra.mxu0 %v2433
        %2444 = vmatprep.subr.bf16.mxu0 0
        %2445 = vmatpush1.bf16.msra.mxu0 %v2432
        %2446 = vmatprep.subr.bf16.mxu0 0
        %2447 = vmatpush1.bf16.msra.mxu0 %v2431
        %2448 = vmatprep.subr.bf16.mxu0 0
        %2449 = vmatpush1.bf16.msra.mxu0 %v2430
        %2450 = vmatprep.subr.bf16.mxu0 0
        %2451 = vmatpush1.bf16.msra.mxu0 %v2429
        %2452 = vmatprep.subr.bf16.mxu0 0
        %2453 = vmatpush1.bf16.msra.mxu0 %v2428
        %2454 = vmatprep.subr.bf16.mxu0 0
        %2455 = vmatpush1.bf16.msra.mxu0 %v2427
        %2456 = vmatprep.subr.bf16.mxu0 0
        %2457 = vmatpush1.bf16.msra.mxu0 %v2426
        %2458 = vmatprep.subr.bf16.mxu0 0
        %2459 = vmatpush2.bf16.msra.mxu0 0
        %2460 = vmatprep.subr.bf16.mxu0 0
        %2461 = vmatpush2.bf16.msra.mxu0 0
        %2462 = vmatprep.subr.bf16.mxu0 0
        %2463 = vmatpush2.bf16.msra.mxu0 0
        %2464 = vmatprep.subr.bf16.mxu0 0
        %2465 = vmatpush2.bf16.msra.mxu0 0
        %2466 = vmatprep.subr.bf16.mxu0 0
        %2467 = vmatpush2.bf16.msra.mxu0 0
        %2468 = vmatprep.subr.bf16.mxu0 0
        %2469 = vmatpush2.bf16.msra.mxu0 0
        %2470 = vmatprep.subr.bf16.mxu0 0
        %2471 = vmatpush2.bf16.msra.mxu0 0
        %2472 = vmatprep.subr.bf16.mxu0 0
        %2473 = vmatpush2.bf16.msra.mxu0 0
        %2474 = vmatprep.mubr.bf16.mxu0 0
        %2475 = vmatmul.mubr.bf16.gmra.mxu0 %v2376
        %v2476 = vpop.f32.mrf.mxu0
        %v2477 = vadd.f32 0.0, %v2476
        %v2478 = vpop.f32.mrf.mxu0
        %v2479 = vpop.f32.mrf.mxu0
        %v2480 = vadd.f32 0.0, %v2479
        %v2481 = vpop.f32.mrf.mxu0
        %2482 = vmatprep.mubr.bf16.mxu0 0
        %2483 = vmatmul.mubr.bf16.gmra.mxu0 %v2377
        %v2484 = vpop.f32.mrf.mxu0
        %v2485 = vadd.f32 0.0, %v2484
        %v2486 = vpop.f32.mrf.mxu0
        %v2487 = vpop.f32.mrf.mxu0
        %v2488 = vpop.f32.mrf.mxu0
        %2489 = vdwg.mxu0
        %v2490 = vpack.c.bf16 %v2480, %v2477
        %v2491 = vpack.c.bf16 %v2485, %v2485
        %v2493 = vsel %vm1178, %v2491, 0
        %2495 = vmatprep.subr.bf16.mxu0 0
        %2496 = vmatpush1.bf16.msra.mxu0 0
        %2497 = vmatprep.subr.bf16.mxu0 0
        %2498 = vmatpush1.bf16.msra.mxu0 0
        %2499 = vmatprep.subr.bf16.mxu0 0
        %2500 = vmatpush1.bf16.msra.mxu0 0
        %2501 = vmatprep.subr.bf16.mxu0 0
        %2502 = vmatpush1.bf16.msra.mxu0 0
        %2503 = vmatprep.subr.bf16.mxu0 0
        %2504 = vmatpush1.bf16.msra.mxu0 0
        %2505 = vmatprep.subr.bf16.mxu0 0
        %2506 = vmatpush1.bf16.msra.mxu0 0
        %2507 = vmatprep.subr.bf16.mxu0 0
        %2508 = vmatpush1.bf16.msra.mxu0 %v2493
        %2509 = vmatprep.subr.bf16.mxu0 0
        %2510 = vmatpush1.bf16.msra.mxu0 %v2490
        %2511 = vmatprep.subr.bf16.mxu0 0
        %2512 = vmatpush2.bf16.msra.mxu0 0
        %2513 = vmatprep.subr.bf16.mxu0 0
        %2514 = vmatpush2.bf16.msra.mxu0 0
        %2515 = vmatprep.subr.bf16.mxu0 0
        %2516 = vmatpush2.bf16.msra.mxu0 0
        %2517 = vmatprep.subr.bf16.mxu0 0
        %2518 = vmatpush2.bf16.msra.mxu0 0
        %2519 = vmatprep.subr.bf16.mxu0 0
        %2520 = vmatpush2.bf16.msra.mxu0 0
        %2521 = vmatprep.subr.bf16.mxu0 0
        %2522 = vmatpush2.bf16.msra.mxu0 0
        %2523 = vmatprep.subr.bf16.mxu0 0
        %2524 = vmatpush2.bf16.msra.mxu0 0
        %2525 = vmatprep.subr.bf16.mxu0 0
        %2526 = vmatpush2.bf16.msra.mxu0 0
        %2527 = vmatprep.mubr.bf16.mxu0 0
        %2528 = vmatmul.mubr.bf16.gmra.mxu0 %v1173
        %v2529 = vpop.f32.mrf.mxu0
        %v2530 = vadd.f32 0.0, %v2529
        %v2531 = vpop.f32.mrf.mxu0
        %v2532 = vpop.f32.mrf.mxu0
        %v2533 = vadd.f32 0.0, %v2532
        %v2534 = vpop.f32.mrf.mxu0
        %2535 = vmatprep.mubr.bf16.mxu0 0
        %2536 = vmatmul.mubr.bf16.gmra.mxu0 %v1176
        %v2537 = vpop.f32.mrf.mxu0
        %v2538 = vadd.f32 0.0, %v2537
        %v2539 = vpop.f32.mrf.mxu0
        %v2540 = vpop.f32.mrf.mxu0
        %v2541 = vpop.f32.mrf.mxu0
        %2542 = vdwg.mxu0
        %v2543 = vpack.c.bf16 %v2533, %v2530
        %v2544 = vpack.c.bf16 %v2538, %v2538
        %v2545 = vld [vmem:[#allocation17] sm:$0xff]
        %v2546 = vld [vmem:[#allocation17 + $0x8] sm:$0xf]
        %v2547 = vld [vmem:[#allocation17 + $0xc] sm:$0xff]
        %v2548 = vld [vmem:[#allocation17 + $0x14] sm:$0xf]
        %v2549 = vld [vmem:[#allocation17 + $0x18] sm:$0xff]
        %v2550 = vld [vmem:[#allocation17 + $0x20] sm:$0xf]
        %v2551 = vld [vmem:[#allocation17 + $0x24] sm:$0xff]
        %v2552 = vld [vmem:[#allocation17 + $0x2c] sm:$0xf]
        %v2553 = vld [vmem:[#allocation17 + $0x30] sm:$0xff]
        %v2554 = vld [vmem:[#allocation17 + $0x38] sm:$0xf]
        %v2555 = vld [vmem:[#allocation17 + $0x3c] sm:$0xff]
        %v2556 = vld [vmem:[#allocation17 + $0x44] sm:$0xf]
        %v2557 = vld [vmem:[#allocation17 + $0x48] sm:$0xff]
        %v2558 = vld [vmem:[#allocation17 + $0x50] sm:$0xf]
        %v2559 = vld [vmem:[#allocation17 + $0x54] sm:$0xff]
        %v2560 = vld [vmem:[#allocation17 + $0x5c] sm:$0xf]
        %v2561 = vld [vmem:[#allocation17 + $0x60] sm:$0xff]
        %v2562 = vld [vmem:[#allocation17 + $0x68] sm:$0xf]
        %v2563 = vld [vmem:[#allocation17 + $0x6c] sm:$0xff]
        %v2564 = vld [vmem:[#allocation17 + $0x74] sm:$0xf]
        %v2565 = vld [vmem:[#allocation17 + $0x78] sm:$0xff]
        %v2566 = vld [vmem:[#allocation17 + $0x80] sm:$0xf]
        %v2567 = vld [vmem:[#allocation17 + $0x84] sm:$0xff]
        %v2568 = vld [vmem:[#allocation17 + $0x8c] sm:$0xf]
        %v2569 = vld [vmem:[#allocation17 + $0x90] sm:$0xff]
        %v2570 = vld [vmem:[#allocation17 + $0x98] sm:$0xf]
        %v2571 = vld [vmem:[#allocation17 + $0x9c] sm:$0xff]
        %v2572 = vld [vmem:[#allocation17 + $0xa4] sm:$0xf]
        %v2573 = vld [vmem:[#allocation17 + $0xa8] sm:$0xff]
        %v2574 = vld [vmem:[#allocation17 + $0xb0] sm:$0xf]
        %v2575 = vld [vmem:[#allocation17 + $0xb4] sm:$0xff]
        %v2576 = vld [vmem:[#allocation17 + $0xbc] sm:$0xf]
        %v2577 = vld [vmem:[%s11] sm:$0x7]
        %v2579 = vlaneseq
        %v2580 = vshrl.u32 %v2579, 7
        %v2581 = vsub.s32 0, %v2580
        %v2582 = vrot.slane %v2577, %v2581
        %v2583 = vlaneseq
        %v2584 = vshrl.u32 %v2583, 7
        %v2585 = vsub.s32 1, %v2584
        %v2586 = vrot.slane %v2577, %v2585
        %v2587 = vlaneseq
        %v2588 = vshrl.u32 %v2587, 7
        %v2589 = vsub.s32 2, %v2588
        %v2590 = vrot.slane %v2577, %v2589
        %v2626 = vunpack.c.l.b16 %v2545
        %v2627 = vunpack.c.h.b16 %v2545
        %v2628 = vunpack.c.l.b16 %v2546
        %v2629 = vunpack.c.l.b16 %v2547
        %v2630 = vunpack.c.h.b16 %v2547
        %v2631 = vunpack.c.l.b16 %v2548
        %v2632 = vunpack.c.l.b16 %v2549
        %v2633 = vunpack.c.h.b16 %v2549
        %v2634 = vunpack.c.l.b16 %v2550
        %v2635 = vunpack.c.l.b16 %v2551
        %v2636 = vunpack.c.h.b16 %v2551
        %v2637 = vunpack.c.l.b16 %v2552
        %v2638 = vunpack.c.l.b16 %v2553
        %v2639 = vunpack.c.h.b16 %v2553
        %v2640 = vunpack.c.l.b16 %v2554
        %v2641 = vunpack.c.l.b16 %v2555
        %v2642 = vunpack.c.h.b16 %v2555
        %v2643 = vunpack.c.l.b16 %v2556
        %v2644 = vunpack.c.l.b16 %v2557
        %v2645 = vunpack.c.h.b16 %v2557
        %v2646 = vunpack.c.l.b16 %v2558
        %v2647 = vunpack.c.l.b16 %v2559
        %v2648 = vunpack.c.h.b16 %v2559
        %v2649 = vunpack.c.l.b16 %v2560
        %v2650 = vunpack.c.l.b16 %v2561
        %v2651 = vunpack.c.h.b16 %v2561
        %v2652 = vunpack.c.l.b16 %v2562
        %v2653 = vunpack.c.l.b16 %v2563
        %v2654 = vunpack.c.h.b16 %v2563
        %v2655 = vunpack.c.l.b16 %v2564
        %v2656 = vunpack.c.l.b16 %v2565
        %v2657 = vunpack.c.h.b16 %v2565
        %v2658 = vunpack.c.l.b16 %v2566
        %v2659 = vunpack.c.l.b16 %v2567
        %v2660 = vunpack.c.h.b16 %v2567
        %v2661 = vunpack.c.l.b16 %v2568
        %v2662 = vunpack.c.l.b16 %v2569
        %v2663 = vunpack.c.h.b16 %v2569
        %v2664 = vunpack.c.l.b16 %v2570
        %v2665 = vunpack.c.l.b16 %v2571
        %v2666 = vunpack.c.h.b16 %v2571
        %v2667 = vunpack.c.l.b16 %v2572
        %v2668 = vunpack.c.l.b16 %v2573
        %v2669 = vunpack.c.h.b16 %v2573
        %v2670 = vunpack.c.l.b16 %v2574
        %v2671 = vunpack.c.l.b16 %v2575
        %v2672 = vunpack.c.h.b16 %v2575
        %v2673 = vunpack.c.l.b16 %v2576
        %v2674 = vpack.c.b16 %v2629, %v2626
        %v2675 = vpack.c.b16 %v2630, %v2627
        %v2676 = vpack.c.b16 %v2631, %v2628
        %v2677 = vpack.c.b16 %v2635, %v2632
        %v2678 = vpack.c.b16 %v2636, %v2633
        %v2679 = vpack.c.b16 %v2637, %v2634
        %v2680 = vpack.c.b16 %v2641, %v2638
        %v2681 = vpack.c.b16 %v2642, %v2639
        %v2682 = vpack.c.b16 %v2643, %v2640
        %v2683 = vpack.c.b16 %v2647, %v2644
        %v2684 = vpack.c.b16 %v2648, %v2645
        %v2685 = vpack.c.b16 %v2649, %v2646
        %v2686 = vpack.c.b16 %v2653, %v2650
        %v2687 = vpack.c.b16 %v2654, %v2651
        %v2688 = vpack.c.b16 %v2655, %v2652
        %v2689 = vpack.c.b16 %v2659, %v2656
        %v2690 = vpack.c.b16 %v2660, %v2657
        %v2691 = vpack.c.b16 %v2661, %v2658
        %v2692 = vpack.c.b16 %v2665, %v2662
        %v2693 = vpack.c.b16 %v2666, %v2663
        %v2694 = vpack.c.b16 %v2667, %v2664
        %v2695 = vpack.c.b16 %v2671, %v2668
        %v2696 = vpack.c.b16 %v2672, %v2669
        %v2697 = vpack.c.b16 %v2673, %v2670
        %2722 = vmatprep.subr.bf16.mxu0 %v2696
        %2723 = vmatpush1.bf16.msra.mxu0 %v2695
        %2724 = vmatprep.subr.bf16.mxu0 %v2693
        %2725 = vmatpush1.bf16.msra.mxu0 %v2692
        %2726 = vmatprep.subr.bf16.mxu0 %v2690
        %2727 = vmatpush1.bf16.msra.mxu0 %v2689
        %2728 = vmatprep.subr.bf16.mxu0 %v2687
        %2729 = vmatpush1.bf16.msra.mxu0 %v2686
        %2730 = vmatprep.subr.bf16.mxu0 %v2684
        %2731 = vmatpush1.bf16.msra.mxu0 %v2683
        %2732 = vmatprep.subr.bf16.mxu0 %v2681
        %2733 = vmatpush1.bf16.msra.mxu0 %v2680
        %2734 = vmatprep.subr.bf16.mxu0 %v2678
        %2735 = vmatpush1.bf16.msra.mxu0 %v2677
        %2736 = vmatprep.subr.bf16.mxu0 %v2675
        %2737 = vmatpush1.bf16.msra.mxu0 %v2674
        %2738 = vmatprep.subr.bf16.mxu0 0
        %2739 = vmatpush2.bf16.msra.mxu0 0
        %2740 = vmatprep.subr.bf16.mxu0 0
        %2741 = vmatpush2.bf16.msra.mxu0 0
        %2742 = vmatprep.subr.bf16.mxu0 0
        %2743 = vmatpush2.bf16.msra.mxu0 0
        %2744 = vmatprep.subr.bf16.mxu0 0
        %2745 = vmatpush2.bf16.msra.mxu0 0
        %2746 = vmatprep.subr.bf16.mxu0 0
        %2747 = vmatpush2.bf16.msra.mxu0 0
        %2748 = vmatprep.subr.bf16.mxu0 0
        %2749 = vmatpush2.bf16.msra.mxu0 0
        %2750 = vmatprep.subr.bf16.mxu0 0
        %2751 = vmatpush2.bf16.msra.mxu0 0
        %2752 = vmatprep.subr.bf16.mxu0 0
        %2753 = vmatpush2.bf16.msra.mxu0 0
        %2754 = vmatprep.mubr.bf16.mxu0 0
        %2755 = vmatmul.mubr.bf16.gmra.mxu0 %v2543
        %v2756 = vpop.f32.mrf.mxu0
        %v2757 = vadd.f32 %v2582, %v2756
        %v2758 = vpop.f32.mrf.mxu0
        %v2759 = vadd.f32 %v2586, %v2758
        %v2760 = vpop.f32.mrf.mxu0
        %v2761 = vadd.f32 %v2582, %v2760
        %v2762 = vpop.f32.mrf.mxu0
        %v2763 = vadd.f32 %v2586, %v2762
        %2764 = vmatprep.mubr.bf16.mxu0 0
        %2765 = vmatmul.mubr.bf16.gmra.mxu0 %v2544
        %v2766 = vpop.f32.mrf.mxu0
        %v2767 = vadd.f32 %v2582, %v2766
        %v2768 = vpop.f32.mrf.mxu0
        %v2769 = vadd.f32 %v2586, %v2768
        %v2770 = vpop.f32.mrf.mxu0
        %v2771 = vpop.f32.mrf.mxu0
        %2772 = vdwg.mxu0
        %2773 = vmatprep.subr.bf16.mxu0 0
        %2774 = vmatpush1.bf16.msra.mxu0 %v2697
        %2775 = vmatprep.subr.bf16.mxu0 0
        %2776 = vmatpush1.bf16.msra.mxu0 %v2694
        %2777 = vmatprep.subr.bf16.mxu0 0
        %2778 = vmatpush1.bf16.msra.mxu0 %v2691
        %2779 = vmatprep.subr.bf16.mxu0 0
        %2780 = vmatpush1.bf16.msra.mxu0 %v2688
        %2781 = vmatprep.subr.bf16.mxu0 0
        %2782 = vmatpush1.bf16.msra.mxu0 %v2685
        %2783 = vmatprep.subr.bf16.mxu0 0
        %2784 = vmatpush1.bf16.msra.mxu0 %v2682
        %2785 = vmatprep.subr.bf16.mxu0 0
        %2786 = vmatpush1.bf16.msra.mxu0 %v2679
        %2787 = vmatprep.subr.bf16.mxu0 0
        %2788 = vmatpush1.bf16.msra.mxu0 %v2676
        %2789 = vmatprep.subr.bf16.mxu0 0
        %2790 = vmatpush2.bf16.msra.mxu0 0
        %2791 = vmatprep.subr.bf16.mxu0 0
        %2792 = vmatpush2.bf16.msra.mxu0 0
        %2793 = vmatprep.subr.bf16.mxu0 0
        %2794 = vmatpush2.bf16.msra.mxu0 0
        %2795 = vmatprep.subr.bf16.mxu0 0
        %2796 = vmatpush2.bf16.msra.mxu0 0
        %2797 = vmatprep.subr.bf16.mxu0 0
        %2798 = vmatpush2.bf16.msra.mxu0 0
        %2799 = vmatprep.subr.bf16.mxu0 0
        %2800 = vmatpush2.bf16.msra.mxu0 0
        %2801 = vmatprep.subr.bf16.mxu0 0
        %2802 = vmatpush2.bf16.msra.mxu0 0
        %2803 = vmatprep.subr.bf16.mxu0 0
        %2804 = vmatpush2.bf16.msra.mxu0 0
        %2805 = vmatprep.mubr.bf16.mxu0 0
        %2806 = vmatmul.mubr.bf16.gmra.mxu0 %v2543
        %v2807 = vpop.f32.mrf.mxu0
        %v2808 = vadd.f32 %v2590, %v2807
        %v2809 = vpop.f32.mrf.mxu0
        %v2810 = vpop.f32.mrf.mxu0
        %v2811 = vadd.f32 %v2590, %v2810
        %v2812 = vpop.f32.mrf.mxu0
        %2813 = vmatprep.mubr.bf16.mxu0 0
        %2814 = vmatmul.mubr.bf16.gmra.mxu0 %v2544
        %v2815 = vpop.f32.mrf.mxu0
        %v2816 = vadd.f32 %v2590, %v2815
        %v2817 = vpop.f32.mrf.mxu0
        %v2818 = vpop.f32.mrf.mxu0
        %v2819 = vpop.f32.mrf.mxu0
        %2820 = vdwg.mxu0
        %v2821 = vpack.c.bf16 %v2761, %v2757
        %v2822 = vpack.c.bf16 %v2767, %v2767
        %v2823 = vpack.c.bf16 %v2763, %v2759
        %v2824 = vpack.c.bf16 %v2769, %v2769
        %v2825 = vpack.c.bf16 %v2811, %v2808
        %v2826 = vpack.c.bf16 %v2816, %v2816
        %v2828 = vsel %vm1514, %v2821, 0
        %v2831 = vsel %vm1514, %v2822, 0
        %v2834 = vsel %vm1514, %v2823, 0
        %v2837 = vsel %vm1514, %v2824, 0
        %2839 = vmatprep.subr.bf16.mxu0 0
        %2840 = vmatpush1.bf16.xpose.msra.mxu0 0
        %2841 = vmatprep.subr.bf16.mxu0 0
        %2842 = vmatpush1.bf16.xpose.msra.mxu0 0
        %2843 = vmatprep.subr.bf16.mxu0 0
        %2844 = vmatpush1.bf16.xpose.msra.mxu0 0
        %2845 = vmatprep.subr.bf16.mxu0 0
        %2846 = vmatpush1.bf16.xpose.msra.mxu0 0
        %2847 = vmatprep.subr.bf16.mxu0 0
        %2848 = vmatpush1.bf16.xpose.msra.mxu0 0
        %2849 = vmatprep.subr.bf16.mxu0 0
        %2850 = vmatpush1.bf16.xpose.msra.mxu0 0
        %2851 = vmatprep.subr.bf16.mxu0 0
        %2852 = vmatpush1.bf16.xpose.msra.mxu0 %v2837
        %2853 = vmatprep.subr.bf16.mxu0 0
        %2854 = vmatpush1.bf16.xpose.msra.mxu0 %v2834
        %2855 = vmatprep.subr.bf16.mxu0 0
        %2856 = vmatpush2.bf16.xpose.msra.mxu0 0
        %2857 = vmatprep.subr.bf16.mxu0 0
        %2858 = vmatpush2.bf16.xpose.msra.mxu0 0
        %2859 = vmatprep.subr.bf16.mxu0 0
        %2860 = vmatpush2.bf16.xpose.msra.mxu0 0
        %2861 = vmatprep.subr.bf16.mxu0 0
        %2862 = vmatpush2.bf16.xpose.msra.mxu0 0
        %2863 = vmatprep.subr.bf16.mxu0 0
        %2864 = vmatpush2.bf16.xpose.msra.mxu0 0
        %2865 = vmatprep.subr.bf16.mxu0 0
        %2866 = vmatpush2.bf16.xpose.msra.mxu0 0
        %2867 = vmatprep.subr.bf16.mxu0 0
        %2868 = vmatpush2.bf16.xpose.msra.mxu0 0
        %2869 = vmatprep.subr.bf16.mxu0 0
        %2870 = vmatpush2.bf16.xpose.msra.mxu0 0
        %2871 = vmatprep.mubr.bf16.mxu0 0
        %2872 = vmatmul.mubr.bf16.gmra.mxu0 %v2828
        %v2873 = vpop.f32.mrf.mxu0
        %v2874 = vadd.f32 0.0, %v2873
        %v2875 = vpop.f32.mrf.mxu0
        %v2876 = vpop.f32.mrf.mxu0
        %v2877 = vadd.f32 0.0, %v2876
        %v2878 = vpop.f32.mrf.mxu0
        %2879 = vmatprep.mubr.bf16.mxu0 0
        %2880 = vmatmul.mubr.bf16.gmra.mxu0 %v2831
        %v2881 = vpop.f32.mrf.mxu0
        %v2882 = vadd.f32 0.0, %v2881
        %v2883 = vpop.f32.mrf.mxu0
        %v2884 = vpop.f32.mrf.mxu0
        %v2885 = vpop.f32.mrf.mxu0
        %2886 = vdwg.mxu0
        %v2887 = vmul.f32 %v2874, 0.17677669
        %v2888 = vmul.f32 %v2877, 0.17677669
        %v2889 = vmul.f32 %v2882, 0.17677669
        %v2890 = vadd.f32 %v2887, %v1044
        %v2891 = vadd.f32 %v2888, %v1045
        %v2892 = vadd.f32 %v2889, %v1046
        %v2893 = vsel %vm1171, %v2890, -inf
        %2894 = vmax.xlane.f32.xlu0 %v2893
        %v2895 = vpop.xlane.xlu0 %2894
        %v2896 = vsel %vm1171, %v2891, -inf
        %2897 = vmax.xlane.f32.xlu0 %v2896
        %v2898 = vpop.xlane.xlu0 %2897
        %v2899 = vsel %vm1171, %v2892, -inf
        %2900 = vmax.xlane.f32.xlu0 %v2899
        %v2901 = vpop.xlane.xlu0 %2900
        %v2902 = vsub.f32 %v2890, %v2895
        %v2903 = vsub.f32 %v2891, %v2898
        %v2904 = vsub.f32 %v2892, %v2901
        %v2905 = vmul.f32 %v2902, 1.442695
        %v2906 = vpow.pop %v2905
        %v2907 = vmul.f32 %v2903, 1.442695
        %v2908 = vpow.pop %v2907
        %v2909 = vmul.f32 %v2904, 1.442695
        %v2910 = vpow.pop %v2909
        %v2911 = vsel %vm1171, %v2906, 0.0
        %2912 = vadd.xlane.f32.xlu0 %v2911
        %v2913 = vpop.xlane.xlu0 %2912
        %v2914 = vsel %vm1171, %v2908, 0.0
        %2915 = vadd.xlane.f32.xlu0 %v2914
        %v2916 = vpop.xlane.xlu0 %2915
        %v2917 = vsel %vm1171, %v2910, 0.0
        %2918 = vadd.xlane.f32.xlu0 %v2917
        %v2919 = vpop.xlane.xlu0 %2918
        %v2920 = vrcp.pop %v2913
        %v2921 = vmul.f32 %v2906, %v2920
        %v2922 = vrcp.pop %v2916
        %v2923 = vmul.f32 %v2908, %v2922
        %v2924 = vrcp.pop %v2919
        %v2925 = vmul.f32 %v2910, %v2924
        %v2926 = vpack.c.bf16 %v2923, %v2921
        %v2927 = vpack.c.bf16 %v2925, %v2925
        %v2929 = vsel %vm1171, %v2926, 0
        %v2932 = vsel %vm1171, %v2927, 0
        %v2935 = vsel %vm1178, %v2826, 0
        %2937 = vmatprep.subr.bf16.mxu0 0
        %2938 = vmatpush1.bf16.msra.mxu0 0
        %2939 = vmatprep.subr.bf16.mxu0 0
        %2940 = vmatpush1.bf16.msra.mxu0 0
        %2941 = vmatprep.subr.bf16.mxu0 0
        %2942 = vmatpush1.bf16.msra.mxu0 0
        %2943 = vmatprep.subr.bf16.mxu0 0
        %2944 = vmatpush1.bf16.msra.mxu0 0
        %2945 = vmatprep.subr.bf16.mxu0 0
        %2946 = vmatpush1.bf16.msra.mxu0 0
        %2947 = vmatprep.subr.bf16.mxu0 0
        %2948 = vmatpush1.bf16.msra.mxu0 0
        %2949 = vmatprep.subr.bf16.mxu0 0
        %2950 = vmatpush1.bf16.msra.mxu0 %v2935
        %2951 = vmatprep.subr.bf16.mxu0 0
        %2952 = vmatpush1.bf16.msra.mxu0 %v2825
        %2953 = vmatprep.subr.bf16.mxu0 0
        %2954 = vmatpush2.bf16.msra.mxu0 0
        %2955 = vmatprep.subr.bf16.mxu0 0
        %2956 = vmatpush2.bf16.msra.mxu0 0
        %2957 = vmatprep.subr.bf16.mxu0 0
        %2958 = vmatpush2.bf16.msra.mxu0 0
        %2959 = vmatprep.subr.bf16.mxu0 0
        %2960 = vmatpush2.bf16.msra.mxu0 0
        %2961 = vmatprep.subr.bf16.mxu0 0
        %2962 = vmatpush2.bf16.msra.mxu0 0
        %2963 = vmatprep.subr.bf16.mxu0 0
        %2964 = vmatpush2.bf16.msra.mxu0 0
        %2965 = vmatprep.subr.bf16.mxu0 0
        %2966 = vmatpush2.bf16.msra.mxu0 0
        %2967 = vmatprep.subr.bf16.mxu0 0
        %2968 = vmatpush2.bf16.msra.mxu0 0
        %2969 = vmatprep.mubr.bf16.mxu0 0
        %2970 = vmatmul.mubr.bf16.gmra.mxu0 %v2929
        %v2971 = vpop.f32.mrf.mxu0
        %v2972 = vadd.f32 0.0, %v2971
        %v2973 = vpop.f32.mrf.mxu0
        %v2974 = vpop.f32.mrf.mxu0
        %v2975 = vadd.f32 0.0, %v2974
        %v2976 = vpop.f32.mrf.mxu0
        %2977 = vmatprep.mubr.bf16.mxu0 0
        %2978 = vmatmul.mubr.bf16.gmra.mxu0 %v2932
        %v2979 = vpop.f32.mrf.mxu0
        %v2980 = vadd.f32 0.0, %v2979
        %v2981 = vpop.f32.mrf.mxu0
        %v2982 = vpop.f32.mrf.mxu0
        %v2983 = vpop.f32.mrf.mxu0
        %2984 = vdwg.mxu0
        %2985 = vst.msk [vmem:[#allocation2] sm:$0xff] %vm1514, %v2972
        %2986 = vst.msk [vmem:[#allocation2 + $0x8] sm:$0xff] %vm1514, %v2975
        %2987 = vst.msk [vmem:[#allocation2 + $0x10] sm:$0xff] %vm1514, %v2980
        %2990 = vrot.lane.b32.xlu0 %v2821, 96
        %v2991 = vpop.permute.xlu0 %2990
        %2992 = vrot.lane.b32.xlu0 %v2822, 96
        %v2993 = vpop.permute.xlu0 %2992
        %2996 = vrot.lane.b32.xlu0 %v2823, 96
        %v2997 = vpop.permute.xlu0 %2996
        %2998 = vrot.lane.b32.xlu0 %v2824, 96
        %v2999 = vpop.permute.xlu0 %2998
        %v3001 = vsel %vm1514, %v2991, 0
        %v3004 = vsel %vm1514, %v2993, 0
        %v3007 = vsel %vm1514, %v2997, 0
        %v3010 = vsel %vm1514, %v2999, 0
        %3012 = vmatprep.subr.bf16.mxu0 0
        %3013 = vmatpush1.bf16.xpose.msra.mxu0 0
        %3014 = vmatprep.subr.bf16.mxu0 0
        %3015 = vmatpush1.bf16.xpose.msra.mxu0 0
        %3016 = vmatprep.subr.bf16.mxu0 0
        %3017 = vmatpush1.bf16.xpose.msra.mxu0 0
        %3018 = vmatprep.subr.bf16.mxu0 0
        %3019 = vmatpush1.bf16.xpose.msra.mxu0 0
        %3020 = vmatprep.subr.bf16.mxu0 0
        %3021 = vmatpush1.bf16.xpose.msra.mxu0 0
        %3022 = vmatprep.subr.bf16.mxu0 0
        %3023 = vmatpush1.bf16.xpose.msra.mxu0 0
        %3024 = vmatprep.subr.bf16.mxu0 0
        %3025 = vmatpush1.bf16.xpose.msra.mxu0 %v3010
        %3026 = vmatprep.subr.bf16.mxu0 0
        %3027 = vmatpush1.bf16.xpose.msra.mxu0 %v3007
        %3028 = vmatprep.subr.bf16.mxu0 0
        %3029 = vmatpush2.bf16.xpose.msra.mxu0 0
        %3030 = vmatprep.subr.bf16.mxu0 0
        %3031 = vmatpush2.bf16.xpose.msra.mxu0 0
        %3032 = vmatprep.subr.bf16.mxu0 0
        %3033 = vmatpush2.bf16.xpose.msra.mxu0 0
        %3034 = vmatprep.subr.bf16.mxu0 0
        %3035 = vmatpush2.bf16.xpose.msra.mxu0 0
        %3036 = vmatprep.subr.bf16.mxu0 0
        %3037 = vmatpush2.bf16.xpose.msra.mxu0 0
        %3038 = vmatprep.subr.bf16.mxu0 0
        %3039 = vmatpush2.bf16.xpose.msra.mxu0 0
        %3040 = vmatprep.subr.bf16.mxu0 0
        %3041 = vmatpush2.bf16.xpose.msra.mxu0 0
        %3042 = vmatprep.subr.bf16.mxu0 0
        %3043 = vmatpush2.bf16.xpose.msra.mxu0 0
        %3044 = vmatprep.mubr.bf16.mxu0 0
        %3045 = vmatmul.mubr.bf16.gmra.mxu0 %v3001
        %v3046 = vpop.f32.mrf.mxu0
        %v3047 = vadd.f32 0.0, %v3046
        %v3048 = vpop.f32.mrf.mxu0
        %v3049 = vpop.f32.mrf.mxu0
        %v3050 = vadd.f32 0.0, %v3049
        %v3051 = vpop.f32.mrf.mxu0
        %3052 = vmatprep.mubr.bf16.mxu0 0
        %3053 = vmatmul.mubr.bf16.gmra.mxu0 %v3004
        %v3054 = vpop.f32.mrf.mxu0
        %v3055 = vadd.f32 0.0, %v3054
        %v3056 = vpop.f32.mrf.mxu0
        %v3057 = vpop.f32.mrf.mxu0
        %v3058 = vpop.f32.mrf.mxu0
        %3059 = vdwg.mxu0
        %v3060 = vmul.f32 %v3047, 0.17677669
        %v3061 = vmul.f32 %v3050, 0.17677669
        %v3062 = vmul.f32 %v3055, 0.17677669
        %v3063 = vadd.f32 %v3060, %v1044
        %v3064 = vadd.f32 %v3061, %v1045
        %v3065 = vadd.f32 %v3062, %v1046
        %v3066 = vsel %vm1171, %v3063, -inf
        %3067 = vmax.xlane.f32.xlu0 %v3066
        %v3068 = vpop.xlane.xlu0 %3067
        %v3069 = vsel %vm1171, %v3064, -inf
        %3070 = vmax.xlane.f32.xlu0 %v3069
        %v3071 = vpop.xlane.xlu0 %3070
        %v3072 = vsel %vm1171, %v3065, -inf
        %3073 = vmax.xlane.f32.xlu0 %v3072
        %v3074 = vpop.xlane.xlu0 %3073
        %v3075 = vsub.f32 %v3063, %v3068
        %v3076 = vsub.f32 %v3064, %v3071
        %v3077 = vsub.f32 %v3065, %v3074
        %v3078 = vmul.f32 %v3075, 1.442695
        %v3079 = vpow.pop %v3078
        %v3080 = vmul.f32 %v3076, 1.442695
        %v3081 = vpow.pop %v3080
        %v3082 = vmul.f32 %v3077, 1.442695
        %v3083 = vpow.pop %v3082
        %v3084 = vsel %vm1171, %v3079, 0.0
        %3085 = vadd.xlane.f32.xlu0 %v3084
        %v3086 = vpop.xlane.xlu0 %3085
        %v3087 = vsel %vm1171, %v3081, 0.0
        %3088 = vadd.xlane.f32.xlu0 %v3087
        %v3089 = vpop.xlane.xlu0 %3088
        %v3090 = vsel %vm1171, %v3083, 0.0
        %3091 = vadd.xlane.f32.xlu0 %v3090
        %v3092 = vpop.xlane.xlu0 %3091
        %v3093 = vrcp.pop %v3086
        %v3094 = vmul.f32 %v3079, %v3093
        %v3095 = vrcp.pop %v3089
        %v3096 = vmul.f32 %v3081, %v3095
        %v3097 = vrcp.pop %v3092
        %v3098 = vmul.f32 %v3083, %v3097
        %v3099 = vpack.c.bf16 %v3096, %v3094
        %v3100 = vpack.c.bf16 %v3098, %v3098
        %3103 = vrot.lane.b32.xlu0 %v2825, 96
        %v3104 = vpop.permute.xlu0 %3103
        %3105 = vrot.lane.b32.xlu0 %v2826, 96
        %v3106 = vpop.permute.xlu0 %3105
        %v3109 = vsel %vm1171, %v3099, 0
        %v3112 = vsel %vm1171, %v3100, 0
        %v3115 = vsel %vm1178, %v3106, 0
        %3117 = vmatprep.subr.bf16.mxu0 0
        %3118 = vmatpush1.bf16.msra.mxu0 0
        %3119 = vmatprep.subr.bf16.mxu0 0
        %3120 = vmatpush1.bf16.msra.mxu0 0
        %3121 = vmatprep.subr.bf16.mxu0 0
        %3122 = vmatpush1.bf16.msra.mxu0 0
        %3123 = vmatprep.subr.bf16.mxu0 0
        %3124 = vmatpush1.bf16.msra.mxu0 0
        %3125 = vmatprep.subr.bf16.mxu0 0
        %3126 = vmatpush1.bf16.msra.mxu0 0
        %3127 = vmatprep.subr.bf16.mxu0 0
        %3128 = vmatpush1.bf16.msra.mxu0 0
        %3129 = vmatprep.subr.bf16.mxu0 0
        %3130 = vmatpush1.bf16.msra.mxu0 %v3115
        %3131 = vmatprep.subr.bf16.mxu0 0
        %3132 = vmatpush1.bf16.msra.mxu0 %v3104
        %3133 = vmatprep.subr.bf16.mxu0 0
        %3134 = vmatpush2.bf16.msra.mxu0 0
        %3135 = vmatprep.subr.bf16.mxu0 0
        %3136 = vmatpush2.bf16.msra.mxu0 0
        %3137 = vmatprep.subr.bf16.mxu0 0
        %3138 = vmatpush2.bf16.msra.mxu0 0
        %3139 = vmatprep.subr.bf16.mxu0 0
        %3140 = vmatpush2.bf16.msra.mxu0 0
        %3141 = vmatprep.subr.bf16.mxu0 0
        %3142 = vmatpush2.bf16.msra.mxu0 0
        %3143 = vmatprep.subr.bf16.mxu0 0
        %3144 = vmatpush2.bf16.msra.mxu0 0
        %3145 = vmatprep.subr.bf16.mxu0 0
        %3146 = vmatpush2.bf16.msra.mxu0 0
        %3147 = vmatprep.subr.bf16.mxu0 0
        %3148 = vmatpush2.bf16.msra.mxu0 0
        %3149 = vmatprep.mubr.bf16.mxu0 0
        %3150 = vmatmul.mubr.bf16.gmra.mxu0 %v3109
        %v3151 = vpop.f32.mrf.mxu0
        %v3152 = vadd.f32 0.0, %v3151
        %v3153 = vpop.f32.mrf.mxu0
        %v3154 = vpop.f32.mrf.mxu0
        %v3155 = vadd.f32 0.0, %v3154
        %v3156 = vpop.f32.mrf.mxu0
        %3157 = vmatprep.mubr.bf16.mxu0 0
        %3158 = vmatmul.mubr.bf16.gmra.mxu0 %v3112
        %v3159 = vpop.f32.mrf.mxu0
        %v3160 = vadd.f32 0.0, %v3159
        %v3161 = vpop.f32.mrf.mxu0
        %v3162 = vpop.f32.mrf.mxu0
        %v3163 = vpop.f32.mrf.mxu0
        %3164 = vdwg.mxu0
        %3168 = vrot.lane.b32.xlu0 %v3152, 32
        %v3169 = vpop.permute.xlu0 %3168
        %3170 = vrot.lane.b32.xlu0 %v3155, 32
        %v3171 = vpop.permute.xlu0 %3170
        %3172 = vrot.lane.b32.xlu0 %v3160, 32
        %v3173 = vpop.permute.xlu0 %3172
        %3177 = vst.msk [vmem:[#allocation2] sm:$0xff] %vm1865, %v3169
        %3178 = vst.msk [vmem:[#allocation2 + $0x8] sm:$0xff] %vm1865, %v3171
        %3179 = vst.msk [vmem:[#allocation2 + $0x10] sm:$0xff] %vm1865, %v3173
        %3180 = vrot.lane.b32.xlu0 %v2821, 64
        %v3181 = vpop.permute.xlu0 %3180
        %3182 = vrot.lane.b32.xlu0 %v2822, 64
        %v3183 = vpop.permute.xlu0 %3182
        %3184 = vrot.lane.b32.xlu0 %v2823, 64
        %v3185 = vpop.permute.xlu0 %3184
        %3186 = vrot.lane.b32.xlu0 %v2824, 64
        %v3187 = vpop.permute.xlu0 %3186
        %v3189 = vsel %vm1514, %v3181, 0
        %v3192 = vsel %vm1514, %v3183, 0
        %v3195 = vsel %vm1514, %v3185, 0
        %v3198 = vsel %vm1514, %v3187, 0
        %3200 = vmatprep.subr.bf16.mxu0 0
        %3201 = vmatpush1.bf16.xpose.msra.mxu0 0
        %3202 = vmatprep.subr.bf16.mxu0 0
        %3203 = vmatpush1.bf16.xpose.msra.mxu0 0
        %3204 = vmatprep.subr.bf16.mxu0 0
        %3205 = vmatpush1.bf16.xpose.msra.mxu0 0
        %3206 = vmatprep.subr.bf16.mxu0 0
        %3207 = vmatpush1.bf16.xpose.msra.mxu0 0
        %3208 = vmatprep.subr.bf16.mxu0 0
        %3209 = vmatpush1.bf16.xpose.msra.mxu0 0
        %3210 = vmatprep.subr.bf16.mxu0 0
        %3211 = vmatpush1.bf16.xpose.msra.mxu0 0
        %3212 = vmatprep.subr.bf16.mxu0 0
        %3213 = vmatpush1.bf16.xpose.msra.mxu0 %v3198
        %3214 = vmatprep.subr.bf16.mxu0 0
        %3215 = vmatpush1.bf16.xpose.msra.mxu0 %v3195
        %3216 = vmatprep.subr.bf16.mxu0 0
        %3217 = vmatpush2.bf16.xpose.msra.mxu0 0
        %3218 = vmatprep.subr.bf16.mxu0 0
        %3219 = vmatpush2.bf16.xpose.msra.mxu0 0
        %3220 = vmatprep.subr.bf16.mxu0 0
        %3221 = vmatpush2.bf16.xpose.msra.mxu0 0
        %3222 = vmatprep.subr.bf16.mxu0 0
        %3223 = vmatpush2.bf16.xpose.msra.mxu0 0
        %3224 = vmatprep.subr.bf16.mxu0 0
        %3225 = vmatpush2.bf16.xpose.msra.mxu0 0
        %3226 = vmatprep.subr.bf16.mxu0 0
        %3227 = vmatpush2.bf16.xpose.msra.mxu0 0
        %3228 = vmatprep.subr.bf16.mxu0 0
        %3229 = vmatpush2.bf16.xpose.msra.mxu0 0
        %3230 = vmatprep.subr.bf16.mxu0 0
        %3231 = vmatpush2.bf16.xpose.msra.mxu0 0
        %3232 = vmatprep.mubr.bf16.mxu0 0
        %3233 = vmatmul.mubr.bf16.gmra.mxu0 %v3189
        %v3234 = vpop.f32.mrf.mxu0
        %v3235 = vadd.f32 0.0, %v3234
        %v3236 = vpop.f32.mrf.mxu0
        %v3237 = vpop.f32.mrf.mxu0
        %v3238 = vadd.f32 0.0, %v3237
        %v3239 = vpop.f32.mrf.mxu0
        %3240 = vmatprep.mubr.bf16.mxu0 0
        %3241 = vmatmul.mubr.bf16.gmra.mxu0 %v3192
        %v3242 = vpop.f32.mrf.mxu0
        %v3243 = vadd.f32 0.0, %v3242
        %v3244 = vpop.f32.mrf.mxu0
        %v3245 = vpop.f32.mrf.mxu0
        %v3246 = vpop.f32.mrf.mxu0
        %3247 = vdwg.mxu0
        %v3248 = vmul.f32 %v3235, 0.17677669
        %v3249 = vmul.f32 %v3238, 0.17677669
        %v3250 = vmul.f32 %v3243, 0.17677669
        %v3251 = vadd.f32 %v3248, %v1044
        %v3252 = vadd.f32 %v3249, %v1045
        %v3253 = vadd.f32 %v3250, %v1046
        %v3254 = vsel %vm1171, %v3251, -inf
        %3255 = vmax.xlane.f32.xlu0 %v3254
        %v3256 = vpop.xlane.xlu0 %3255
        %v3257 = vsel %vm1171, %v3252, -inf
        %3258 = vmax.xlane.f32.xlu0 %v3257
        %v3259 = vpop.xlane.xlu0 %3258
        %v3260 = vsel %vm1171, %v3253, -inf
        %3261 = vmax.xlane.f32.xlu0 %v3260
        %v3262 = vpop.xlane.xlu0 %3261
        %v3263 = vsub.f32 %v3251, %v3256
        %v3264 = vsub.f32 %v3252, %v3259
        %v3265 = vsub.f32 %v3253, %v3262
        %v3266 = vmul.f32 %v3263, 1.442695
        %v3267 = vpow.pop %v3266
        %v3268 = vmul.f32 %v3264, 1.442695
        %v3269 = vpow.pop %v3268
        %v3270 = vmul.f32 %v3265, 1.442695
        %v3271 = vpow.pop %v3270
        %v3272 = vsel %vm1171, %v3267, 0.0
        %3273 = vadd.xlane.f32.xlu0 %v3272
        %v3274 = vpop.xlane.xlu0 %3273
        %v3275 = vsel %vm1171, %v3269, 0.0
        %3276 = vadd.xlane.f32.xlu0 %v3275
        %v3277 = vpop.xlane.xlu0 %3276
        %v3278 = vsel %vm1171, %v3271, 0.0
        %3279 = vadd.xlane.f32.xlu0 %v3278
        %v3280 = vpop.xlane.xlu0 %3279
        %v3281 = vrcp.pop %v3274
        %v3282 = vmul.f32 %v3267, %v3281
        %v3283 = vrcp.pop %v3277
        %v3284 = vmul.f32 %v3269, %v3283
        %v3285 = vrcp.pop %v3280
        %v3286 = vmul.f32 %v3271, %v3285
        %v3287 = vpack.c.bf16 %v3284, %v3282
        %v3288 = vpack.c.bf16 %v3286, %v3286
        %3289 = vrot.lane.b32.xlu0 %v2825, 64
        %v3290 = vpop.permute.xlu0 %3289
        %3291 = vrot.lane.b32.xlu0 %v2826, 64
        %v3292 = vpop.permute.xlu0 %3291
        %v3295 = vsel %vm1171, %v3287, 0
        %v3298 = vsel %vm1171, %v3288, 0
        %v3301 = vsel %vm1178, %v3292, 0
        %3303 = vmatprep.subr.bf16.mxu0 0
        %3304 = vmatpush1.bf16.msra.mxu0 0
        %3305 = vmatprep.subr.bf16.mxu0 0
        %3306 = vmatpush1.bf16.msra.mxu0 0
        %3307 = vmatprep.subr.bf16.mxu0 0
        %3308 = vmatpush1.bf16.msra.mxu0 0
        %3309 = vmatprep.subr.bf16.mxu0 0
        %3310 = vmatpush1.bf16.msra.mxu0 0
        %3311 = vmatprep.subr.bf16.mxu0 0
        %3312 = vmatpush1.bf16.msra.mxu0 0
        %3313 = vmatprep.subr.bf16.mxu0 0
        %3314 = vmatpush1.bf16.msra.mxu0 0
        %3315 = vmatprep.subr.bf16.mxu0 0
        %3316 = vmatpush1.bf16.msra.mxu0 %v3301
        %3317 = vmatprep.subr.bf16.mxu0 0
        %3318 = vmatpush1.bf16.msra.mxu0 %v3290
        %3319 = vmatprep.subr.bf16.mxu0 0
        %3320 = vmatpush2.bf16.msra.mxu0 0
        %3321 = vmatprep.subr.bf16.mxu0 0
        %3322 = vmatpush2.bf16.msra.mxu0 0
        %3323 = vmatprep.subr.bf16.mxu0 0
        %3324 = vmatpush2.bf16.msra.mxu0 0
        %3325 = vmatprep.subr.bf16.mxu0 0
        %3326 = vmatpush2.bf16.msra.mxu0 0
        %3327 = vmatprep.subr.bf16.mxu0 0
        %3328 = vmatpush2.bf16.msra.mxu0 0
        %3329 = vmatprep.subr.bf16.mxu0 0
        %3330 = vmatpush2.bf16.msra.mxu0 0
        %3331 = vmatprep.subr.bf16.mxu0 0
        %3332 = vmatpush2.bf16.msra.mxu0 0
        %3333 = vmatprep.subr.bf16.mxu0 0
        %3334 = vmatpush2.bf16.msra.mxu0 0
        %3335 = vmatprep.mubr.bf16.mxu0 0
        %3336 = vmatmul.mubr.bf16.gmra.mxu0 %v3295
        %v3337 = vpop.f32.mrf.mxu0
        %v3338 = vadd.f32 0.0, %v3337
        %v3339 = vpop.f32.mrf.mxu0
        %v3340 = vpop.f32.mrf.mxu0
        %v3341 = vadd.f32 0.0, %v3340
        %v3342 = vpop.f32.mrf.mxu0
        %3343 = vmatprep.mubr.bf16.mxu0 0
        %3344 = vmatmul.mubr.bf16.gmra.mxu0 %v3298
        %v3345 = vpop.f32.mrf.mxu0
        %v3346 = vadd.f32 0.0, %v3345
        %v3347 = vpop.f32.mrf.mxu0
        %v3348 = vpop.f32.mrf.mxu0
        %v3349 = vpop.f32.mrf.mxu0
        %3350 = vdwg.mxu0
        %3354 = vrot.lane.b32.xlu0 %v3338, 64
        %v3355 = vpop.permute.xlu0 %3354
        %3356 = vrot.lane.b32.xlu0 %v3341, 64
        %v3357 = vpop.permute.xlu0 %3356
        %3358 = vrot.lane.b32.xlu0 %v3346, 64
        %v3359 = vpop.permute.xlu0 %3358
        %3363 = vst.msk [vmem:[#allocation2] sm:$0xff] %vm2052, %v3355
        %3364 = vst.msk [vmem:[#allocation2 + $0x8] sm:$0xff] %vm2052, %v3357
        %3365 = vst.msk [vmem:[#allocation2 + $0x10] sm:$0xff] %vm2052, %v3359
        %3366 = vrot.lane.b32.xlu0 %v2821, 32
        %v3367 = vpop.permute.xlu0 %3366
        %3368 = vrot.lane.b32.xlu0 %v2822, 32
        %v3369 = vpop.permute.xlu0 %3368
        %3370 = vrot.lane.b32.xlu0 %v2823, 32
        %v3371 = vpop.permute.xlu0 %3370
        %3372 = vrot.lane.b32.xlu0 %v2824, 32
        %v3373 = vpop.permute.xlu0 %3372
        %v3375 = vsel %vm1514, %v3367, 0
        %v3378 = vsel %vm1514, %v3369, 0
        %v3381 = vsel %vm1514, %v3371, 0
        %v3384 = vsel %vm1514, %v3373, 0
        %3386 = vmatprep.subr.bf16.mxu0 0
        %3387 = vmatpush1.bf16.xpose.msra.mxu0 0
        %3388 = vmatprep.subr.bf16.mxu0 0
        %3389 = vmatpush1.bf16.xpose.msra.mxu0 0
        %3390 = vmatprep.subr.bf16.mxu0 0
        %3391 = vmatpush1.bf16.xpose.msra.mxu0 0
        %3392 = vmatprep.subr.bf16.mxu0 0
        %3393 = vmatpush1.bf16.xpose.msra.mxu0 0
        %3394 = vmatprep.subr.bf16.mxu0 0
        %3395 = vmatpush1.bf16.xpose.msra.mxu0 0
        %3396 = vmatprep.subr.bf16.mxu0 0
        %3397 = vmatpush1.bf16.xpose.msra.mxu0 0
        %3398 = vmatprep.subr.bf16.mxu0 0
        %3399 = vmatpush1.bf16.xpose.msra.mxu0 %v3384
        %3400 = vmatprep.subr.bf16.mxu0 0
        %3401 = vmatpush1.bf16.xpose.msra.mxu0 %v3381
        %3402 = vmatprep.subr.bf16.mxu0 0
        %3403 = vmatpush2.bf16.xpose.msra.mxu0 0
        %3404 = vmatprep.subr.bf16.mxu0 0
        %3405 = vmatpush2.bf16.xpose.msra.mxu0 0
        %3406 = vmatprep.subr.bf16.mxu0 0
        %3407 = vmatpush2.bf16.xpose.msra.mxu0 0
        %3408 = vmatprep.subr.bf16.mxu0 0
        %3409 = vmatpush2.bf16.xpose.msra.mxu0 0
        %3410 = vmatprep.subr.bf16.mxu0 0
        %3411 = vmatpush2.bf16.xpose.msra.mxu0 0
        %3412 = vmatprep.subr.bf16.mxu0 0
        %3413 = vmatpush2.bf16.xpose.msra.mxu0 0
        %3414 = vmatprep.subr.bf16.mxu0 0
        %3415 = vmatpush2.bf16.xpose.msra.mxu0 0
        %3416 = vmatprep.subr.bf16.mxu0 0
        %3417 = vmatpush2.bf16.xpose.msra.mxu0 0
        %3418 = vmatprep.mubr.bf16.mxu0 0
        %3419 = vmatmul.mubr.bf16.gmra.mxu0 %v3375
        %v3420 = vpop.f32.mrf.mxu0
        %v3421 = vadd.f32 0.0, %v3420
        %v3422 = vpop.f32.mrf.mxu0
        %v3423 = vpop.f32.mrf.mxu0
        %v3424 = vadd.f32 0.0, %v3423
        %v3425 = vpop.f32.mrf.mxu0
        %3426 = vmatprep.mubr.bf16.mxu0 0
        %3427 = vmatmul.mubr.bf16.gmra.mxu0 %v3378
        %v3428 = vpop.f32.mrf.mxu0
        %v3429 = vadd.f32 0.0, %v3428
        %v3430 = vpop.f32.mrf.mxu0
        %v3431 = vpop.f32.mrf.mxu0
        %v3432 = vpop.f32.mrf.mxu0
        %3433 = vdwg.mxu0
        %v3434 = vmul.f32 %v3421, 0.17677669
        %v3435 = vmul.f32 %v3424, 0.17677669
        %v3436 = vmul.f32 %v3429, 0.17677669
        %v3437 = vadd.f32 %v3434, %v1044
        %v3438 = vadd.f32 %v3435, %v1045
        %v3439 = vadd.f32 %v3436, %v1046
        %v3440 = vsel %vm1171, %v3437, -inf
        %3441 = vmax.xlane.f32.xlu0 %v3440
        %v3442 = vpop.xlane.xlu0 %3441
        %v3443 = vsel %vm1171, %v3438, -inf
        %3444 = vmax.xlane.f32.xlu0 %v3443
        %v3445 = vpop.xlane.xlu0 %3444
        %v3446 = vsel %vm1171, %v3439, -inf
        %3447 = vmax.xlane.f32.xlu0 %v3446
        %v3448 = vpop.xlane.xlu0 %3447
        %v3449 = vsub.f32 %v3437, %v3442
        %v3450 = vsub.f32 %v3438, %v3445
        %v3451 = vsub.f32 %v3439, %v3448
        %v3452 = vmul.f32 %v3449, 1.442695
        %v3453 = vpow.pop %v3452
        %v3454 = vmul.f32 %v3450, 1.442695
        %v3455 = vpow.pop %v3454
        %v3456 = vmul.f32 %v3451, 1.442695
        %v3457 = vpow.pop %v3456
        %v3458 = vsel %vm1171, %v3453, 0.0
        %3459 = vadd.xlane.f32.xlu0 %v3458
        %v3460 = vpop.xlane.xlu0 %3459
        %v3461 = vsel %vm1171, %v3455, 0.0
        %3462 = vadd.xlane.f32.xlu0 %v3461
        %v3463 = vpop.xlane.xlu0 %3462
        %v3464 = vsel %vm1171, %v3457, 0.0
        %3465 = vadd.xlane.f32.xlu0 %v3464
        %v3466 = vpop.xlane.xlu0 %3465
        %v3467 = vrcp.pop %v3460
        %v3468 = vmul.f32 %v3453, %v3467
        %v3469 = vrcp.pop %v3463
        %v3470 = vmul.f32 %v3455, %v3469
        %v3471 = vrcp.pop %v3466
        %v3472 = vmul.f32 %v3457, %v3471
        %v3473 = vpack.c.bf16 %v3470, %v3468
        %v3474 = vpack.c.bf16 %v3472, %v3472
        %3475 = vrot.lane.b32.xlu0 %v2825, 32
        %v3476 = vpop.permute.xlu0 %3475
        %3477 = vrot.lane.b32.xlu0 %v2826, 32
        %v3478 = vpop.permute.xlu0 %3477
        %v3481 = vsel %vm1171, %v3473, 0
        %v3484 = vsel %vm1171, %v3474, 0
        %v3487 = vsel %vm1178, %v3478, 0
        %3489 = vmatprep.subr.bf16.mxu0 0
        %3490 = vmatpush1.bf16.msra.mxu0 0
        %3491 = vmatprep.subr.bf16.mxu0 0
        %3492 = vmatpush1.bf16.msra.mxu0 0
        %3493 = vmatprep.subr.bf16.mxu0 0
        %3494 = vmatpush1.bf16.msra.mxu0 0
        %3495 = vmatprep.subr.bf16.mxu0 0
        %3496 = vmatpush1.bf16.msra.mxu0 0
        %3497 = vmatprep.subr.bf16.mxu0 0
        %3498 = vmatpush1.bf16.msra.mxu0 0
        %3499 = vmatprep.subr.bf16.mxu0 0
        %3500 = vmatpush1.bf16.msra.mxu0 0
        %3501 = vmatprep.subr.bf16.mxu0 0
        %3502 = vmatpush1.bf16.msra.mxu0 %v3487
        %3503 = vmatprep.subr.bf16.mxu0 0
        %3504 = vmatpush1.bf16.msra.mxu0 %v3476
        %3505 = vmatprep.subr.bf16.mxu0 0
        %3506 = vmatpush2.bf16.msra.mxu0 0
        %3507 = vmatprep.subr.bf16.mxu0 0
        %3508 = vmatpush2.bf16.msra.mxu0 0
        %3509 = vmatprep.subr.bf16.mxu0 0
        %3510 = vmatpush2.bf16.msra.mxu0 0
        %3511 = vmatprep.subr.bf16.mxu0 0
        %3512 = vmatpush2.bf16.msra.mxu0 0
        %3513 = vmatprep.subr.bf16.mxu0 0
        %3514 = vmatpush2.bf16.msra.mxu0 0
        %3515 = vmatprep.subr.bf16.mxu0 0
        %3516 = vmatpush2.bf16.msra.mxu0 0
        %3517 = vmatprep.subr.bf16.mxu0 0
        %3518 = vmatpush2.bf16.msra.mxu0 0
        %3519 = vmatprep.subr.bf16.mxu0 0
        %3520 = vmatpush2.bf16.msra.mxu0 0
        %3521 = vmatprep.mubr.bf16.mxu0 0
        %3522 = vmatmul.mubr.bf16.gmra.mxu0 %v3481
        %v3523 = vpop.f32.mrf.mxu0
        %v3524 = vadd.f32 0.0, %v3523
        %v3525 = vpop.f32.mrf.mxu0
        %v3526 = vpop.f32.mrf.mxu0
        %v3527 = vadd.f32 0.0, %v3526
        %v3528 = vpop.f32.mrf.mxu0
        %3529 = vmatprep.mubr.bf16.mxu0 0
        %3530 = vmatmul.mubr.bf16.gmra.mxu0 %v3484
        %v3531 = vpop.f32.mrf.mxu0
        %v3532 = vadd.f32 0.0, %v3531
        %v3533 = vpop.f32.mrf.mxu0
        %v3534 = vpop.f32.mrf.mxu0
        %v3535 = vpop.f32.mrf.mxu0
        %3536 = vdwg.mxu0
        %3540 = vrot.lane.b32.xlu0 %v3524, 96
        %v3541 = vpop.permute.xlu0 %3540
        %3542 = vrot.lane.b32.xlu0 %v3527, 96
        %v3543 = vpop.permute.xlu0 %3542
        %3544 = vrot.lane.b32.xlu0 %v3532, 96
        %v3545 = vpop.permute.xlu0 %3544
        %3549 = vst.msk [vmem:[#allocation2] sm:$0xff] %vm2239, %v3541
        %3550 = vst.msk [vmem:[#allocation2 + $0x8] sm:$0xff] %vm2239, %v3543
        %3551 = vst.msk [vmem:[#allocation2 + $0x10] sm:$0xff] %vm2239, %v3545
        %v3552 = vld [vmem:[#allocation2] sm:$0xff]
        %v3553 = vld [vmem:[#allocation2 + $0x8] sm:$0xff]
        %v3554 = vld [vmem:[#allocation2 + $0x10] sm:$0xff]
        %v3555 = vpack.c.bf16 %v3553, %v3552
        %v3556 = vpack.c.bf16 %v3554, %v3554
        %v3557 = vld [vmem:[#allocation18] sm:$0xf]
        %v3558 = vld [vmem:[#allocation18 + $0x4] sm:$0xf]
        %v3559 = vld [vmem:[#allocation18 + $0x8] sm:$0xf]
        %v3560 = vld [vmem:[#allocation18 + $0xc] sm:$0xf]
        %v3561 = vld [vmem:[#allocation18 + $0x10] sm:$0xf]
        %v3562 = vld [vmem:[#allocation18 + $0x14] sm:$0xf]
        %v3563 = vld [vmem:[#allocation18 + $0x18] sm:$0xf]
        %v3564 = vld [vmem:[#allocation18 + $0x1c] sm:$0xf]
        %v3565 = vld [vmem:[#allocation18 + $0x20] sm:$0xf]
        %v3566 = vld [vmem:[#allocation18 + $0x24] sm:$0xf]
        %v3567 = vld [vmem:[#allocation18 + $0x28] sm:$0xf]
        %v3568 = vld [vmem:[#allocation18 + $0x2c] sm:$0xf]
        %v3569 = vld [vmem:[#allocation18 + $0x30] sm:$0xf]
        %v3570 = vld [vmem:[#allocation18 + $0x34] sm:$0xf]
        %v3571 = vld [vmem:[#allocation18 + $0x38] sm:$0xf]
        %v3572 = vld [vmem:[#allocation18 + $0x3c] sm:$0xf]
        %v3573 = vld [vmem:[%s13] sm:$0x1]
        %v3575 = vlaneseq
        %v3576 = vshrl.u32 %v3575, 7
        %v3577 = vsub.s32 0, %v3576
        %v3578 = vrot.slane %v3573, %v3577
        %v3596 = vunpack.c.l.b16 %v3557
        %v3597 = vunpack.c.l.b16 %v3558
        %v3598 = vunpack.c.l.b16 %v3559
        %v3599 = vunpack.c.l.b16 %v3560
        %v3600 = vunpack.c.l.b16 %v3561
        %v3601 = vunpack.c.l.b16 %v3562
        %v3602 = vunpack.c.l.b16 %v3563
        %v3603 = vunpack.c.l.b16 %v3564
        %v3604 = vunpack.c.l.b16 %v3565
        %v3605 = vunpack.c.l.b16 %v3566
        %v3606 = vunpack.c.l.b16 %v3567
        %v3607 = vunpack.c.l.b16 %v3568
        %v3608 = vunpack.c.l.b16 %v3569
        %v3609 = vunpack.c.l.b16 %v3570
        %v3610 = vunpack.c.l.b16 %v3571
        %v3611 = vunpack.c.l.b16 %v3572
        %v3612 = vpack.c.b16 %v3597, %v3596
        %v3613 = vpack.c.b16 %v3599, %v3598
        %v3614 = vpack.c.b16 %v3601, %v3600
        %v3615 = vpack.c.b16 %v3603, %v3602
        %v3616 = vpack.c.b16 %v3605, %v3604
        %v3617 = vpack.c.b16 %v3607, %v3606
        %v3618 = vpack.c.b16 %v3609, %v3608
        %v3619 = vpack.c.b16 %v3611, %v3610
        %3628 = vmatprep.subr.bf16.mxu0 0
        %3629 = vmatpush1.bf16.msra.mxu0 %v3619
        %3630 = vmatprep.subr.bf16.mxu0 0
        %3631 = vmatpush1.bf16.msra.mxu0 %v3618
        %3632 = vmatprep.subr.bf16.mxu0 0
        %3633 = vmatpush1.bf16.msra.mxu0 %v3617
        %3634 = vmatprep.subr.bf16.mxu0 0
        %3635 = vmatpush1.bf16.msra.mxu0 %v3616
        %3636 = vmatprep.subr.bf16.mxu0 0
        %3637 = vmatpush1.bf16.msra.mxu0 %v3615
        %3638 = vmatprep.subr.bf16.mxu0 0
        %3639 = vmatpush1.bf16.msra.mxu0 %v3614
        %3640 = vmatprep.subr.bf16.mxu0 0
        %3641 = vmatpush1.bf16.msra.mxu0 %v3613
        %3642 = vmatprep.subr.bf16.mxu0 0
        %3643 = vmatpush1.bf16.msra.mxu0 %v3612
        %3644 = vmatprep.subr.bf16.mxu0 0
        %3645 = vmatpush2.bf16.msra.mxu0 0
        %3646 = vmatprep.subr.bf16.mxu0 0
        %3647 = vmatpush2.bf16.msra.mxu0 0
        %3648 = vmatprep.subr.bf16.mxu0 0
        %3649 = vmatpush2.bf16.msra.mxu0 0
        %3650 = vmatprep.subr.bf16.mxu0 0
        %3651 = vmatpush2.bf16.msra.mxu0 0
        %3652 = vmatprep.subr.bf16.mxu0 0
        %3653 = vmatpush2.bf16.msra.mxu0 0
        %3654 = vmatprep.subr.bf16.mxu0 0
        %3655 = vmatpush2.bf16.msra.mxu0 0
        %3656 = vmatprep.subr.bf16.mxu0 0
        %3657 = vmatpush2.bf16.msra.mxu0 0
        %3658 = vmatprep.subr.bf16.mxu0 0
        %3659 = vmatpush2.bf16.msra.mxu0 0
        %3660 = vmatprep.mubr.bf16.mxu0 0
        %3661 = vmatmul.mubr.bf16.gmra.mxu0 %v3555
        %v3662 = vpop.f32.mrf.mxu0
        %v3663 = vadd.f32 %v3578, %v3662
        %v3664 = vpop.f32.mrf.mxu0
        %v3665 = vpop.f32.mrf.mxu0
        %v3666 = vadd.f32 %v3578, %v3665
        %v3667 = vpop.f32.mrf.mxu0
        %3668 = vmatprep.mubr.bf16.mxu0 0
        %3669 = vmatmul.mubr.bf16.gmra.mxu0 %v3556
        %v3670 = vpop.f32.mrf.mxu0
        %v3671 = vadd.f32 %v3578, %v3670
        %v3672 = vpop.f32.mrf.mxu0
        %v3673 = vpop.f32.mrf.mxu0
        %v3674 = vpop.f32.mrf.mxu0
        %3675 = vdwg.mxu0
        %v3676 = vadd.f32 %v3663, %v1038
        %v3677 = vadd.f32 %v3666, %v1039
        %v3678 = vadd.f32 %v3671, %v1040
        %3679 = vadd.xlane.f32.xlu0 %v3676
        %v3680 = vpop.xlane.xlu0 %3679
        %3681 = vadd.xlane.f32.xlu0 %v3677
        %v3682 = vpop.xlane.xlu0 %3681
        %3683 = vadd.xlane.f32.xlu0 %v3678
        %v3684 = vpop.xlane.xlu0 %3683
        %v3685 = vrcp.pop 128.0
        %v3686 = vmul.f32 %v3680, %v3685
        %v3687 = vmul.f32 %v3682, %v3685
        %v3688 = vmul.f32 %v3684, %v3685
        %v3689 = vsub.f32 %v3676, %v3686
        %v3690 = vsub.f32 %v3677, %v3687
        %v3691 = vsub.f32 %v3678, %v3688
        %v3692 = vmul.f32 %v3689, %v3689
        %v3693 = vmul.f32 %v3690, %v3690
        %v3694 = vmul.f32 %v3691, %v3691
        %3695 = vadd.xlane.f32.xlu0 %v3692
        %v3696 = vpop.xlane.xlu0 %3695
        %3697 = vadd.xlane.f32.xlu0 %v3693
        %v3698 = vpop.xlane.xlu0 %3697
        %3699 = vadd.xlane.f32.xlu0 %v3694
        %v3700 = vpop.xlane.xlu0 %3699
        %v3701 = vmul.f32 %v3696, %v3685
        %v3702 = vmul.f32 %v3698, %v3685
        %v3703 = vmul.f32 %v3700, %v3685
        %v3704 = vadd.f32 %v3701, 1e-05
        %v3705 = vadd.f32 %v3702, 1e-05
        %v3706 = vadd.f32 %v3703, 1e-05
        %v3707 = vrsqrt.pop %v3704
        %v3708 = vrsqrt.pop %v3705
        %v3709 = vrsqrt.pop %v3706
        %v3710 = vmul.f32 %v3689, %v3707
        %v3711 = vmul.f32 %v3690, %v3708
        %v3712 = vmul.f32 %v3691, %v3709
        %v3713 = vld [vmem:[%s18] sm:$0x1]
        %v3715 = vlaneseq
        %v3716 = vshrl.u32 %v3715, 7
        %v3717 = vsub.s32 0, %v3716
        %v3718 = vrot.slane %v3713, %v3717
        %v3720 = vmul.f32 %v3710, %v3718
        %v3721 = vmul.f32 %v3711, %v3718
        %v3722 = vmul.f32 %v3712, %v3718
        %v3723 = vld [vmem:[%s19] sm:$0x1]
        %v3725 = vlaneseq
        %v3726 = vshrl.u32 %v3725, 7
        %v3727 = vsub.s32 0, %v3726
        %v3728 = vrot.slane %v3723, %v3727
        %v3730 = vadd.f32 %v3720, %v3728
        %v3731 = vadd.f32 %v3721, %v3728
        %v3732 = vadd.f32 %v3722, %v3728
        %v3733 = vpack.c.bf16 %v3731, %v3730
        %v3734 = vpack.c.bf16 %v3732, %v3732
        %v3735 = vld [vmem:[#allocation23] sm:$0xf]
        %v3736 = vld [vmem:[#allocation23 + $0x4] sm:$0xf]
        %v3737 = vld [vmem:[#allocation23 + $0x8] sm:$0xf]
        %v3738 = vld [vmem:[#allocation23 + $0xc] sm:$0xf]
        %v3739 = vld [vmem:[#allocation23 + $0x10] sm:$0xf]
        %v3740 = vld [vmem:[#allocation23 + $0x14] sm:$0xf]
        %v3741 = vld [vmem:[#allocation23 + $0x18] sm:$0xf]
        %v3742 = vld [vmem:[#allocation23 + $0x1c] sm:$0xf]
        %v3743 = vld [vmem:[#allocation23 + $0x20] sm:$0xf]
        %v3744 = vld [vmem:[#allocation23 + $0x24] sm:$0xf]
        %v3745 = vld [vmem:[#allocation23 + $0x28] sm:$0xf]
        %v3746 = vld [vmem:[#allocation23 + $0x2c] sm:$0xf]
        %v3747 = vld [vmem:[#allocation23 + $0x30] sm:$0xf]
        %v3748 = vld [vmem:[#allocation23 + $0x34] sm:$0xf]
        %v3749 = vld [vmem:[#allocation23 + $0x38] sm:$0xf]
        %v3750 = vld [vmem:[#allocation23 + $0x3c] sm:$0xf]
        %v3751 = vld [vmem:[%s21] sm:$0x1]
        %v3753 = vlaneseq
        %v3754 = vshrl.u32 %v3753, 7
        %v3755 = vsub.s32 0, %v3754
        %v3756 = vrot.slane %v3751, %v3755
        %v3774 = vunpack.c.l.b16 %v3735
        %v3775 = vunpack.c.l.b16 %v3736
        %v3776 = vunpack.c.l.b16 %v3737
        %v3777 = vunpack.c.l.b16 %v3738
        %v3778 = vunpack.c.l.b16 %v3739
        %v3779 = vunpack.c.l.b16 %v3740
        %v3780 = vunpack.c.l.b16 %v3741
        %v3781 = vunpack.c.l.b16 %v3742
        %v3782 = vunpack.c.l.b16 %v3743
        %v3783 = vunpack.c.l.b16 %v3744
        %v3784 = vunpack.c.l.b16 %v3745
        %v3785 = vunpack.c.l.b16 %v3746
        %v3786 = vunpack.c.l.b16 %v3747
        %v3787 = vunpack.c.l.b16 %v3748
        %v3788 = vunpack.c.l.b16 %v3749
        %v3789 = vunpack.c.l.b16 %v3750
        %v3790 = vpack.c.b16 %v3775, %v3774
        %v3791 = vpack.c.b16 %v3777, %v3776
        %v3792 = vpack.c.b16 %v3779, %v3778
        %v3793 = vpack.c.b16 %v3781, %v3780
        %v3794 = vpack.c.b16 %v3783, %v3782
        %v3795 = vpack.c.b16 %v3785, %v3784
        %v3796 = vpack.c.b16 %v3787, %v3786
        %v3797 = vpack.c.b16 %v3789, %v3788
        %3806 = vmatprep.subr.bf16.mxu0 0
        %3807 = vmatpush1.bf16.msra.mxu0 %v3797
        %3808 = vmatprep.subr.bf16.mxu0 0
        %3809 = vmatpush1.bf16.msra.mxu0 %v3796
        %3810 = vmatprep.subr.bf16.mxu0 0
        %3811 = vmatpush1.bf16.msra.mxu0 %v3795
        %3812 = vmatprep.subr.bf16.mxu0 0
        %3813 = vmatpush1.bf16.msra.mxu0 %v3794
        %3814 = vmatprep.subr.bf16.mxu0 0
        %3815 = vmatpush1.bf16.msra.mxu0 %v3793
        %3816 = vmatprep.subr.bf16.mxu0 0
        %3817 = vmatpush1.bf16.msra.mxu0 %v3792
        %3818 = vmatprep.subr.bf16.mxu0 0
        %3819 = vmatpush1.bf16.msra.mxu0 %v3791
        %3820 = vmatprep.subr.bf16.mxu0 0
        %3821 = vmatpush1.bf16.msra.mxu0 %v3790
        %3822 = vmatprep.subr.bf16.mxu0 0
        %3823 = vmatpush2.bf16.msra.mxu0 0
        %3824 = vmatprep.subr.bf16.mxu0 0
        %3825 = vmatpush2.bf16.msra.mxu0 0
        %3826 = vmatprep.subr.bf16.mxu0 0
        %3827 = vmatpush2.bf16.msra.mxu0 0
        %3828 = vmatprep.subr.bf16.mxu0 0
        %3829 = vmatpush2.bf16.msra.mxu0 0
        %3830 = vmatprep.subr.bf16.mxu0 0
        %3831 = vmatpush2.bf16.msra.mxu0 0
        %3832 = vmatprep.subr.bf16.mxu0 0
        %3833 = vmatpush2.bf16.msra.mxu0 0
        %3834 = vmatprep.subr.bf16.mxu0 0
        %3835 = vmatpush2.bf16.msra.mxu0 0
        %3836 = vmatprep.subr.bf16.mxu0 0
        %3837 = vmatpush2.bf16.msra.mxu0 0
        %3838 = vmatprep.mubr.bf16.mxu0 0
        %3839 = vmatmul.mubr.bf16.gmra.mxu0 %v3733
        %v3840 = vpop.f32.mrf.mxu0
        %v3841 = vadd.f32 %v3756, %v3840
        %v3842 = vpop.f32.mrf.mxu0
        %v3843 = vpop.f32.mrf.mxu0
        %v3844 = vadd.f32 %v3756, %v3843
        %v3845 = vpop.f32.mrf.mxu0
        %3846 = vmatprep.mubr.bf16.mxu0 0
        %3847 = vmatmul.mubr.bf16.gmra.mxu0 %v3734
        %v3848 = vpop.f32.mrf.mxu0
        %v3849 = vadd.f32 %v3756, %v3848
        %v3850 = vpop.f32.mrf.mxu0
        %v3851 = vpop.f32.mrf.mxu0
        %v3852 = vpop.f32.mrf.mxu0
        %3853 = vdwg.mxu0
        %3854 = vst [vmem:[%s1027] sm:$0xff] %v3841
        %3855 = vst [vmem:[%s1027 + $0x8] sm:$0xff] %v3844
        %3856 = vst [vmem:[%s1027 + $0x10] sm:$0xff] %v3849
        %v3857 = vpack.c.bf16 %v3677, %v3676
        %v3858 = vpack.c.bf16 %v3678, %v3678
        %v3859 = vld [vmem:[#allocation20] sm:$0xff]
        %v3860 = vld [vmem:[#allocation20 + $0x8] sm:$0xf]
        %v3861 = vld [vmem:[#allocation20 + $0xc] sm:$0xff]
        %v3862 = vld [vmem:[#allocation20 + $0x14] sm:$0xf]
        %v3863 = vld [vmem:[#allocation20 + $0x18] sm:$0xff]
        %v3864 = vld [vmem:[#allocation20 + $0x20] sm:$0xf]
        %v3865 = vld [vmem:[#allocation20 + $0x24] sm:$0xff]
        %v3866 = vld [vmem:[#allocation20 + $0x2c] sm:$0xf]
        %v3867 = vld [vmem:[#allocation20 + $0x30] sm:$0xff]
        %v3868 = vld [vmem:[#allocation20 + $0x38] sm:$0xf]
        %v3869 = vld [vmem:[#allocation20 + $0x3c] sm:$0xff]
        %v3870 = vld [vmem:[#allocation20 + $0x44] sm:$0xf]
        %v3871 = vld [vmem:[#allocation20 + $0x48] sm:$0xff]
        %v3872 = vld [vmem:[#allocation20 + $0x50] sm:$0xf]
        %v3873 = vld [vmem:[#allocation20 + $0x54] sm:$0xff]
        %v3874 = vld [vmem:[#allocation20 + $0x5c] sm:$0xf]
        %v3875 = vld [vmem:[#allocation20 + $0x60] sm:$0xff]
        %v3876 = vld [vmem:[#allocation20 + $0x68] sm:$0xf]
        %v3877 = vld [vmem:[#allocation20 + $0x6c] sm:$0xff]
        %v3878 = vld [vmem:[#allocation20 + $0x74] sm:$0xf]
        %v3879 = vld [vmem:[#allocation20 + $0x78] sm:$0xff]
        %v3880 = vld [vmem:[#allocation20 + $0x80] sm:$0xf]
        %v3881 = vld [vmem:[#allocation20 + $0x84] sm:$0xff]
        %v3882 = vld [vmem:[#allocation20 + $0x8c] sm:$0xf]
        %v3883 = vld [vmem:[#allocation20 + $0x90] sm:$0xff]
        %v3884 = vld [vmem:[#allocation20 + $0x98] sm:$0xf]
        %v3885 = vld [vmem:[#allocation20 + $0x9c] sm:$0xff]
        %v3886 = vld [vmem:[#allocation20 + $0xa4] sm:$0xf]
        %v3887 = vld [vmem:[#allocation20 + $0xa8] sm:$0xff]
        %v3888 = vld [vmem:[#allocation20 + $0xb0] sm:$0xf]
        %v3889 = vld [vmem:[#allocation20 + $0xb4] sm:$0xff]
        %v3890 = vld [vmem:[#allocation20 + $0xbc] sm:$0xf]
        %v3891 = vld [vmem:[%s15] sm:$0x7]
        %v3893 = vlaneseq
        %v3894 = vshrl.u32 %v3893, 7
        %v3895 = vsub.s32 0, %v3894
        %v3896 = vrot.slane %v3891, %v3895
        %v3897 = vlaneseq
        %v3898 = vshrl.u32 %v3897, 7
        %v3899 = vsub.s32 1, %v3898
        %v3900 = vrot.slane %v3891, %v3899
        %v3901 = vlaneseq
        %v3902 = vshrl.u32 %v3901, 7
        %v3903 = vsub.s32 2, %v3902
        %v3904 = vrot.slane %v3891, %v3903
        %v3940 = vunpack.c.l.b16 %v3859
        %v3941 = vunpack.c.h.b16 %v3859
        %v3942 = vunpack.c.l.b16 %v3860
        %v3943 = vunpack.c.l.b16 %v3861
        %v3944 = vunpack.c.h.b16 %v3861
        %v3945 = vunpack.c.l.b16 %v3862
        %v3946 = vunpack.c.l.b16 %v3863
        %v3947 = vunpack.c.h.b16 %v3863
        %v3948 = vunpack.c.l.b16 %v3864
        %v3949 = vunpack.c.l.b16 %v3865
        %v3950 = vunpack.c.h.b16 %v3865
        %v3951 = vunpack.c.l.b16 %v3866
        %v3952 = vunpack.c.l.b16 %v3867
        %v3953 = vunpack.c.h.b16 %v3867
        %v3954 = vunpack.c.l.b16 %v3868
        %v3955 = vunpack.c.l.b16 %v3869
        %v3956 = vunpack.c.h.b16 %v3869
        %v3957 = vunpack.c.l.b16 %v3870
        %v3958 = vunpack.c.l.b16 %v3871
        %v3959 = vunpack.c.h.b16 %v3871
        %v3960 = vunpack.c.l.b16 %v3872
        %v3961 = vunpack.c.l.b16 %v3873
        %v3962 = vunpack.c.h.b16 %v3873
        %v3963 = vunpack.c.l.b16 %v3874
        %v3964 = vunpack.c.l.b16 %v3875
        %v3965 = vunpack.c.h.b16 %v3875
        %v3966 = vunpack.c.l.b16 %v3876
        %v3967 = vunpack.c.l.b16 %v3877
        %v3968 = vunpack.c.h.b16 %v3877
        %v3969 = vunpack.c.l.b16 %v3878
        %v3970 = vunpack.c.l.b16 %v3879
        %v3971 = vunpack.c.h.b16 %v3879
        %v3972 = vunpack.c.l.b16 %v3880
        %v3973 = vunpack.c.l.b16 %v3881
        %v3974 = vunpack.c.h.b16 %v3881
        %v3975 = vunpack.c.l.b16 %v3882
        %v3976 = vunpack.c.l.b16 %v3883
        %v3977 = vunpack.c.h.b16 %v3883
        %v3978 = vunpack.c.l.b16 %v3884
        %v3979 = vunpack.c.l.b16 %v3885
        %v3980 = vunpack.c.h.b16 %v3885
        %v3981 = vunpack.c.l.b16 %v3886
        %v3982 = vunpack.c.l.b16 %v3887
        %v3983 = vunpack.c.h.b16 %v3887
        %v3984 = vunpack.c.l.b16 %v3888
        %v3985 = vunpack.c.l.b16 %v3889
        %v3986 = vunpack.c.h.b16 %v3889
        %v3987 = vunpack.c.l.b16 %v3890
        %v3988 = vpack.c.b16 %v3943, %v3940
        %v3989 = vpack.c.b16 %v3944, %v3941
        %v3990 = vpack.c.b16 %v3945, %v3942
        %v3991 = vpack.c.b16 %v3949, %v3946
        %v3992 = vpack.c.b16 %v3950, %v3947
        %v3993 = vpack.c.b16 %v3951, %v3948
        %v3994 = vpack.c.b16 %v3955, %v3952
        %v3995 = vpack.c.b16 %v3956, %v3953
        %v3996 = vpack.c.b16 %v3957, %v3954
        %v3997 = vpack.c.b16 %v3961, %v3958
        %v3998 = vpack.c.b16 %v3962, %v3959
        %v3999 = vpack.c.b16 %v3963, %v3960
        %v4000 = vpack.c.b16 %v3967, %v3964
        %v4001 = vpack.c.b16 %v3968, %v3965
        %v4002 = vpack.c.b16 %v3969, %v3966
        %v4003 = vpack.c.b16 %v3973, %v3970
        %v4004 = vpack.c.b16 %v3974, %v3971
        %v4005 = vpack.c.b16 %v3975, %v3972
        %v4006 = vpack.c.b16 %v3979, %v3976
        %v4007 = vpack.c.b16 %v3980, %v3977
        %v4008 = vpack.c.b16 %v3981, %v3978
        %v4009 = vpack.c.b16 %v3985, %v3982
        %v4010 = vpack.c.b16 %v3986, %v3983
        %v4011 = vpack.c.b16 %v3987, %v3984
        %4036 = vmatprep.subr.bf16.mxu0 %v4010
        %4037 = vmatpush1.bf16.msra.mxu0 %v4009
        %4038 = vmatprep.subr.bf16.mxu0 %v4007
        %4039 = vmatpush1.bf16.msra.mxu0 %v4006
        %4040 = vmatprep.subr.bf16.mxu0 %v4004
        %4041 = vmatpush1.bf16.msra.mxu0 %v4003
        %4042 = vmatprep.subr.bf16.mxu0 %v4001
        %4043 = vmatpush1.bf16.msra.mxu0 %v4000
        %4044 = vmatprep.subr.bf16.mxu0 %v3998
        %4045 = vmatpush1.bf16.msra.mxu0 %v3997
        %4046 = vmatprep.subr.bf16.mxu0 %v3995
        %4047 = vmatpush1.bf16.msra.mxu0 %v3994
        %4048 = vmatprep.subr.bf16.mxu0 %v3992
        %4049 = vmatpush1.bf16.msra.mxu0 %v3991
        %4050 = vmatprep.subr.bf16.mxu0 %v3989
        %4051 = vmatpush1.bf16.msra.mxu0 %v3988
        %4052 = vmatprep.subr.bf16.mxu0 0
        %4053 = vmatpush2.bf16.msra.mxu0 0
        %4054 = vmatprep.subr.bf16.mxu0 0
        %4055 = vmatpush2.bf16.msra.mxu0 0
        %4056 = vmatprep.subr.bf16.mxu0 0
        %4057 = vmatpush2.bf16.msra.mxu0 0
        %4058 = vmatprep.subr.bf16.mxu0 0
        %4059 = vmatpush2.bf16.msra.mxu0 0
        %4060 = vmatprep.subr.bf16.mxu0 0
        %4061 = vmatpush2.bf16.msra.mxu0 0
        %4062 = vmatprep.subr.bf16.mxu0 0
        %4063 = vmatpush2.bf16.msra.mxu0 0
        %4064 = vmatprep.subr.bf16.mxu0 0
        %4065 = vmatpush2.bf16.msra.mxu0 0
        %4066 = vmatprep.subr.bf16.mxu0 0
        %4067 = vmatpush2.bf16.msra.mxu0 0
        %4068 = vmatprep.mubr.bf16.mxu0 0
        %4069 = vmatmul.mubr.bf16.gmra.mxu0 %v3857
        %v4070 = vpop.f32.mrf.mxu0
        %v4071 = vadd.f32 %v3896, %v4070
        %v4072 = vpop.f32.mrf.mxu0
        %v4073 = vadd.f32 %v3900, %v4072
        %v4074 = vpop.f32.mrf.mxu0
        %v4075 = vadd.f32 %v3896, %v4074
        %v4076 = vpop.f32.mrf.mxu0
        %v4077 = vadd.f32 %v3900, %v4076
        %4078 = vmatprep.mubr.bf16.mxu0 0
        %4079 = vmatmul.mubr.bf16.gmra.mxu0 %v3858
        %v4080 = vpop.f32.mrf.mxu0
        %v4081 = vadd.f32 %v3896, %v4080
        %v4082 = vpop.f32.mrf.mxu0
        %v4083 = vadd.f32 %v3900, %v4082
        %v4084 = vpop.f32.mrf.mxu0
        %v4085 = vpop.f32.mrf.mxu0
        %4086 = vdwg.mxu0
        %4087 = vmatprep.subr.bf16.mxu0 0
        %4088 = vmatpush1.bf16.msra.mxu0 %v4011
        %4089 = vmatprep.subr.bf16.mxu0 0
        %4090 = vmatpush1.bf16.msra.mxu0 %v4008
        %4091 = vmatprep.subr.bf16.mxu0 0
        %4092 = vmatpush1.bf16.msra.mxu0 %v4005
        %4093 = vmatprep.subr.bf16.mxu0 0
        %4094 = vmatpush1.bf16.msra.mxu0 %v4002
        %4095 = vmatprep.subr.bf16.mxu0 0
        %4096 = vmatpush1.bf16.msra.mxu0 %v3999
        %4097 = vmatprep.subr.bf16.mxu0 0
        %4098 = vmatpush1.bf16.msra.mxu0 %v3996
        %4099 = vmatprep.subr.bf16.mxu0 0
        %4100 = vmatpush1.bf16.msra.mxu0 %v3993
        %4101 = vmatprep.subr.bf16.mxu0 0
        %4102 = vmatpush1.bf16.msra.mxu0 %v3990
        %4103 = vmatprep.subr.bf16.mxu0 0
        %4104 = vmatpush2.bf16.msra.mxu0 0
        %4105 = vmatprep.subr.bf16.mxu0 0
        %4106 = vmatpush2.bf16.msra.mxu0 0
        %4107 = vmatprep.subr.bf16.mxu0 0
        %4108 = vmatpush2.bf16.msra.mxu0 0
        %4109 = vmatprep.subr.bf16.mxu0 0
        %4110 = vmatpush2.bf16.msra.mxu0 0
        %4111 = vmatprep.subr.bf16.mxu0 0
        %4112 = vmatpush2.bf16.msra.mxu0 0
        %4113 = vmatprep.subr.bf16.mxu0 0
        %4114 = vmatpush2.bf16.msra.mxu0 0
        %4115 = vmatprep.subr.bf16.mxu0 0
        %4116 = vmatpush2.bf16.msra.mxu0 0
        %4117 = vmatprep.subr.bf16.mxu0 0
        %4118 = vmatpush2.bf16.msra.mxu0 0
        %4119 = vmatprep.mubr.bf16.mxu0 0
        %4120 = vmatmul.mubr.bf16.gmra.mxu0 %v3857
        %v4121 = vpop.f32.mrf.mxu0
        %v4122 = vadd.f32 %v3904, %v4121
        %v4123 = vpop.f32.mrf.mxu0
        %v4124 = vpop.f32.mrf.mxu0
        %v4125 = vadd.f32 %v3904, %v4124
        %v4126 = vpop.f32.mrf.mxu0
        %4127 = vmatprep.mubr.bf16.mxu0 0
        %4128 = vmatmul.mubr.bf16.gmra.mxu0 %v3858
        %v4129 = vpop.f32.mrf.mxu0
        %v4130 = vadd.f32 %v3904, %v4129
        %v4131 = vpop.f32.mrf.mxu0
        %v4132 = vpop.f32.mrf.mxu0
        %v4133 = vpop.f32.mrf.mxu0
        %4134 = vdwg.mxu0
        %v4135 = vpack.c.bf16 %v4075, %v4071
        %v4136 = vpack.c.bf16 %v4081, %v4081
        %v4137 = vpack.c.bf16 %v4077, %v4073
        %v4138 = vpack.c.bf16 %v4083, %v4083
        %v4139 = vpack.c.bf16 %v4125, %v4122
        %v4140 = vpack.c.bf16 %v4130, %v4130
        %v4142 = vsel %vm1514, %v4135, 0
        %v4145 = vsel %vm1514, %v4136, 0
        %v4148 = vsel %vm1514, %v4137, 0
        %v4151 = vsel %vm1514, %v4138, 0
        %4153 = vmatprep.subr.bf16.mxu0 0
        %4154 = vmatpush1.bf16.xpose.msra.mxu0 0
        %4155 = vmatprep.subr.bf16.mxu0 0
        %4156 = vmatpush1.bf16.xpose.msra.mxu0 0
        %4157 = vmatprep.subr.bf16.mxu0 0
        %4158 = vmatpush1.bf16.xpose.msra.mxu0 0
        %4159 = vmatprep.subr.bf16.mxu0 0
        %4160 = vmatpush1.bf16.xpose.msra.mxu0 0
        %4161 = vmatprep.subr.bf16.mxu0 0
        %4162 = vmatpush1.bf16.xpose.msra.mxu0 0
        %4163 = vmatprep.subr.bf16.mxu0 0
        %4164 = vmatpush1.bf16.xpose.msra.mxu0 0
        %4165 = vmatprep.subr.bf16.mxu0 0
        %4166 = vmatpush1.bf16.xpose.msra.mxu0 %v4151
        %4167 = vmatprep.subr.bf16.mxu0 0
        %4168 = vmatpush1.bf16.xpose.msra.mxu0 %v4148
        %4169 = vmatprep.subr.bf16.mxu0 0
        %4170 = vmatpush2.bf16.xpose.msra.mxu0 0
        %4171 = vmatprep.subr.bf16.mxu0 0
        %4172 = vmatpush2.bf16.xpose.msra.mxu0 0
        %4173 = vmatprep.subr.bf16.mxu0 0
        %4174 = vmatpush2.bf16.xpose.msra.mxu0 0
        %4175 = vmatprep.subr.bf16.mxu0 0
        %4176 = vmatpush2.bf16.xpose.msra.mxu0 0
        %4177 = vmatprep.subr.bf16.mxu0 0
        %4178 = vmatpush2.bf16.xpose.msra.mxu0 0
        %4179 = vmatprep.subr.bf16.mxu0 0
        %4180 = vmatpush2.bf16.xpose.msra.mxu0 0
        %4181 = vmatprep.subr.bf16.mxu0 0
        %4182 = vmatpush2.bf16.xpose.msra.mxu0 0
        %4183 = vmatprep.subr.bf16.mxu0 0
        %4184 = vmatpush2.bf16.xpose.msra.mxu0 0
        %4185 = vmatprep.mubr.bf16.mxu0 0
        %4186 = vmatmul.mubr.bf16.gmra.mxu0 %v4142
        %v4187 = vpop.f32.mrf.mxu0
        %v4188 = vadd.f32 0.0, %v4187
        %v4189 = vpop.f32.mrf.mxu0
        %v4190 = vpop.f32.mrf.mxu0
        %v4191 = vadd.f32 0.0, %v4190
        %v4192 = vpop.f32.mrf.mxu0
        %4193 = vmatprep.mubr.bf16.mxu0 0
        %4194 = vmatmul.mubr.bf16.gmra.mxu0 %v4145
        %v4195 = vpop.f32.mrf.mxu0
        %v4196 = vadd.f32 0.0, %v4195
        %v4197 = vpop.f32.mrf.mxu0
        %v4198 = vpop.f32.mrf.mxu0
        %v4199 = vpop.f32.mrf.mxu0
        %4200 = vdwg.mxu0
        %v4201 = vmul.f32 %v4188, 0.17677669
        %v4202 = vmul.f32 %v4191, 0.17677669
        %v4203 = vmul.f32 %v4196, 0.17677669
        %v4204 = vadd.f32 %v4201, %v1044
        %v4205 = vadd.f32 %v4202, %v1045
        %v4206 = vadd.f32 %v4203, %v1046
        %v4207 = vsel %vm1171, %v4204, -inf
        %4208 = vmax.xlane.f32.xlu0 %v4207
        %v4209 = vpop.xlane.xlu0 %4208
        %v4210 = vsel %vm1171, %v4205, -inf
        %4211 = vmax.xlane.f32.xlu0 %v4210
        %v4212 = vpop.xlane.xlu0 %4211
        %v4213 = vsel %vm1171, %v4206, -inf
        %4214 = vmax.xlane.f32.xlu0 %v4213
        %v4215 = vpop.xlane.xlu0 %4214
        %v4216 = vsub.f32 %v4204, %v4209
        %v4217 = vsub.f32 %v4205, %v4212
        %v4218 = vsub.f32 %v4206, %v4215
        %v4219 = vmul.f32 %v4216, 1.442695
        %v4220 = vpow.pop %v4219
        %v4221 = vmul.f32 %v4217, 1.442695
        %v4222 = vpow.pop %v4221
        %v4223 = vmul.f32 %v4218, 1.442695
        %v4224 = vpow.pop %v4223
        %v4225 = vsel %vm1171, %v4220, 0.0
        %4226 = vadd.xlane.f32.xlu0 %v4225
        %v4227 = vpop.xlane.xlu0 %4226
        %v4228 = vsel %vm1171, %v4222, 0.0
        %4229 = vadd.xlane.f32.xlu0 %v4228
        %v4230 = vpop.xlane.xlu0 %4229
        %v4231 = vsel %vm1171, %v4224, 0.0
        %4232 = vadd.xlane.f32.xlu0 %v4231
        %v4233 = vpop.xlane.xlu0 %4232
        %v4234 = vrcp.pop %v4227
        %v4235 = vmul.f32 %v4220, %v4234
        %v4236 = vrcp.pop %v4230
        %v4237 = vmul.f32 %v4222, %v4236
        %v4238 = vrcp.pop %v4233
        %v4239 = vmul.f32 %v4224, %v4238
        %v4240 = vpack.c.bf16 %v4237, %v4235
        %v4241 = vpack.c.bf16 %v4239, %v4239
        %v4243 = vsel %vm1171, %v4240, 0
        %v4246 = vsel %vm1171, %v4241, 0
        %v4249 = vsel %vm1178, %v4140, 0
        %4251 = vmatprep.subr.bf16.mxu0 0
        %4252 = vmatpush1.bf16.msra.mxu0 0
        %4253 = vmatprep.subr.bf16.mxu0 0
        %4254 = vmatpush1.bf16.msra.mxu0 0
        %4255 = vmatprep.subr.bf16.mxu0 0
        %4256 = vmatpush1.bf16.msra.mxu0 0
        %4257 = vmatprep.subr.bf16.mxu0 0
        %4258 = vmatpush1.bf16.msra.mxu0 0
        %4259 = vmatprep.subr.bf16.mxu0 0
        %4260 = vmatpush1.bf16.msra.mxu0 0
        %4261 = vmatprep.subr.bf16.mxu0 0
        %4262 = vmatpush1.bf16.msra.mxu0 0
        %4263 = vmatprep.subr.bf16.mxu0 0
        %4264 = vmatpush1.bf16.msra.mxu0 %v4249
        %4265 = vmatprep.subr.bf16.mxu0 0
        %4266 = vmatpush1.bf16.msra.mxu0 %v4139
        %4267 = vmatprep.subr.bf16.mxu0 0
        %4268 = vmatpush2.bf16.msra.mxu0 0
        %4269 = vmatprep.subr.bf16.mxu0 0
        %4270 = vmatpush2.bf16.msra.mxu0 0
        %4271 = vmatprep.subr.bf16.mxu0 0
        %4272 = vmatpush2.bf16.msra.mxu0 0
        %4273 = vmatprep.subr.bf16.mxu0 0
        %4274 = vmatpush2.bf16.msra.mxu0 0
        %4275 = vmatprep.subr.bf16.mxu0 0
        %4276 = vmatpush2.bf16.msra.mxu0 0
        %4277 = vmatprep.subr.bf16.mxu0 0
        %4278 = vmatpush2.bf16.msra.mxu0 0
        %4279 = vmatprep.subr.bf16.mxu0 0
        %4280 = vmatpush2.bf16.msra.mxu0 0
        %4281 = vmatprep.subr.bf16.mxu0 0
        %4282 = vmatpush2.bf16.msra.mxu0 0
        %4283 = vmatprep.mubr.bf16.mxu0 0
        %4284 = vmatmul.mubr.bf16.gmra.mxu0 %v4243
        %v4285 = vpop.f32.mrf.mxu0
        %v4286 = vadd.f32 0.0, %v4285
        %v4287 = vpop.f32.mrf.mxu0
        %v4288 = vpop.f32.mrf.mxu0
        %v4289 = vadd.f32 0.0, %v4288
        %v4290 = vpop.f32.mrf.mxu0
        %4291 = vmatprep.mubr.bf16.mxu0 0
        %4292 = vmatmul.mubr.bf16.gmra.mxu0 %v4246
        %v4293 = vpop.f32.mrf.mxu0
        %v4294 = vadd.f32 0.0, %v4293
        %v4295 = vpop.f32.mrf.mxu0
        %v4296 = vpop.f32.mrf.mxu0
        %v4297 = vpop.f32.mrf.mxu0
        %4298 = vdwg.mxu0
        %4299 = vst.msk [vmem:[#allocation2] sm:$0xff] %vm1514, %v4286
        %4300 = vst.msk [vmem:[#allocation2 + $0x8] sm:$0xff] %vm1514, %v4289
        %4301 = vst.msk [vmem:[#allocation2 + $0x10] sm:$0xff] %vm1514, %v4294
        %4304 = vrot.lane.b32.xlu0 %v4135, 96
        %v4305 = vpop.permute.xlu0 %4304
        %4306 = vrot.lane.b32.xlu0 %v4136, 96
        %v4307 = vpop.permute.xlu0 %4306
        %4310 = vrot.lane.b32.xlu0 %v4137, 96
        %v4311 = vpop.permute.xlu0 %4310
        %4312 = vrot.lane.b32.xlu0 %v4138, 96
        %v4313 = vpop.permute.xlu0 %4312
        %v4315 = vsel %vm1514, %v4305, 0
        %v4318 = vsel %vm1514, %v4307, 0
        %v4321 = vsel %vm1514, %v4311, 0
        %v4324 = vsel %vm1514, %v4313, 0
        %4326 = vmatprep.subr.bf16.mxu0 0
        %4327 = vmatpush1.bf16.xpose.msra.mxu0 0
        %4328 = vmatprep.subr.bf16.mxu0 0
        %4329 = vmatpush1.bf16.xpose.msra.mxu0 0
        %4330 = vmatprep.subr.bf16.mxu0 0
        %4331 = vmatpush1.bf16.xpose.msra.mxu0 0
        %4332 = vmatprep.subr.bf16.mxu0 0
        %4333 = vmatpush1.bf16.xpose.msra.mxu0 0
        %4334 = vmatprep.subr.bf16.mxu0 0
        %4335 = vmatpush1.bf16.xpose.msra.mxu0 0
        %4336 = vmatprep.subr.bf16.mxu0 0
        %4337 = vmatpush1.bf16.xpose.msra.mxu0 0
        %4338 = vmatprep.subr.bf16.mxu0 0
        %4339 = vmatpush1.bf16.xpose.msra.mxu0 %v4324
        %4340 = vmatprep.subr.bf16.mxu0 0
        %4341 = vmatpush1.bf16.xpose.msra.mxu0 %v4321
        %4342 = vmatprep.subr.bf16.mxu0 0
        %4343 = vmatpush2.bf16.xpose.msra.mxu0 0
        %4344 = vmatprep.subr.bf16.mxu0 0
        %4345 = vmatpush2.bf16.xpose.msra.mxu0 0
        %4346 = vmatprep.subr.bf16.mxu0 0
        %4347 = vmatpush2.bf16.xpose.msra.mxu0 0
        %4348 = vmatprep.subr.bf16.mxu0 0
        %4349 = vmatpush2.bf16.xpose.msra.mxu0 0
        %4350 = vmatprep.subr.bf16.mxu0 0
        %4351 = vmatpush2.bf16.xpose.msra.mxu0 0
        %4352 = vmatprep.subr.bf16.mxu0 0
        %4353 = vmatpush2.bf16.xpose.msra.mxu0 0
        %4354 = vmatprep.subr.bf16.mxu0 0
        %4355 = vmatpush2.bf16.xpose.msra.mxu0 0
        %4356 = vmatprep.subr.bf16.mxu0 0
        %4357 = vmatpush2.bf16.xpose.msra.mxu0 0
        %4358 = vmatprep.mubr.bf16.mxu0 0
        %4359 = vmatmul.mubr.bf16.gmra.mxu0 %v4315
        %v4360 = vpop.f32.mrf.mxu0
        %v4361 = vadd.f32 0.0, %v4360
        %v4362 = vpop.f32.mrf.mxu0
        %v4363 = vpop.f32.mrf.mxu0
        %v4364 = vadd.f32 0.0, %v4363
        %v4365 = vpop.f32.mrf.mxu0
        %4366 = vmatprep.mubr.bf16.mxu0 0
        %4367 = vmatmul.mubr.bf16.gmra.mxu0 %v4318
        %v4368 = vpop.f32.mrf.mxu0
        %v4369 = vadd.f32 0.0, %v4368
        %v4370 = vpop.f32.mrf.mxu0
        %v4371 = vpop.f32.mrf.mxu0
        %v4372 = vpop.f32.mrf.mxu0
        %4373 = vdwg.mxu0
        %v4374 = vmul.f32 %v4361, 0.17677669
        %v4375 = vmul.f32 %v4364, 0.17677669
        %v4376 = vmul.f32 %v4369, 0.17677669
        %v4377 = vadd.f32 %v4374, %v1044
        %v4378 = vadd.f32 %v4375, %v1045
        %v4379 = vadd.f32 %v4376, %v1046
        %v4380 = vsel %vm1171, %v4377, -inf
        %4381 = vmax.xlane.f32.xlu0 %v4380
        %v4382 = vpop.xlane.xlu0 %4381
        %v4383 = vsel %vm1171, %v4378, -inf
        %4384 = vmax.xlane.f32.xlu0 %v4383
        %v4385 = vpop.xlane.xlu0 %4384
        %v4386 = vsel %vm1171, %v4379, -inf
        %4387 = vmax.xlane.f32.xlu0 %v4386
        %v4388 = vpop.xlane.xlu0 %4387
        %v4389 = vsub.f32 %v4377, %v4382
        %v4390 = vsub.f32 %v4378, %v4385
        %v4391 = vsub.f32 %v4379, %v4388
        %v4392 = vmul.f32 %v4389, 1.442695
        %v4393 = vpow.pop %v4392
        %v4394 = vmul.f32 %v4390, 1.442695
        %v4395 = vpow.pop %v4394
        %v4396 = vmul.f32 %v4391, 1.442695
        %v4397 = vpow.pop %v4396
        %v4398 = vsel %vm1171, %v4393, 0.0
        %4399 = vadd.xlane.f32.xlu0 %v4398
        %v4400 = vpop.xlane.xlu0 %4399
        %v4401 = vsel %vm1171, %v4395, 0.0
        %4402 = vadd.xlane.f32.xlu0 %v4401
        %v4403 = vpop.xlane.xlu0 %4402
        %v4404 = vsel %vm1171, %v4397, 0.0
        %4405 = vadd.xlane.f32.xlu0 %v4404
        %v4406 = vpop.xlane.xlu0 %4405
        %v4407 = vrcp.pop %v4400
        %v4408 = vmul.f32 %v4393, %v4407
        %v4409 = vrcp.pop %v4403
        %v4410 = vmul.f32 %v4395, %v4409
        %v4411 = vrcp.pop %v4406
        %v4412 = vmul.f32 %v4397, %v4411
        %v4413 = vpack.c.bf16 %v4410, %v4408
        %v4414 = vpack.c.bf16 %v4412, %v4412
        %4417 = vrot.lane.b32.xlu0 %v4139, 96
        %v4418 = vpop.permute.xlu0 %4417
        %4419 = vrot.lane.b32.xlu0 %v4140, 96
        %v4420 = vpop.permute.xlu0 %4419
        %v4423 = vsel %vm1171, %v4413, 0
        %v4426 = vsel %vm1171, %v4414, 0
        %v4429 = vsel %vm1178, %v4420, 0
        %4431 = vmatprep.subr.bf16.mxu0 0
        %4432 = vmatpush1.bf16.msra.mxu0 0
        %4433 = vmatprep.subr.bf16.mxu0 0
        %4434 = vmatpush1.bf16.msra.mxu0 0
        %4435 = vmatprep.subr.bf16.mxu0 0
        %4436 = vmatpush1.bf16.msra.mxu0 0
        %4437 = vmatprep.subr.bf16.mxu0 0
        %4438 = vmatpush1.bf16.msra.mxu0 0
        %4439 = vmatprep.subr.bf16.mxu0 0
        %4440 = vmatpush1.bf16.msra.mxu0 0
        %4441 = vmatprep.subr.bf16.mxu0 0
        %4442 = vmatpush1.bf16.msra.mxu0 0
        %4443 = vmatprep.subr.bf16.mxu0 0
        %4444 = vmatpush1.bf16.msra.mxu0 %v4429
        %4445 = vmatprep.subr.bf16.mxu0 0
        %4446 = vmatpush1.bf16.msra.mxu0 %v4418
        %4447 = vmatprep.subr.bf16.mxu0 0
        %4448 = vmatpush2.bf16.msra.mxu0 0
        %4449 = vmatprep.subr.bf16.mxu0 0
        %4450 = vmatpush2.bf16.msra.mxu0 0
        %4451 = vmatprep.subr.bf16.mxu0 0
        %4452 = vmatpush2.bf16.msra.mxu0 0
        %4453 = vmatprep.subr.bf16.mxu0 0
        %4454 = vmatpush2.bf16.msra.mxu0 0
        %4455 = vmatprep.subr.bf16.mxu0 0
        %4456 = vmatpush2.bf16.msra.mxu0 0
        %4457 = vmatprep.subr.bf16.mxu0 0
        %4458 = vmatpush2.bf16.msra.mxu0 0
        %4459 = vmatprep.subr.bf16.mxu0 0
        %4460 = vmatpush2.bf16.msra.mxu0 0
        %4461 = vmatprep.subr.bf16.mxu0 0
        %4462 = vmatpush2.bf16.msra.mxu0 0
        %4463 = vmatprep.mubr.bf16.mxu0 0
        %4464 = vmatmul.mubr.bf16.gmra.mxu0 %v4423
        %v4465 = vpop.f32.mrf.mxu0
        %v4466 = vadd.f32 0.0, %v4465
        %v4467 = vpop.f32.mrf.mxu0
        %v4468 = vpop.f32.mrf.mxu0
        %v4469 = vadd.f32 0.0, %v4468
        %v4470 = vpop.f32.mrf.mxu0
        %4471 = vmatprep.mubr.bf16.mxu0 0
        %4472 = vmatmul.mubr.bf16.gmra.mxu0 %v4426
        %v4473 = vpop.f32.mrf.mxu0
        %v4474 = vadd.f32 0.0, %v4473
        %v4475 = vpop.f32.mrf.mxu0
        %v4476 = vpop.f32.mrf.mxu0
        %v4477 = vpop.f32.mrf.mxu0
        %4478 = vdwg.mxu0
        %4482 = vrot.lane.b32.xlu0 %v4466, 32
        %v4483 = vpop.permute.xlu0 %4482
        %4484 = vrot.lane.b32.xlu0 %v4469, 32
        %v4485 = vpop.permute.xlu0 %4484
        %4486 = vrot.lane.b32.xlu0 %v4474, 32
        %v4487 = vpop.permute.xlu0 %4486
        %4491 = vst.msk [vmem:[#allocation2] sm:$0xff] %vm1865, %v4483
        %4492 = vst.msk [vmem:[#allocation2 + $0x8] sm:$0xff] %vm1865, %v4485
        %4493 = vst.msk [vmem:[#allocation2 + $0x10] sm:$0xff] %vm1865, %v4487
        %4494 = vrot.lane.b32.xlu0 %v4135, 64
        %v4495 = vpop.permute.xlu0 %4494
        %4496 = vrot.lane.b32.xlu0 %v4136, 64
        %v4497 = vpop.permute.xlu0 %4496
        %4498 = vrot.lane.b32.xlu0 %v4137, 64
        %v4499 = vpop.permute.xlu0 %4498
        %4500 = vrot.lane.b32.xlu0 %v4138, 64
        %v4501 = vpop.permute.xlu0 %4500
        %v4503 = vsel %vm1514, %v4495, 0
        %v4506 = vsel %vm1514, %v4497, 0
        %v4509 = vsel %vm1514, %v4499, 0
        %v4512 = vsel %vm1514, %v4501, 0
        %4514 = vmatprep.subr.bf16.mxu0 0
        %4515 = vmatpush1.bf16.xpose.msra.mxu0 0
        %4516 = vmatprep.subr.bf16.mxu0 0
        %4517 = vmatpush1.bf16.xpose.msra.mxu0 0
        %4518 = vmatprep.subr.bf16.mxu0 0
        %4519 = vmatpush1.bf16.xpose.msra.mxu0 0
        %4520 = vmatprep.subr.bf16.mxu0 0
        %4521 = vmatpush1.bf16.xpose.msra.mxu0 0
        %4522 = vmatprep.subr.bf16.mxu0 0
        %4523 = vmatpush1.bf16.xpose.msra.mxu0 0
        %4524 = vmatprep.subr.bf16.mxu0 0
        %4525 = vmatpush1.bf16.xpose.msra.mxu0 0
        %4526 = vmatprep.subr.bf16.mxu0 0
        %4527 = vmatpush1.bf16.xpose.msra.mxu0 %v4512
        %4528 = vmatprep.subr.bf16.mxu0 0
        %4529 = vmatpush1.bf16.xpose.msra.mxu0 %v4509
        %4530 = vmatprep.subr.bf16.mxu0 0
        %4531 = vmatpush2.bf16.xpose.msra.mxu0 0
        %4532 = vmatprep.subr.bf16.mxu0 0
        %4533 = vmatpush2.bf16.xpose.msra.mxu0 0
        %4534 = vmatprep.subr.bf16.mxu0 0
        %4535 = vmatpush2.bf16.xpose.msra.mxu0 0
        %4536 = vmatprep.subr.bf16.mxu0 0
        %4537 = vmatpush2.bf16.xpose.msra.mxu0 0
        %4538 = vmatprep.subr.bf16.mxu0 0
        %4539 = vmatpush2.bf16.xpose.msra.mxu0 0
        %4540 = vmatprep.subr.bf16.mxu0 0
        %4541 = vmatpush2.bf16.xpose.msra.mxu0 0
        %4542 = vmatprep.subr.bf16.mxu0 0
        %4543 = vmatpush2.bf16.xpose.msra.mxu0 0
        %4544 = vmatprep.subr.bf16.mxu0 0
        %4545 = vmatpush2.bf16.xpose.msra.mxu0 0
        %4546 = vmatprep.mubr.bf16.mxu0 0
        %4547 = vmatmul.mubr.bf16.gmra.mxu0 %v4503
        %v4548 = vpop.f32.mrf.mxu0
        %v4549 = vadd.f32 0.0, %v4548
        %v4550 = vpop.f32.mrf.mxu0
        %v4551 = vpop.f32.mrf.mxu0
        %v4552 = vadd.f32 0.0, %v4551
        %v4553 = vpop.f32.mrf.mxu0
        %4554 = vmatprep.mubr.bf16.mxu0 0
        %4555 = vmatmul.mubr.bf16.gmra.mxu0 %v4506
        %v4556 = vpop.f32.mrf.mxu0
        %v4557 = vadd.f32 0.0, %v4556
        %v4558 = vpop.f32.mrf.mxu0
        %v4559 = vpop.f32.mrf.mxu0
        %v4560 = vpop.f32.mrf.mxu0
        %4561 = vdwg.mxu0
        %v4562 = vmul.f32 %v4549, 0.17677669
        %v4563 = vmul.f32 %v4552, 0.17677669
        %v4564 = vmul.f32 %v4557, 0.17677669
        %v4565 = vadd.f32 %v4562, %v1044
        %v4566 = vadd.f32 %v4563, %v1045
        %v4567 = vadd.f32 %v4564, %v1046
        %v4568 = vsel %vm1171, %v4565, -inf
        %4569 = vmax.xlane.f32.xlu0 %v4568
        %v4570 = vpop.xlane.xlu0 %4569
        %v4571 = vsel %vm1171, %v4566, -inf
        %4572 = vmax.xlane.f32.xlu0 %v4571
        %v4573 = vpop.xlane.xlu0 %4572
        %v4574 = vsel %vm1171, %v4567, -inf
        %4575 = vmax.xlane.f32.xlu0 %v4574
        %v4576 = vpop.xlane.xlu0 %4575
        %v4577 = vsub.f32 %v4565, %v4570
        %v4578 = vsub.f32 %v4566, %v4573
        %v4579 = vsub.f32 %v4567, %v4576
        %v4580 = vmul.f32 %v4577, 1.442695
        %v4581 = vpow.pop %v4580
        %v4582 = vmul.f32 %v4578, 1.442695
        %v4583 = vpow.pop %v4582
        %v4584 = vmul.f32 %v4579, 1.442695
        %v4585 = vpow.pop %v4584
        %v4586 = vsel %vm1171, %v4581, 0.0
        %4587 = vadd.xlane.f32.xlu0 %v4586
        %v4588 = vpop.xlane.xlu0 %4587
        %v4589 = vsel %vm1171, %v4583, 0.0
        %4590 = vadd.xlane.f32.xlu0 %v4589
        %v4591 = vpop.xlane.xlu0 %4590
        %v4592 = vsel %vm1171, %v4585, 0.0
        %4593 = vadd.xlane.f32.xlu0 %v4592
        %v4594 = vpop.xlane.xlu0 %4593
        %v4595 = vrcp.pop %v4588
        %v4596 = vmul.f32 %v4581, %v4595
        %v4597 = vrcp.pop %v4591
        %v4598 = vmul.f32 %v4583, %v4597
        %v4599 = vrcp.pop %v4594
        %v4600 = vmul.f32 %v4585, %v4599
        %v4601 = vpack.c.bf16 %v4598, %v4596
        %v4602 = vpack.c.bf16 %v4600, %v4600
        %4603 = vrot.lane.b32.xlu0 %v4139, 64
        %v4604 = vpop.permute.xlu0 %4603
        %4605 = vrot.lane.b32.xlu0 %v4140, 64
        %v4606 = vpop.permute.xlu0 %4605
        %v4609 = vsel %vm1171, %v4601, 0
        %v4612 = vsel %vm1171, %v4602, 0
        %v4615 = vsel %vm1178, %v4606, 0
        %4617 = vmatprep.subr.bf16.mxu0 0
        %4618 = vmatpush1.bf16.msra.mxu0 0
        %4619 = vmatprep.subr.bf16.mxu0 0
        %4620 = vmatpush1.bf16.msra.mxu0 0
        %4621 = vmatprep.subr.bf16.mxu0 0
        %4622 = vmatpush1.bf16.msra.mxu0 0
        %4623 = vmatprep.subr.bf16.mxu0 0
        %4624 = vmatpush1.bf16.msra.mxu0 0
        %4625 = vmatprep.subr.bf16.mxu0 0
        %4626 = vmatpush1.bf16.msra.mxu0 0
        %4627 = vmatprep.subr.bf16.mxu0 0
        %4628 = vmatpush1.bf16.msra.mxu0 0
        %4629 = vmatprep.subr.bf16.mxu0 0
        %4630 = vmatpush1.bf16.msra.mxu0 %v4615
        %4631 = vmatprep.subr.bf16.mxu0 0
        %4632 = vmatpush1.bf16.msra.mxu0 %v4604
        %4633 = vmatprep.subr.bf16.mxu0 0
        %4634 = vmatpush2.bf16.msra.mxu0 0
        %4635 = vmatprep.subr.bf16.mxu0 0
        %4636 = vmatpush2.bf16.msra.mxu0 0
        %4637 = vmatprep.subr.bf16.mxu0 0
        %4638 = vmatpush2.bf16.msra.mxu0 0
        %4639 = vmatprep.subr.bf16.mxu0 0
        %4640 = vmatpush2.bf16.msra.mxu0 0
        %4641 = vmatprep.subr.bf16.mxu0 0
        %4642 = vmatpush2.bf16.msra.mxu0 0
        %4643 = vmatprep.subr.bf16.mxu0 0
        %4644 = vmatpush2.bf16.msra.mxu0 0
        %4645 = vmatprep.subr.bf16.mxu0 0
        %4646 = vmatpush2.bf16.msra.mxu0 0
        %4647 = vmatprep.subr.bf16.mxu0 0
        %4648 = vmatpush2.bf16.msra.mxu0 0
        %4649 = vmatprep.mubr.bf16.mxu0 0
        %4650 = vmatmul.mubr.bf16.gmra.mxu0 %v4609
        %v4651 = vpop.f32.mrf.mxu0
        %v4652 = vadd.f32 0.0, %v4651
        %v4653 = vpop.f32.mrf.mxu0
        %v4654 = vpop.f32.mrf.mxu0
        %v4655 = vadd.f32 0.0, %v4654
        %v4656 = vpop.f32.mrf.mxu0
        %4657 = vmatprep.mubr.bf16.mxu0 0
        %4658 = vmatmul.mubr.bf16.gmra.mxu0 %v4612
        %v4659 = vpop.f32.mrf.mxu0
        %v4660 = vadd.f32 0.0, %v4659
        %v4661 = vpop.f32.mrf.mxu0
        %v4662 = vpop.f32.mrf.mxu0
        %v4663 = vpop.f32.mrf.mxu0
        %4664 = vdwg.mxu0
        %4668 = vrot.lane.b32.xlu0 %v4652, 64
        %v4669 = vpop.permute.xlu0 %4668
        %4670 = vrot.lane.b32.xlu0 %v4655, 64
        %v4671 = vpop.permute.xlu0 %4670
        %4672 = vrot.lane.b32.xlu0 %v4660, 64
        %v4673 = vpop.permute.xlu0 %4672
        %4677 = vst.msk [vmem:[#allocation2] sm:$0xff] %vm2052, %v4669
        %4678 = vst.msk [vmem:[#allocation2 + $0x8] sm:$0xff] %vm2052, %v4671
        %4679 = vst.msk [vmem:[#allocation2 + $0x10] sm:$0xff] %vm2052, %v4673
        %4680 = vrot.lane.b32.xlu0 %v4135, 32
        %v4681 = vpop.permute.xlu0 %4680
        %4682 = vrot.lane.b32.xlu0 %v4136, 32
        %v4683 = vpop.permute.xlu0 %4682
        %4684 = vrot.lane.b32.xlu0 %v4137, 32
        %v4685 = vpop.permute.xlu0 %4684
        %4686 = vrot.lane.b32.xlu0 %v4138, 32
        %v4687 = vpop.permute.xlu0 %4686
        %v4689 = vsel %vm1514, %v4681, 0
        %v4692 = vsel %vm1514, %v4683, 0
        %v4695 = vsel %vm1514, %v4685, 0
        %v4698 = vsel %vm1514, %v4687, 0
        %4700 = vmatprep.subr.bf16.mxu0 0
        %4701 = vmatpush1.bf16.xpose.msra.mxu0 0
        %4702 = vmatprep.subr.bf16.mxu0 0
        %4703 = vmatpush1.bf16.xpose.msra.mxu0 0
        %4704 = vmatprep.subr.bf16.mxu0 0
        %4705 = vmatpush1.bf16.xpose.msra.mxu0 0
        %4706 = vmatprep.subr.bf16.mxu0 0
        %4707 = vmatpush1.bf16.xpose.msra.mxu0 0
        %4708 = vmatprep.subr.bf16.mxu0 0
        %4709 = vmatpush1.bf16.xpose.msra.mxu0 0
        %4710 = vmatprep.subr.bf16.mxu0 0
        %4711 = vmatpush1.bf16.xpose.msra.mxu0 0
        %4712 = vmatprep.subr.bf16.mxu0 0
        %4713 = vmatpush1.bf16.xpose.msra.mxu0 %v4698
        %4714 = vmatprep.subr.bf16.mxu0 0
        %4715 = vmatpush1.bf16.xpose.msra.mxu0 %v4695
        %4716 = vmatprep.subr.bf16.mxu0 0
        %4717 = vmatpush2.bf16.xpose.msra.mxu0 0
        %4718 = vmatprep.subr.bf16.mxu0 0
        %4719 = vmatpush2.bf16.xpose.msra.mxu0 0
        %4720 = vmatprep.subr.bf16.mxu0 0
        %4721 = vmatpush2.bf16.xpose.msra.mxu0 0
        %4722 = vmatprep.subr.bf16.mxu0 0
        %4723 = vmatpush2.bf16.xpose.msra.mxu0 0
        %4724 = vmatprep.subr.bf16.mxu0 0
        %4725 = vmatpush2.bf16.xpose.msra.mxu0 0
        %4726 = vmatprep.subr.bf16.mxu0 0
        %4727 = vmatpush2.bf16.xpose.msra.mxu0 0
        %4728 = vmatprep.subr.bf16.mxu0 0
        %4729 = vmatpush2.bf16.xpose.msra.mxu0 0
        %4730 = vmatprep.subr.bf16.mxu0 0
        %4731 = vmatpush2.bf16.xpose.msra.mxu0 0
        %4732 = vmatprep.mubr.bf16.mxu0 0
        %4733 = vmatmul.mubr.bf16.gmra.mxu0 %v4689
        %v4734 = vpop.f32.mrf.mxu0
        %v4735 = vadd.f32 0.0, %v4734
        %v4736 = vpop.f32.mrf.mxu0
        %v4737 = vpop.f32.mrf.mxu0
        %v4738 = vadd.f32 0.0, %v4737
        %v4739 = vpop.f32.mrf.mxu0
        %4740 = vmatprep.mubr.bf16.mxu0 0
        %4741 = vmatmul.mubr.bf16.gmra.mxu0 %v4692
        %v4742 = vpop.f32.mrf.mxu0
        %v4743 = vadd.f32 0.0, %v4742
        %v4744 = vpop.f32.mrf.mxu0
        %v4745 = vpop.f32.mrf.mxu0
        %v4746 = vpop.f32.mrf.mxu0
        %4747 = vdwg.mxu0
        %v4748 = vmul.f32 %v4735, 0.17677669
        %v4749 = vmul.f32 %v4738, 0.17677669
        %v4750 = vmul.f32 %v4743, 0.17677669
        %v4751 = vadd.f32 %v4748, %v1044
        %v4752 = vadd.f32 %v4749, %v1045
        %v4753 = vadd.f32 %v4750, %v1046
        %v4754 = vsel %vm1171, %v4751, -inf
        %4755 = vmax.xlane.f32.xlu0 %v4754
        %v4756 = vpop.xlane.xlu0 %4755
        %v4757 = vsel %vm1171, %v4752, -inf
        %4758 = vmax.xlane.f32.xlu0 %v4757
        %v4759 = vpop.xlane.xlu0 %4758
        %v4760 = vsel %vm1171, %v4753, -inf
        %4761 = vmax.xlane.f32.xlu0 %v4760
        %v4762 = vpop.xlane.xlu0 %4761
        %v4763 = vsub.f32 %v4751, %v4756
        %v4764 = vsub.f32 %v4752, %v4759
        %v4765 = vsub.f32 %v4753, %v4762
        %v4766 = vmul.f32 %v4763, 1.442695
        %v4767 = vpow.pop %v4766
        %v4768 = vmul.f32 %v4764, 1.442695
        %v4769 = vpow.pop %v4768
        %v4770 = vmul.f32 %v4765, 1.442695
        %v4771 = vpow.pop %v4770
        %v4772 = vsel %vm1171, %v4767, 0.0
        %4773 = vadd.xlane.f32.xlu0 %v4772
        %v4774 = vpop.xlane.xlu0 %4773
        %v4775 = vsel %vm1171, %v4769, 0.0
        %4776 = vadd.xlane.f32.xlu0 %v4775
        %v4777 = vpop.xlane.xlu0 %4776
        %v4778 = vsel %vm1171, %v4771, 0.0
        %4779 = vadd.xlane.f32.xlu0 %v4778
        %v4780 = vpop.xlane.xlu0 %4779
        %v4781 = vrcp.pop %v4774
        %v4782 = vmul.f32 %v4767, %v4781
        %v4783 = vrcp.pop %v4777
        %v4784 = vmul.f32 %v4769, %v4783
        %v4785 = vrcp.pop %v4780
        %v4786 = vmul.f32 %v4771, %v4785
        %v4787 = vpack.c.bf16 %v4784, %v4782
        %v4788 = vpack.c.bf16 %v4786, %v4786
        %4789 = vrot.lane.b32.xlu0 %v4139, 32
        %v4790 = vpop.permute.xlu0 %4789
        %4791 = vrot.lane.b32.xlu0 %v4140, 32
        %v4792 = vpop.permute.xlu0 %4791
        %v4795 = vsel %vm1171, %v4787, 0
        %v4798 = vsel %vm1171, %v4788, 0
        %v4801 = vsel %vm1178, %v4792, 0
        %4803 = vmatprep.subr.bf16.mxu0 0
        %4804 = vmatpush1.bf16.msra.mxu0 0
        %4805 = vmatprep.subr.bf16.mxu0 0
        %4806 = vmatpush1.bf16.msra.mxu0 0
        %4807 = vmatprep.subr.bf16.mxu0 0
        %4808 = vmatpush1.bf16.msra.mxu0 0
        %4809 = vmatprep.subr.bf16.mxu0 0
        %4810 = vmatpush1.bf16.msra.mxu0 0
        %4811 = vmatprep.subr.bf16.mxu0 0
        %4812 = vmatpush1.bf16.msra.mxu0 0
        %4813 = vmatprep.subr.bf16.mxu0 0
        %4814 = vmatpush1.bf16.msra.mxu0 0
        %4815 = vmatprep.subr.bf16.mxu0 0
        %4816 = vmatpush1.bf16.msra.mxu0 %v4801
        %4817 = vmatprep.subr.bf16.mxu0 0
        %4818 = vmatpush1.bf16.msra.mxu0 %v4790
        %4819 = vmatprep.subr.bf16.mxu0 0
        %4820 = vmatpush2.bf16.msra.mxu0 0
        %4821 = vmatprep.subr.bf16.mxu0 0
        %4822 = vmatpush2.bf16.msra.mxu0 0
        %4823 = vmatprep.subr.bf16.mxu0 0
        %4824 = vmatpush2.bf16.msra.mxu0 0
        %4825 = vmatprep.subr.bf16.mxu0 0
        %4826 = vmatpush2.bf16.msra.mxu0 0
        %4827 = vmatprep.subr.bf16.mxu0 0
        %4828 = vmatpush2.bf16.msra.mxu0 0
        %4829 = vmatprep.subr.bf16.mxu0 0
        %4830 = vmatpush2.bf16.msra.mxu0 0
        %4831 = vmatprep.subr.bf16.mxu0 0
        %4832 = vmatpush2.bf16.msra.mxu0 0
        %4833 = vmatprep.subr.bf16.mxu0 0
        %4834 = vmatpush2.bf16.msra.mxu0 0
        %4835 = vmatprep.mubr.bf16.mxu0 0
        %4836 = vmatmul.mubr.bf16.gmra.mxu0 %v4795
        %v4837 = vpop.f32.mrf.mxu0
        %v4838 = vadd.f32 0.0, %v4837
        %v4839 = vpop.f32.mrf.mxu0
        %v4840 = vpop.f32.mrf.mxu0
        %v4841 = vadd.f32 0.0, %v4840
        %v4842 = vpop.f32.mrf.mxu0
        %4843 = vmatprep.mubr.bf16.mxu0 0
        %4844 = vmatmul.mubr.bf16.gmra.mxu0 %v4798
        %v4845 = vpop.f32.mrf.mxu0
        %v4846 = vadd.f32 0.0, %v4845
        %v4847 = vpop.f32.mrf.mxu0
        %v4848 = vpop.f32.mrf.mxu0
        %v4849 = vpop.f32.mrf.mxu0
        %4850 = vdwg.mxu0
        %4854 = vrot.lane.b32.xlu0 %v4838, 96
        %v4855 = vpop.permute.xlu0 %4854
        %4856 = vrot.lane.b32.xlu0 %v4841, 96
        %v4857 = vpop.permute.xlu0 %4856
        %4858 = vrot.lane.b32.xlu0 %v4846, 96
        %v4859 = vpop.permute.xlu0 %4858
        %4863 = vst.msk [vmem:[#allocation2] sm:$0xff] %vm2239, %v4855
        %4864 = vst.msk [vmem:[#allocation2 + $0x8] sm:$0xff] %vm2239, %v4857
        %4865 = vst.msk [vmem:[#allocation2 + $0x10] sm:$0xff] %vm2239, %v4859
        %v4866 = vld [vmem:[#allocation2] sm:$0xff]
        %v4867 = vld [vmem:[#allocation2 + $0x8] sm:$0xff]
        %v4868 = vld [vmem:[#allocation2 + $0x10] sm:$0xff]
        %v4869 = vpack.c.bf16 %v4867, %v4866
        %v4870 = vpack.c.bf16 %v4868, %v4868
        %v4871 = vld [vmem:[#allocation21] sm:$0xf]
        %v4872 = vld [vmem:[#allocation21 + $0x4] sm:$0xf]
        %v4873 = vld [vmem:[#allocation21 + $0x8] sm:$0xf]
        %v4874 = vld [vmem:[#allocation21 + $0xc] sm:$0xf]
        %v4875 = vld [vmem:[#allocation21 + $0x10] sm:$0xf]
        %v4876 = vld [vmem:[#allocation21 + $0x14] sm:$0xf]
        %v4877 = vld [vmem:[#allocation21 + $0x18] sm:$0xf]
        %v4878 = vld [vmem:[#allocation21 + $0x1c] sm:$0xf]
        %v4879 = vld [vmem:[#allocation21 + $0x20] sm:$0xf]
        %v4880 = vld [vmem:[#allocation21 + $0x24] sm:$0xf]
        %v4881 = vld [vmem:[#allocation21 + $0x28] sm:$0xf]
        %v4882 = vld [vmem:[#allocation21 + $0x2c] sm:$0xf]
        %v4883 = vld [vmem:[#allocation21 + $0x30] sm:$0xf]
        %v4884 = vld [vmem:[#allocation21 + $0x34] sm:$0xf]
        %v4885 = vld [vmem:[#allocation21 + $0x38] sm:$0xf]
        %v4886 = vld [vmem:[#allocation21 + $0x3c] sm:$0xf]
        %v4887 = vld [vmem:[%s17] sm:$0x1]
        %v4889 = vlaneseq
        %v4890 = vshrl.u32 %v4889, 7
        %v4891 = vsub.s32 0, %v4890
        %v4892 = vrot.slane %v4887, %v4891
        %v4910 = vunpack.c.l.b16 %v4871
        %v4911 = vunpack.c.l.b16 %v4872
        %v4912 = vunpack.c.l.b16 %v4873
        %v4913 = vunpack.c.l.b16 %v4874
        %v4914 = vunpack.c.l.b16 %v4875
        %v4915 = vunpack.c.l.b16 %v4876
        %v4916 = vunpack.c.l.b16 %v4877
        %v4917 = vunpack.c.l.b16 %v4878
        %v4918 = vunpack.c.l.b16 %v4879
        %v4919 = vunpack.c.l.b16 %v4880
        %v4920 = vunpack.c.l.b16 %v4881
        %v4921 = vunpack.c.l.b16 %v4882
        %v4922 = vunpack.c.l.b16 %v4883
        %v4923 = vunpack.c.l.b16 %v4884
        %v4924 = vunpack.c.l.b16 %v4885
        %v4925 = vunpack.c.l.b16 %v4886
        %v4926 = vpack.c.b16 %v4911, %v4910
        %v4927 = vpack.c.b16 %v4913, %v4912
        %v4928 = vpack.c.b16 %v4915, %v4914
        %v4929 = vpack.c.b16 %v4917, %v4916
        %v4930 = vpack.c.b16 %v4919, %v4918
        %v4931 = vpack.c.b16 %v4921, %v4920
        %v4932 = vpack.c.b16 %v4923, %v4922
        %v4933 = vpack.c.b16 %v4925, %v4924
        %4942 = vmatprep.subr.bf16.mxu0 0
        %4943 = vmatpush1.bf16.msra.mxu0 %v4933
        %4944 = vmatprep.subr.bf16.mxu0 0
        %4945 = vmatpush1.bf16.msra.mxu0 %v4932
        %4946 = vmatprep.subr.bf16.mxu0 0
        %4947 = vmatpush1.bf16.msra.mxu0 %v4931
        %4948 = vmatprep.subr.bf16.mxu0 0
        %4949 = vmatpush1.bf16.msra.mxu0 %v4930
        %4950 = vmatprep.subr.bf16.mxu0 0
        %4951 = vmatpush1.bf16.msra.mxu0 %v4929
        %4952 = vmatprep.subr.bf16.mxu0 0
        %4953 = vmatpush1.bf16.msra.mxu0 %v4928
        %4954 = vmatprep.subr.bf16.mxu0 0
        %4955 = vmatpush1.bf16.msra.mxu0 %v4927
        %4956 = vmatprep.subr.bf16.mxu0 0
        %4957 = vmatpush1.bf16.msra.mxu0 %v4926
        %4958 = vmatprep.subr.bf16.mxu0 0
        %4959 = vmatpush2.bf16.msra.mxu0 0
        %4960 = vmatprep.subr.bf16.mxu0 0
        %4961 = vmatpush2.bf16.msra.mxu0 0
        %4962 = vmatprep.subr.bf16.mxu0 0
        %4963 = vmatpush2.bf16.msra.mxu0 0
        %4964 = vmatprep.subr.bf16.mxu0 0
        %4965 = vmatpush2.bf16.msra.mxu0 0
        %4966 = vmatprep.subr.bf16.mxu0 0
        %4967 = vmatpush2.bf16.msra.mxu0 0
        %4968 = vmatprep.subr.bf16.mxu0 0
        %4969 = vmatpush2.bf16.msra.mxu0 0
        %4970 = vmatprep.subr.bf16.mxu0 0
        %4971 = vmatpush2.bf16.msra.mxu0 0
        %4972 = vmatprep.subr.bf16.mxu0 0
        %4973 = vmatpush2.bf16.msra.mxu0 0
        %4974 = vmatprep.mubr.bf16.mxu0 0
        %4975 = vmatmul.mubr.bf16.gmra.mxu0 %v4869
        %v4976 = vpop.f32.mrf.mxu0
        %v4977 = vadd.f32 %v4892, %v4976
        %v4978 = vpop.f32.mrf.mxu0
        %v4979 = vpop.f32.mrf.mxu0
        %v4980 = vadd.f32 %v4892, %v4979
        %v4981 = vpop.f32.mrf.mxu0
        %4982 = vmatprep.mubr.bf16.mxu0 0
        %4983 = vmatmul.mubr.bf16.gmra.mxu0 %v4870
        %v4984 = vpop.f32.mrf.mxu0
        %v4985 = vadd.f32 %v4892, %v4984
        %v4986 = vpop.f32.mrf.mxu0
        %v4987 = vpop.f32.mrf.mxu0
        %v4988 = vpop.f32.mrf.mxu0
        %4989 = vdwg.mxu0
        %v4990 = vld [vmem:[#allocation9] sm:$0xff]
        %v4992 = vsel %vm1171, %v4990, 0
        %4994 = vmatprep.subr.mxu0 0.0
        %4995 = vmatpush1.msra.mxu0 0.0
        %4996 = vmatprep.subr.mxu0 0.0
        %4997 = vmatpush1.msra.mxu0 0.0
        %4998 = vmatprep.subr.mxu0 0.0
        %4999 = vmatpush1.msra.mxu0 0.0
        %5000 = vmatprep.subr.mxu0 0.0
        %5001 = vmatpush1.msra.mxu0 0.0
        %5002 = vmatprep.subr.mxu0 0.0
        %5003 = vmatpush1.msra.mxu0 0.0
        %5004 = vmatprep.subr.mxu0 0.0
        %5005 = vmatpush1.msra.mxu0 0.0
        %5006 = vmatprep.subr.mxu0 0.0
        %5007 = vmatpush1.msra.mxu0 0.0
        %5008 = vmatprep.subr.mxu0 0.0
        %5009 = vmatpush1.msra.mxu0 0.0
        %5010 = vmatprep.subr.mxu0 0.0
        %5011 = vmatpush1.msra.mxu0 0.0
        %5012 = vmatprep.subr.mxu0 0.0
        %5013 = vmatpush1.msra.mxu0 0.0
        %5014 = vmatprep.subr.mxu0 0.0
        %5015 = vmatpush1.msra.mxu0 0.0
        %5016 = vmatprep.subr.mxu0 0.0
        %5017 = vmatpush1.msra.mxu0 0.0
        %5018 = vmatprep.subr.mxu0 0.0
        %5019 = vmatpush1.msra.mxu0 0.0
        %5020 = vmatprep.subr.mxu0 0.0
        %5021 = vmatpush1.msra.mxu0 %v4985
        %5022 = vmatprep.subr.mxu0 0.0
        %5023 = vmatpush1.msra.mxu0 %v4980
        %5024 = vmatprep.subr.mxu0 0.0
        %5025 = vmatpush1.msra.mxu0 %v4977
        %5026 = vmatprep.subr.mxu0 0.0
        %5027 = vmatpush2.msra.mxu0 0.0
        %5028 = vmatprep.subr.mxu0 0.0
        %5029 = vmatpush2.msra.mxu0 0.0
        %5030 = vmatprep.subr.mxu0 0.0
        %5031 = vmatpush2.msra.mxu0 0.0
        %5032 = vmatprep.subr.mxu0 0.0
        %5033 = vmatpush2.msra.mxu0 0.0
        %5034 = vmatprep.subr.mxu0 0.0
        %5035 = vmatpush2.msra.mxu0 0.0
        %5036 = vmatprep.subr.mxu0 0.0
        %5037 = vmatpush2.msra.mxu0 0.0
        %5038 = vmatprep.subr.mxu0 0.0
        %5039 = vmatpush2.msra.mxu0 0.0
        %5040 = vmatprep.subr.mxu0 0.0
        %5041 = vmatpush2.msra.mxu0 0.0
        %5042 = vmatprep.subr.mxu0 0.0
        %5043 = vmatpush2.msra.mxu0 0.0
        %5044 = vmatprep.subr.mxu0 0.0
        %5045 = vmatpush2.msra.mxu0 0.0
        %5046 = vmatprep.subr.mxu0 0.0
        %5047 = vmatpush2.msra.mxu0 0.0
        %5048 = vmatprep.subr.mxu0 0.0
        %5049 = vmatpush2.msra.mxu0 0.0
        %5050 = vmatprep.subr.mxu0 0.0
        %5051 = vmatpush2.msra.mxu0 0.0
        %5052 = vmatprep.subr.mxu0 0.0
        %5053 = vmatpush2.msra.mxu0 0.0
        %5054 = vmatprep.subr.mxu0 0.0
        %5055 = vmatpush2.msra.mxu0 0.0
        %5056 = vmatprep.subr.mxu0 0.0
        %5057 = vmatpush2.msra.mxu0 0.0
        %5058 = vmatprep.mubr.f32.mxu0 0.0
        %5059 = vmatmul.mubr.f32.gmra.mxu0 %v4992
        %v5060 = vpop.f32.mrf.mxu0
        %v5061 = vadd.f32 0.0, %v5060
        %v5062 = vpop.f32.mrf.mxu0
        %5063 = vdwg.mxu0
        %5064 = vadd.xlane.f32.xlu0 %v5061
        %v5065 = vpop.xlane.xlu0 %5064
        %v5066 = vmul.f32 %v5065, %v3685
        %v5067 = vsub.f32 %v5061, %v5066
        %v5068 = vmul.f32 %v5067, %v5067
        %5069 = vadd.xlane.f32.xlu0 %v5068
        %v5070 = vpop.xlane.xlu0 %5069
        %v5071 = vmul.f32 %v5070, %v3685
        %v5072 = vadd.f32 %v5071, 1e-05
        %v5073 = vrsqrt.pop %v5072
        %v5074 = vmul.f32 %v5067, %v5073
        %v5075 = vld [vmem:[%s22] sm:$0x1]
        %v5077 = vlaneseq
        %v5078 = vshrl.u32 %v5077, 7
        %v5079 = vsub.s32 0, %v5078
        %v5080 = vrot.slane %v5075, %v5079
        %v5082 = vmul.f32 %v5074, %v5080
        %v5083 = vld [vmem:[%s23] sm:$0x1]
        %v5085 = vlaneseq
        %v5086 = vshrl.u32 %v5085, 7
        %v5087 = vsub.s32 0, %v5086
        %v5088 = vrot.slane %v5083, %v5087
        %v5090 = vadd.f32 %v5082, %v5088
        %v5091 = vpack.c.bf16 %v5090, %v5090
        %v5092 = vld [vmem:[#allocation24] sm:$0xf]
        %v5093 = vld [vmem:[#allocation24 + $0x4] sm:$0xf]
        %v5094 = vld [vmem:[#allocation24 + $0x8] sm:$0xf]
        %v5095 = vld [vmem:[#allocation24 + $0xc] sm:$0xf]
        %v5096 = vld [vmem:[#allocation24 + $0x10] sm:$0xf]
        %v5097 = vld [vmem:[#allocation24 + $0x14] sm:$0xf]
        %v5098 = vld [vmem:[#allocation24 + $0x18] sm:$0xf]
        %v5099 = vld [vmem:[#allocation24 + $0x1c] sm:$0xf]
        %v5100 = vld [vmem:[#allocation24 + $0x20] sm:$0xf]
        %v5101 = vld [vmem:[#allocation24 + $0x24] sm:$0xf]
        %v5102 = vld [vmem:[#allocation24 + $0x28] sm:$0xf]
        %v5103 = vld [vmem:[#allocation24 + $0x2c] sm:$0xf]
        %v5104 = vld [vmem:[#allocation24 + $0x30] sm:$0xf]
        %v5105 = vld [vmem:[#allocation24 + $0x34] sm:$0xf]
        %v5106 = vld [vmem:[#allocation24 + $0x38] sm:$0xf]
        %v5107 = vld [vmem:[#allocation24 + $0x3c] sm:$0xf]
        %v5108 = vld [vmem:[%s25] sm:$0x1]
        %v5110 = vlaneseq
        %v5111 = vshrl.u32 %v5110, 7
        %v5112 = vsub.s32 0, %v5111
        %v5113 = vrot.slane %v5108, %v5112
        %v5131 = vunpack.c.l.b16 %v5092
        %v5132 = vunpack.c.l.b16 %v5093
        %v5133 = vunpack.c.l.b16 %v5094
        %v5134 = vunpack.c.l.b16 %v5095
        %v5135 = vunpack.c.l.b16 %v5096
        %v5136 = vunpack.c.l.b16 %v5097
        %v5137 = vunpack.c.l.b16 %v5098
        %v5138 = vunpack.c.l.b16 %v5099
        %v5139 = vunpack.c.l.b16 %v5100
        %v5140 = vunpack.c.l.b16 %v5101
        %v5141 = vunpack.c.l.b16 %v5102
        %v5142 = vunpack.c.l.b16 %v5103
        %v5143 = vunpack.c.l.b16 %v5104
        %v5144 = vunpack.c.l.b16 %v5105
        %v5145 = vunpack.c.l.b16 %v5106
        %v5146 = vunpack.c.l.b16 %v5107
        %v5147 = vpack.c.b16 %v5132, %v5131
        %v5148 = vpack.c.b16 %v5134, %v5133
        %v5149 = vpack.c.b16 %v5136, %v5135
        %v5150 = vpack.c.b16 %v5138, %v5137
        %v5151 = vpack.c.b16 %v5140, %v5139
        %v5152 = vpack.c.b16 %v5142, %v5141
        %v5153 = vpack.c.b16 %v5144, %v5143
        %v5154 = vpack.c.b16 %v5146, %v5145
        %5163 = vmatprep.subr.bf16.mxu0 0
        %5164 = vmatpush1.bf16.msra.mxu0 %v5154
        %5165 = vmatprep.subr.bf16.mxu0 0
        %5166 = vmatpush1.bf16.msra.mxu0 %v5153
        %5167 = vmatprep.subr.bf16.mxu0 0
        %5168 = vmatpush1.bf16.msra.mxu0 %v5152
        %5169 = vmatprep.subr.bf16.mxu0 0
        %5170 = vmatpush1.bf16.msra.mxu0 %v5151
        %5171 = vmatprep.subr.bf16.mxu0 0
        %5172 = vmatpush1.bf16.msra.mxu0 %v5150
        %5173 = vmatprep.subr.bf16.mxu0 0
        %5174 = vmatpush1.bf16.msra.mxu0 %v5149
        %5175 = vmatprep.subr.bf16.mxu0 0
        %5176 = vmatpush1.bf16.msra.mxu0 %v5148
        %5177 = vmatprep.subr.bf16.mxu0 0
        %5178 = vmatpush1.bf16.msra.mxu0 %v5147
        %5179 = vmatprep.subr.bf16.mxu0 0
        %5180 = vmatpush2.bf16.msra.mxu0 0
        %5181 = vmatprep.subr.bf16.mxu0 0
        %5182 = vmatpush2.bf16.msra.mxu0 0
        %5183 = vmatprep.subr.bf16.mxu0 0
        %5184 = vmatpush2.bf16.msra.mxu0 0
        %5185 = vmatprep.subr.bf16.mxu0 0
        %5186 = vmatpush2.bf16.msra.mxu0 0
        %5187 = vmatprep.subr.bf16.mxu0 0
        %5188 = vmatpush2.bf16.msra.mxu0 0
        %5189 = vmatprep.subr.bf16.mxu0 0
        %5190 = vmatpush2.bf16.msra.mxu0 0
        %5191 = vmatprep.subr.bf16.mxu0 0
        %5192 = vmatpush2.bf16.msra.mxu0 0
        %5193 = vmatprep.subr.bf16.mxu0 0
        %5194 = vmatpush2.bf16.msra.mxu0 0
        %5195 = vmatprep.mubr.bf16.mxu0 0
        %5196 = vmatmul.mubr.bf16.gmra.mxu0 %v5091
        %v5197 = vpop.f32.mrf.mxu0
        %v5198 = vadd.f32 %v5113, %v5197
        %v5199 = vpop.f32.mrf.mxu0
        %v5200 = vpop.f32.mrf.mxu0
        %v5201 = vpop.f32.mrf.mxu0
        %5202 = vdwg.mxu0
        %5203 = vst [vmem:[%s1034] sm:$0xff] %v5198
        %s5204 = sand.u32 %s614, 1
        %s5205 = scalar_lea.sflag [#allocation5], %s5204
        %s5206 = sand.u32 %s614, 1
        %s5207 = smul.addr %s5206, 24
        %s5208 = scalar_lea.vmem [#allocation26], %s5207
        %s5209 = sand.u32 %s640, 1
        %s5210 = scalar_lea.sflag [#allocation28], %s5209
        %s5211 = sand.u32 %s640, 1
        %s5212 = smul.addr %s5211, 8
        %s5213 = scalar_lea.vmem [#allocation27], %s5212
        // Predicated region
        $region181: #{tpu_custom_call.1} parent=123 // pred_check
          %p5214 = pneg %p624
        $region182: #{tpu_custom_call.1} parent=123 // pred_check_branch
          %5216 = sbr.rel (%p5214) target = $region184
        $region183: #{tpu_custom_call.1} parent=123 // pred_region
          %s5217 = smul.u32 3, %s55
          %s5219 = ssub.s32 384, 384
          %5220 = vsyncadd %s5205, %s5219
          %s5221 = smul.addr %s5217, 128
          %s5222 = scalar_lea.hbm %s26, %s5221
          %s5223 = sshll.u32 %s5208, 4
          %s5224 = int_to_ptr.vmem [resolvable:$true] %s5223
          %5229 = dma.vmem_to_hbm [thread:$0]  %s5224, 384, %s5222, %s5205, 128, 128, 8
        $region184: #{tpu_custom_call.1} parent=123 // pred_fallthru
          _
        // Predicated region
        $region185: #{tpu_custom_call.1} parent=123 // pred_check
          %p5230 = pneg %p650
        $region186: #{tpu_custom_call.1} parent=123 // pred_check_branch
          %5232 = sbr.rel (%p5230) target = $region188
        $region187: #{tpu_custom_call.1} parent=123 // pred_region
          %s5234 = ssub.s32 128, 128
          %5235 = vsyncadd %s5210, %s5234
          %s5236 = smul.addr %s55, 128
          %s5237 = scalar_lea.hbm %s27, %s5236
          %s5239 = sshll.u32 %s5213, 4
          %s5240 = int_to_ptr.vmem [resolvable:$true] %s5239
          %5242 = dma.vmem_to_hbm [thread:$0]  %s5240, 128, %s5237, %s5210
        $region188: #{tpu_custom_call.1} parent=123 // pred_fallthru
          _
      $region124: #{tpu_custom_call.1} parent=5 // pred_fallthru
        _
      %p5243 = scmp.le.s32.totalorder 2, %s50
      // Predicated region
      $region189: #{tpu_custom_call.1} parent=5 // pred_check
        %p5244 = pneg %p5243
      $region190: #{tpu_custom_call.1} parent=5 // pred_check_branch
        %5246 = sbr.rel (%p5244) target = $region192
      $region191: #{tpu_custom_call.1} parent=5 // pred_region
        %s5247 = ssub.s32 %s50, 2
        // Predicated region
        $region193: #{tpu_custom_call.1} parent=191 // pred_check
          %p5248 = pneg %p630
        $region194: #{tpu_custom_call.1} parent=191 // pred_check_branch
          %5250 = sbr.rel (%p5248) target = $region196
        $region195: #{tpu_custom_call.1} parent=191 // pred_region
          %s5251 = sand.u32 %s615, 1
          %s5252 = scalar_lea.sflag [#allocation5], %s5251
          %s5253 = sand.u32 %s615, 1
          %s5254 = smul.addr %s5253, 24
          %s5255 = scalar_lea.vmem [#allocation26], %s5254
          %5256 = dma.done %s5252, 384
        $region196: #{tpu_custom_call.1} parent=191 // pred_fallthru
          _
        // Predicated region
        $region197: #{tpu_custom_call.1} parent=191 // pred_check
          %p5257 = pneg %p656
        $region198: #{tpu_custom_call.1} parent=191 // pred_check_branch
          %5259 = sbr.rel (%p5257) target = $region200
        $region199: #{tpu_custom_call.1} parent=191 // pred_region
          %s5260 = sand.u32 %s641, 1
          %s5261 = scalar_lea.sflag [#allocation28], %s5260
          %s5262 = sand.u32 %s641, 1
          %s5263 = smul.addr %s5262, 8
          %s5264 = scalar_lea.vmem [#allocation27], %s5263
          %5265 = dma.done %s5261, 128
        $region200: #{tpu_custom_call.1} parent=191 // pred_fallthru
          _
      $region192: #{tpu_custom_call.1} parent=5 // pred_fallthru
        _
    $region6: #{tpu_custom_call.1} parent=1 // loop_footer
      %s54 = sadd.s32 1, %s50
    $region7: #{tpu_custom_call.1} parent=1 // loop_footer_branch
      %49 = sbr.rel target = $region3
    $region8: #{tpu_custom_call.1} parent=1 // loop_exit
      _
    %5266 = vsyncpa [#allocation4], 1
    %s5267 = scalar_lea.sflag [#allocation4], 1
    %5268 = vsyncpa %s5267, 1
    %5269 = vsyncpa [#allocation7], 1
    %5270 = vsyncpa [#allocation10], 1
    %5271 = vsyncpa [#allocation13], 1
    %5272 = vsyncpa [#allocation16], 1
    %5273 = vsyncpa [#allocation19], 1
    %5274 = vsyncpa [#allocation22], 1
    %5275 = vsyncpa [#allocation25], 1
    %5276 = vsyncpa [#allocation5], 1
    %s5277 = scalar_lea.sflag [#allocation5], 1
    %5278 = vsyncpa %s5277, 1
    %5279 = vsyncpa [#allocation28], 1
    %s5280 = scalar_lea.sflag [#allocation28], 1
    %5281 = vsyncpa %s5280, 1

</llo_original>
